<compile_context>
chip_gen: v7x
topology: tpu7x:2x2x1
jax: 0.10.0
libtpu: 0.0.40
codegen_flags: <defaults>
</compile_context>

<pallas_src>
import jax
import jax.numpy as jnp
from jax.experimental import pallas as pl
from jax.experimental.pallas import tpu as pltpu

# --- model hyperparameters (from the PyTorch source) ---
block_size = 8
n_embd = 32
batch_size = 32          # also used as head_size in the source (Head(batch_size))
head_size = batch_size   # = 32 (== n_embd, so lm_head input dim matches)
vocab_size = 65          # deterministic stand-in for len(set(text))
VPAD = 128               # vocab padded to a full lane width


def _bigram_kernel(idx_ref, tok_ref, pos_ref, wk_ref, wq_ref, wv_ref,
                   wlm_ref, blm_ref, o_ref):
    """One grid step processes Bb batch elements.

    idx_ref: (Bb*T, 1) int32 token ids (flattened)
    tok_ref: (VPAD, C)  zero-padded token embedding table
    pos_ref: (Bb*T, C)  position embeddings, pre-tiled per batch element
    wk/wq/wv:(C, H)     projection weights, (in, out) layout
    wlm_ref: (C, VPAD)  lm_head weight, (in, out) layout, zero-padded cols
    blm_ref: (1, VPAD)  lm_head bias, zero-padded
    o_ref:   (Bb*T, VPAD) logits (lane-dense)
    """
    BT = idx_ref.shape[0]
    T = block_size
    Bb = BT // T
    C = n_embd
    H = head_size

    # --- fused embedding lookup: one-hot(idx) @ token_table (MXU), + pos emb ---
    idx = idx_ref[...]                                             # (BT, 1) int32
    vocab_iota = jax.lax.broadcasted_iota(jnp.int32, (BT, VPAD), 1)
    onehot = (vocab_iota == idx).astype(jnp.float32)               # (BT, VPAD)
    x = jnp.dot(onehot, tok_ref[...],
                preferred_element_type=jnp.float32)                # (BT, C)
    x = x + pos_ref[...]                                           # (BT, C)

    # --- k/q/v projections as single 2-D matmuls on the (Bb*T, C) slab ---
    k = jnp.dot(x, wk_ref[...], preferred_element_type=jnp.float32)   # (BT, H)
    q = jnp.dot(x, wq_ref[...], preferred_element_type=jnp.float32)   # (BT, H)
    v = jnp.dot(x, wv_ref[...], preferred_element_type=jnp.float32)   # (BT, H)

    k3 = k.reshape(Bb, T, H)
    q3 = q.reshape(Bb, T, H)
    v3 = v.reshape(Bb, T, H)

    # scores: contract last dims directly (no explicit transpose of k)
    wei = jnp.einsum("bqd,bkd->bqk", q3, k3,
                     preferred_element_type=jnp.float32) * (C ** -0.5)  # (Bb,T,T)

    # causal mask: key > query -> -inf (every softmax column keeps >=1 finite entry)
    rowi = jax.lax.broadcasted_iota(jnp.int32, (Bb, T, T), 1)       # query index
    coli = jax.lax.broadcasted_iota(jnp.int32, (Bb, T, T), 2)       # key index
    wei = jnp.where(coli > rowi, -jnp.inf, wei)

    # softmax over dim=1 (the QUERY axis), exactly as in the PyTorch source.
    m = jnp.max(wei, axis=1, keepdims=True)                         # (Bb,1,T)
    e = jnp.exp(wei - m)
    denom = jnp.sum(e, axis=1, keepdims=True)                       # (Bb,1,T)
    wei = e * pl.reciprocal(denom, approx=True)

    out3 = jnp.einsum("bqk,bkd->bqd", wei, v3,
                      preferred_element_type=jnp.float32)           # (Bb, T, H)
    out = out3.reshape(BT, H)

    # lm_head on the full slab; output lanes are dense (VPAD = 128)
    logits = (jnp.dot(out, wlm_ref[...], preferred_element_type=jnp.float32)
              + blm_ref[...])                                       # (BT, VPAD)
    o_ref[...] = logits.astype(o_ref.dtype)


def prepare_kernel_params(params):
    """One-time prep: transpose weights to (in, out) and pad vocab dim to 128."""
    tok_pad = jnp.zeros((VPAD, n_embd), jnp.float32).at[:vocab_size].set(
        params["tok_emb"].astype(jnp.float32))
    wlm_pad = jnp.zeros((n_embd, VPAD), jnp.float32).at[:, :vocab_size].set(
        params["wlm"].T.astype(jnp.float32))
    blm_pad = jnp.zeros((1, VPAD), jnp.float32).at[0, :vocab_size].set(
        params["blm"].astype(jnp.float32))
    return {
        "tok_pad": tok_pad,
        "pos_emb": params["pos_emb"].astype(jnp.float32),
        "wk_t": params["wk"].T.astype(jnp.float32),
        "wq_t": params["wq"].T.astype(jnp.float32),
        "wv_t": params["wv"].T.astype(jnp.float32),
        "wlm_pad": wlm_pad,
        "blm_pad": blm_pad,
    }


def bigram_forward(idx, kp):
    """Forward pass (targets=None path): returns logits (B, T, vocab_size)."""
    B, T = idx.shape
    assert T == block_size
    # 2 grid steps so both v7x TensorCores get a block, while amortizing the
    # per-step overhead over half the batch each.
    num_blocks = 2 if (B % 2 == 0 and B >= 2) else 1
    Bb = B // num_blocks
    BT = Bb * T

    idx_flat = idx.reshape(B * T, 1).astype(jnp.int32)
    # pos embeddings pre-tiled to the per-block slab layout (same every block)
    pos_tiled = jnp.tile(kp["pos_emb"], (Bb, 1))                    # (BT, C)

    C, H = n_embd, head_size
    logits_flat = pl.pallas_call(
        _bigram_kernel,
        out_shape=jax.ShapeDtypeStruct((B * T, VPAD), jnp.float32),
        grid_spec=pltpu.PrefetchScalarGridSpec(
            num_scalar_prefetch=0,
            grid=(num_blocks,),
            in_specs=[
                pl.BlockSpec((BT, 1), lambda b: (b, 0)),        # idx
                pl.BlockSpec((VPAD, C), lambda b: (0, 0)),      # token table
                pl.BlockSpec((BT, C), lambda b: (0, 0)),        # pos (tiled)
                pl.BlockSpec((C, H), lambda b: (0, 0)),         # wk
                pl.BlockSpec((C, H), lambda b: (0, 0)),         # wq
                pl.BlockSpec((C, H), lambda b: (0, 0)),         # wv
                pl.BlockSpec((C, VPAD), lambda b: (0, 0)),      # wlm (padded)
                pl.BlockSpec((1, VPAD), lambda b: (0, 0)),      # blm (padded)
            ],
            out_specs=pl.BlockSpec((BT, VPAD), lambda b: (b, 0)),
        ),
        compiler_params=pltpu.CompilerParams(
            dimension_semantics=("parallel",)),
    )(idx_flat, kp["tok_pad"], pos_tiled, kp["wk_t"], kp["wq_t"], kp["wv_t"],
      kp["wlm_pad"], kp["blm_pad"])

    return logits_flat.reshape(B, T, VPAD)[:, :, :vocab_size]


def _reference_forward(idx, params):
    """Pure-JAX reference matching the PyTorch semantics exactly."""
    B, T = idx.shape
    tok_emb = jnp.take(params["tok_emb"], idx, axis=0)
    pos_emb = params["pos_emb"][:T]
    x = (tok_emb + pos_emb[None, :, :]).astype(jnp.float32)
    k = x @ params["wk"].T
    q = x @ params["wq"].T
    v = x @ params["wv"].T
    wei = jnp.einsum("btc,bsc->bts", q, k) * (n_embd ** -0.5)
    tril = jnp.tril(jnp.ones((T, T)))
    wei = jnp.where(tril[None] == 0, -jnp.inf, wei)
    wei = jax.nn.softmax(wei, axis=1)      # dim=1, as in the source
    out = jnp.einsum("bts,bsh->bth", wei, v)
    logits = out @ params["wlm"].T + params["blm"]
    return logits


def init_params(key):
    ks = jax.random.split(key, 6)
    scale = 0.02
    return {
        "tok_emb": scale * jax.random.normal(ks[0], (vocab_size, n_embd), jnp.float32),
        "pos_emb": scale * jax.random.normal(ks[1], (block_size, n_embd), jnp.float32),
        "wk": scale * jax.random.normal(ks[2], (head_size, n_embd), jnp.float32),
        "wq": scale * jax.random.normal(ks[3], (head_size, n_embd), jnp.float32),
        "wv": scale * jax.random.normal(ks[4], (head_size, n_embd), jnp.float32),
        "wlm": scale * jax.random.normal(ks[5], (vocab_size, n_embd), jnp.float32),
        "blm": jnp.zeros((vocab_size,), jnp.float32),
    }


if __name__ == "__main__":
    key = jax.random.PRNGKey(0)
    pkey, ikey = jax.random.split(key)
    params = init_params(pkey)
    kparams = prepare_kernel_params(params)   # one-time: transpose + pad

    B, T = batch_size, block_size             # (32, 8)
    idx = jax.random.randint(ikey, (B, T), 0, vocab_size, dtype=jnp.int32)

    logits = jax.jit(bigram_forward)(idx, kparams)
    logits = jax.block_until_ready(logits)

    ref = _reference_forward(idx, params)
    assert logits.shape == (B, T, vocab_size)
    assert jnp.allclose(logits, ref, atol=1e-4, rtol=1e-3), "mismatch vs reference"

    # TODO(synk): cross_entropy loss path and autoregressive generate() are
    # host-level glue / sampling; not part of the kernel hot path.
    print("KERNEL_OK")
</pallas_src>

<mosaic_0001>
module attributes {stable_mosaic.version = 11 : i64} {
  func.func @_bigram_kernel(%arg0: i32, %arg1: memref<128x1xi32, #tpu.memory_space<vmem>>, %arg2: memref<128x32xf32, #tpu.memory_space<vmem>>, %arg3: memref<128x32xf32, #tpu.memory_space<vmem>>, %arg4: memref<32x32xf32, #tpu.memory_space<vmem>>, %arg5: memref<32x32xf32, #tpu.memory_space<vmem>>, %arg6: memref<32x32xf32, #tpu.memory_space<vmem>>, %arg7: memref<32x128xf32, #tpu.memory_space<vmem>>, %arg8: memref<1x128xf32, #tpu.memory_space<vmem>>, %arg9: memref<128x128xf32, #tpu.memory_space<vmem>>) attributes {dimension_semantics = [#tpu.dimension_semantics<parallel>], iteration_bounds = array<i64: 2>, scalar_prefetch = 0 : i64, scratch_operands = 0 : i64, tpu.core_type = #tpu.core_type<tc>, window_params = [{transform_indices = @transform_0, window_bounds = array<i64: 128, 1>}, {pipeline_mode = #tpu.pipeline_mode<synchronous>, transform_indices = @transform_1, window_bounds = array<i64: 128, 32>}, {pipeline_mode = #tpu.pipeline_mode<synchronous>, transform_indices = @transform_2, window_bounds = array<i64: 128, 32>}, {pipeline_mode = #tpu.pipeline_mode<synchronous>, transform_indices = @transform_3, window_bounds = array<i64: 32, 32>}, {pipeline_mode = #tpu.pipeline_mode<synchronous>, transform_indices = @transform_4, window_bounds = array<i64: 32, 32>}, {pipeline_mode = #tpu.pipeline_mode<synchronous>, transform_indices = @transform_5, window_bounds = array<i64: 32, 32>}, {pipeline_mode = #tpu.pipeline_mode<synchronous>, transform_indices = @transform_6, window_bounds = array<i64: 32, 128>}, {pipeline_mode = #tpu.pipeline_mode<synchronous>, transform_indices = @transform_7, window_bounds = array<i64: 1, 128>}, {transform_indices = @transform_8, window_bounds = array<i64: 128, 128>}]} {
    %c0 = arith.constant 0 : index
    %c0_0 = arith.constant 0 : index
    %0 = vector.load %arg1[%c0, %c0_0] : memref<128x1xi32, #tpu.memory_space<vmem>>, vector<128x1xi32>
    %1 = tpu.iota {dimensions = array<i32: 1>} : vector<128x128xi32>
    %2 = vector.broadcast %0 : vector<128x1xi32> to vector<128x128xi32>
    %3 = arith.cmpi eq, %1, %2 : vector<128x128xi32>
    %4 = arith.extui %3 : vector<128x128xi1> to vector<128x128xi32>
    %5 = arith.sitofp %4 : vector<128x128xi32> to vector<128x128xf32>
    %c0_1 = arith.constant 0 : index
    %c0_2 = arith.constant 0 : index
    %6 = vector.load %arg2[%c0_1, %c0_2] : memref<128x32xf32, #tpu.memory_space<vmem>>, vector<128x32xf32>
    %cst = arith.constant dense<0.000000e+00> : vector<128x32xf32>
    %7 = tpu.matmul %5, %6, %cst {dimension_numbers = #tpu.dot_dimension_numbers<[1], [0], [0], [1], [0, 0, 1, 1], [], []>} : vector<128x128xf32>, vector<128x32xf32>, vector<128x32xf32> -> vector<128x32xf32>
    %c0_3 = arith.constant 0 : index
    %c0_4 = arith.constant 0 : index
    %8 = vector.load %arg3[%c0_3, %c0_4] : memref<128x32xf32, #tpu.memory_space<vmem>>, vector<128x32xf32>
    %9 = arith.addf %7, %8 : vector<128x32xf32>
    %c0_5 = arith.constant 0 : index
    %c0_6 = arith.constant 0 : index
    %10 = vector.load %arg4[%c0_5, %c0_6] : memref<32x32xf32, #tpu.memory_space<vmem>>, vector<32x32xf32>
    %cst_7 = arith.constant dense<0.000000e+00> : vector<128x32xf32>
    %11 = tpu.matmul %9, %10, %cst_7 {dimension_numbers = #tpu.dot_dimension_numbers<[1], [0], [0], [1], [0, 0, 1, 1], [], []>} : vector<128x32xf32>, vector<32x32xf32>, vector<128x32xf32> -> vector<128x32xf32>
    %c0_8 = arith.constant 0 : index
    %c0_9 = arith.constant 0 : index
    %12 = vector.load %arg5[%c0_8, %c0_9] : memref<32x32xf32, #tpu.memory_space<vmem>>, vector<32x32xf32>
    %cst_10 = arith.constant dense<0.000000e+00> : vector<128x32xf32>
    %13 = tpu.matmul %9, %12, %cst_10 {dimension_numbers = #tpu.dot_dimension_numbers<[1], [0], [0], [1], [0, 0, 1, 1], [], []>} : vector<128x32xf32>, vector<32x32xf32>, vector<128x32xf32> -> vector<128x32xf32>
    %c0_11 = arith.constant 0 : index
    %c0_12 = arith.constant 0 : index
    %14 = vector.load %arg6[%c0_11, %c0_12] : memref<32x32xf32, #tpu.memory_space<vmem>>, vector<32x32xf32>
    %cst_13 = arith.constant dense<0.000000e+00> : vector<128x32xf32>
    %15 = tpu.matmul %9, %14, %cst_13 {dimension_numbers = #tpu.dot_dimension_numbers<[1], [0], [0], [1], [0, 0, 1, 1], [], []>} : vector<128x32xf32>, vector<32x32xf32>, vector<128x32xf32> -> vector<128x32xf32>
    %16 = vector.shape_cast %11 : vector<128x32xf32> to vector<16x8x32xf32>
    %17 = vector.shape_cast %13 : vector<128x32xf32> to vector<16x8x32xf32>
    %18 = vector.shape_cast %15 : vector<128x32xf32> to vector<16x8x32xf32>
    "tpu.trace_start"() <{level = 10 : i32, message = "bqd,bkd->bqk"}> : () -> ()
    %cst_14 = arith.constant dense<0.000000e+00> : vector<16x8x8xf32>
    %19 = tpu.matmul %17, %16, %cst_14 {dimension_numbers = #tpu.dot_dimension_numbers<[2], [2], [1], [1], [0, 0, 0, 1, 1, 1], [0], [0]>} : vector<16x8x32xf32>, vector<16x8x32xf32>, vector<16x8x8xf32> -> vector<16x8x8xf32>
    "tpu.trace_stop"() : () -> ()
    %cst_15 = arith.constant 0.176776692 : f32
    %20 = vector.broadcast %cst_15 : f32 to vector<16x8x8xf32>
    %21 = arith.mulf %19, %20 : vector<16x8x8xf32>
    %22 = tpu.iota {dimensions = array<i32: 1>} : vector<16x8x8xi32>
    %23 = tpu.iota {dimensions = array<i32: 2>} : vector<16x8x8xi32>
    %24 = arith.cmpi sgt, %23, %22 : vector<16x8x8xi32>
    %cst_16 = arith.constant 0xFF800000 : f32
    %25 = vector.broadcast %cst_16 : f32 to vector<16x8x8xf32>
    %26 = arith.select %24, %25, %21 : vector<16x8x8xi1>, vector<16x8x8xf32>
    %cst_17 = arith.constant dense<0xFF800000> : vector<16x8xf32>
    %27 = vector.multi_reduction <maximumf>, %26, %cst_17 [1] : vector<16x8x8xf32> to vector<16x8xf32>
    %28 = vector.shape_cast %27 : vector<16x8xf32> to vector<16x1x8xf32>
    %29 = vector.broadcast %28 : vector<16x1x8xf32> to vector<16x8x8xf32>
    %30 = arith.subf %26, %29 : vector<16x8x8xf32>
    %31 = math.exp %30 : vector<16x8x8xf32>
    %cst_18 = arith.constant dense<0.000000e+00> : vector<16x8xf32>
    %32 = vector.multi_reduction <add>, %31, %cst_18 [1] : vector<16x8x8xf32> to vector<16x8xf32>
    %33 = vector.shape_cast %32 : vector<16x8xf32> to vector<16x1x8xf32>
    %34 = tpu.reciprocal %33 {approx = true} : vector<16x1x8xf32> -> vector<16x1x8xf32>
    %35 = vector.broadcast %34 : vector<16x1x8xf32> to vector<16x8x8xf32>
    %36 = arith.mulf %31, %35 : vector<16x8x8xf32>
    "tpu.trace_start"() <{level = 10 : i32, message = "bqk,bkd->bqd"}> : () -> ()
    %cst_19 = arith.constant dense<0.000000e+00> : vector<16x8x32xf32>
    %37 = tpu.matmul %36, %18, %cst_19 {dimension_numbers = #tpu.dot_dimension_numbers<[2], [1], [1], [2], [0, 0, 0, 1, 1, 2], [0], [0]>} : vector<16x8x8xf32>, vector<16x8x32xf32>, vector<16x8x32xf32> -> vector<16x8x32xf32>
    "tpu.trace_stop"() : () -> ()
    %38 = vector.shape_cast %37 : vector<16x8x32xf32> to vector<128x32xf32>
    %c0_20 = arith.constant 0 : index
    %c0_21 = arith.constant 0 : index
    %39 = vector.load %arg7[%c0_20, %c0_21] : memref<32x128xf32, #tpu.memory_space<vmem>>, vector<32x128xf32>
    %cst_22 = arith.constant dense<0.000000e+00> : vector<128x128xf32>
    %40 = tpu.matmul %38, %39, %cst_22 {dimension_numbers = #tpu.dot_dimension_numbers<[1], [0], [0], [1], [0, 0, 1, 1], [], []>} : vector<128x32xf32>, vector<32x128xf32>, vector<128x128xf32> -> vector<128x128xf32>
    %c0_23 = arith.constant 0 : index
    %c0_24 = arith.constant 0 : index
    %41 = vector.load %arg8[%c0_23, %c0_24] : memref<1x128xf32, #tpu.memory_space<vmem>>, vector<1x128xf32>
    %42 = vector.broadcast %41 : vector<1x128xf32> to vector<128x128xf32>
    %43 = arith.addf %40, %42 : vector<128x128xf32>
    %c0_25 = arith.constant 0 : index
    %c0_26 = arith.constant 0 : index
    %44 = vector.load %arg9[%c0_25, %c0_26] : memref<128x128xf32, #tpu.memory_space<vmem>>, vector<128x128xf32>
    tpu.vector_store %arg9[%c0_25, %c0_26], %43 {strides = array<i32>} : memref<128x128xf32, #tpu.memory_space<vmem>>, vector<128x128xf32>,
    return
  }
  func.func @transform_0(%arg0: i32) -> (i32, i32) {
    %c0_i32 = arith.constant 0 : i32
    %c0_i32_0 = arith.constant 0 : i32
    return %arg0, %c0_i32 : i32, i32
  }
  func.func @transform_1(%arg0: i32) -> (i32, i32) {
    %c0_i32 = arith.constant 0 : i32
    %c0_i32_0 = arith.constant 0 : i32
    %c0_i32_1 = arith.constant 0 : i32
    return %c0_i32, %c0_i32_0 : i32, i32
  }
  func.func @transform_2(%arg0: i32) -> (i32, i32) {
    %c0_i32 = arith.constant 0 : i32
    %c0_i32_0 = arith.constant 0 : i32
    %c0_i32_1 = arith.constant 0 : i32
    return %c0_i32, %c0_i32_0 : i32, i32
  }
  func.func @transform_3(%arg0: i32) -> (i32, i32) {
    %c0_i32 = arith.constant 0 : i32
    %c0_i32_0 = arith.constant 0 : i32
    %c0_i32_1 = arith.constant 0 : i32
    return %c0_i32, %c0_i32_0 : i32, i32
  }
  func.func @transform_4(%arg0: i32) -> (i32, i32) {
    %c0_i32 = arith.constant 0 : i32
    %c0_i32_0 = arith.constant 0 : i32
    %c0_i32_1 = arith.constant 0 : i32
    return %c0_i32, %c0_i32_0 : i32, i32
  }
  func.func @transform_5(%arg0: i32) -> (i32, i32) {
    %c0_i32 = arith.constant 0 : i32
    %c0_i32_0 = arith.constant 0 : i32
    %c0_i32_1 = arith.constant 0 : i32
    return %c0_i32, %c0_i32_0 : i32, i32
  }
  func.func @transform_6(%arg0: i32) -> (i32, i32) {
    %c0_i32 = arith.constant 0 : i32
    %c0_i32_0 = arith.constant 0 : i32
    %c0_i32_1 = arith.constant 0 : i32
    return %c0_i32, %c0_i32_0 : i32, i32
  }
  func.func @transform_7(%arg0: i32) -> (i32, i32) {
    %c0_i32 = arith.constant 0 : i32
    %c0_i32_0 = arith.constant 0 : i32
    %c0_i32_1 = arith.constant 0 : i32
    return %c0_i32, %c0_i32_0 : i32, i32
  }
  func.func @transform_8(%arg0: i32) -> (i32, i32) {
    %c0_i32 = arith.constant 0 : i32
    %c0_i32_0 = arith.constant 0 : i32
    return %arg0, %c0_i32 : i32, i32
  }
}

</mosaic_0001>

<llo_original>
// kernel: bigram_forward.1
$region0: #{bigram_forward.1}
  #allocation0 [shape = 'u32[]', space=smem, size = 0x4, offset = 0x4, fixed_abs, tag = 'smem constant byte address 0x4 - core index']
  #allocation1 [shape = 'u32[144,128]{1,0:T(1,128)}', space=vmem, size = 0x12000, scoped, tag = 'internal scratch']
  %s0 = inlined_call_operand.vmem [shape: s32[256,1], index: 0, kind: input, shape index: {}]
  %s1 = inlined_call_operand.vmem [shape: f32[128,32], index: 1, kind: input, shape index: {}]
  %s2 = inlined_call_operand.vmem [shape: f32[128,32], index: 2, kind: input, shape index: {}]
  %s3 = inlined_call_operand.vmem [shape: f32[32,32], index: 3, kind: input, shape index: {}]
  %s4 = inlined_call_operand.vmem [shape: f32[32,32], index: 4, kind: input, shape index: {}]
  %s5 = inlined_call_operand.vmem [shape: f32[32,32], index: 5, kind: input, shape index: {}]
  %s6 = inlined_call_operand.vmem [shape: f32[32,128], index: 6, kind: input, shape index: {}]
  %s7 = inlined_call_operand.vmem [shape: f32[1,128], index: 7, kind: input, shape index: {}]
  %s8 = inlined_call_operand.hbm [shape: f32[256,128], index: 8, kind: output, shape index: {}]
  %s9 = sld [smem:[#allocation0]]
  $region65: #{bigram_forward.1} parent=0
    _
  %s11 = ssub.s32 1, %s9
  %s12 = scalar_select 0, %s11, %s9
  $region1: #{bigram_forward.1} parent=0
    #allocation2 [shape = 'u8[131072]{0}', space=vmem, size = 0x20000, scoped, tag = 'output window, operand 0']
    #allocation3 [shape = 's32[2]{0}', space=sflag, size = 0x8, scoped, tag = 'scoped memory for bigram_forward.1']
    %13 = vsyncpa [#allocation3], 0
    %s14 = scalar_lea.sflag [#allocation3], 1
    %15 = vsyncpa %s14, 0
    loop: start=0, step=1, limit=4
    $region2: #{bigram_forward.1} parent=1 // loop_pre_header
      _
    $region3: #{bigram_forward.1} parent=1 // loop_header
      %s17 = sphi 0, %s21
      %p18 = scmp.ge.s32.totalorder %s17, 4
      %s27 = sphi 0, %s29
      %s30 = sphi 0, %s27
      %s31 = sphi 0, %s30
      %s47 = sphi 0, %s31
      %s51 = sphi 0, %s51
      %s53 = sphi 0, %s51
      %s54 = sphi 0, %s53
      %s68 = sphi 0, %s54
      %s72 = sphi 0, %s72
      %s74 = sphi 0, %s72
      %s75 = sphi 0, %s74
      %s89 = sphi 0, %s75
      %s93 = sphi 0, %s93
      %s95 = sphi 0, %s93
      %s96 = sphi 0, %s95
      %s110 = sphi 0, %s96
      %s114 = sphi 0, %s114
      %s116 = sphi 0, %s114
      %s117 = sphi 0, %s116
      %s131 = sphi 0, %s117
      %s135 = sphi 0, %s135
      %s137 = sphi 0, %s135
      %s138 = sphi 0, %s137
      %s152 = sphi 0, %s138
      %s156 = sphi 0, %s156
      %s158 = sphi 0, %s156
      %s159 = sphi 0, %s158
      %s173 = sphi 0, %s159
      %s177 = sphi 0, %s177
      %s179 = sphi 0, %s177
      %s180 = sphi 0, %s179
      %s194 = sphi 0, %s180
      %s200 = sphi 0, %s202
      %s203 = sphi 0, %s200
      %s204 = sphi 0, %s203
      %s220 = sphi 0, %s204
    $region4: #{bigram_forward.1} parent=1 // loop_header_branch
      %20 = sbr.rel (%p18) target = $region8
    $region5: #{bigram_forward.1} parent=1 // loop_body
      %s22 = ssub.s32 %s17, 1
      %s23 = ssub.s32 %s17, 2
      %s24 = sadd.s32 %s17, 1
      %s25 = ssub.s32 %s17, %s24
      %p26 = scmp.eq.s32.totalorder %s25, 0
      %s28 = sadd.s32 %s27, 1
      %s29 = scalar_select %p26, %s27, %s28
      %p32 = pneg %p26
      %p33 = scmp.eq.s32.totalorder %s17, 1
      %p34 = por %p32, %p33
      %p35 = scmp.ne.s32.totalorder %s27, %s30
      %p36 = scmp.eq.s32.totalorder %s17, 0
      %p37 = por %p35, %p36
      %p38 = scmp.ne.s32.totalorder %s27, %s30
      %p39 = scmp.eq.s32.totalorder %s22, 1
      %p40 = por %p38, %p39
      %p41 = scmp.ne.s32.totalorder %s30, %s31
      %p42 = scmp.eq.s32.totalorder %s22, 0
      %p43 = por %p41, %p42
      %p44 = scmp.ne.s32.totalorder %s30, %s31
      %p45 = scmp.eq.s32.totalorder %s23, 1
      %p46 = por %p44, %p45
      %p48 = scmp.ne.s32.totalorder %s31, %s47
      %p49 = scmp.eq.s32.totalorder %s23, 0
      %p50 = por %p48, %p49
      %s52 = sadd.s32 %s51, 1
      %p55 = scmp.eq.s32.totalorder %s17, 1
      %p56 = scmp.ne.s32.totalorder %s51, %s53
      %p57 = scmp.eq.s32.totalorder %s17, 0
      %p58 = por %p56, %p57
      %p59 = scmp.ne.s32.totalorder %s51, %s53
      %p60 = scmp.eq.s32.totalorder %s22, 1
      %p61 = por %p59, %p60
      %p62 = scmp.ne.s32.totalorder %s53, %s54
      %p63 = scmp.eq.s32.totalorder %s22, 0
      %p64 = por %p62, %p63
      %p65 = scmp.ne.s32.totalorder %s53, %s54
      %p66 = scmp.eq.s32.totalorder %s23, 1
      %p67 = por %p65, %p66
      %p69 = scmp.ne.s32.totalorder %s54, %s68
      %p70 = scmp.eq.s32.totalorder %s23, 0
      %p71 = por %p69, %p70
      %s73 = sadd.s32 %s72, 1
      %p76 = scmp.eq.s32.totalorder %s17, 1
      %p77 = scmp.ne.s32.totalorder %s72, %s74
      %p78 = scmp.eq.s32.totalorder %s17, 0
      %p79 = por %p77, %p78
      %p80 = scmp.ne.s32.totalorder %s72, %s74
      %p81 = scmp.eq.s32.totalorder %s22, 1
      %p82 = por %p80, %p81
      %p83 = scmp.ne.s32.totalorder %s74, %s75
      %p84 = scmp.eq.s32.totalorder %s22, 0
      %p85 = por %p83, %p84
      %p86 = scmp.ne.s32.totalorder %s74, %s75
      %p87 = scmp.eq.s32.totalorder %s23, 1
      %p88 = por %p86, %p87
      %p90 = scmp.ne.s32.totalorder %s75, %s89
      %p91 = scmp.eq.s32.totalorder %s23, 0
      %p92 = por %p90, %p91
      %s94 = sadd.s32 %s93, 1
      %p97 = scmp.eq.s32.totalorder %s17, 1
      %p98 = scmp.ne.s32.totalorder %s93, %s95
      %p99 = scmp.eq.s32.totalorder %s17, 0
      %p100 = por %p98, %p99
      %p101 = scmp.ne.s32.totalorder %s93, %s95
      %p102 = scmp.eq.s32.totalorder %s22, 1
      %p103 = por %p101, %p102
      %p104 = scmp.ne.s32.totalorder %s95, %s96
      %p105 = scmp.eq.s32.totalorder %s22, 0
      %p106 = por %p104, %p105
      %p107 = scmp.ne.s32.totalorder %s95, %s96
      %p108 = scmp.eq.s32.totalorder %s23, 1
      %p109 = por %p107, %p108
      %p111 = scmp.ne.s32.totalorder %s96, %s110
      %p112 = scmp.eq.s32.totalorder %s23, 0
      %p113 = por %p111, %p112
      %s115 = sadd.s32 %s114, 1
      %p118 = scmp.eq.s32.totalorder %s17, 1
      %p119 = scmp.ne.s32.totalorder %s114, %s116
      %p120 = scmp.eq.s32.totalorder %s17, 0
      %p121 = por %p119, %p120
      %p122 = scmp.ne.s32.totalorder %s114, %s116
      %p123 = scmp.eq.s32.totalorder %s22, 1
      %p124 = por %p122, %p123
      %p125 = scmp.ne.s32.totalorder %s116, %s117
      %p126 = scmp.eq.s32.totalorder %s22, 0
      %p127 = por %p125, %p126
      %p128 = scmp.ne.s32.totalorder %s116, %s117
      %p129 = scmp.eq.s32.totalorder %s23, 1
      %p130 = por %p128, %p129
      %p132 = scmp.ne.s32.totalorder %s117, %s131
      %p133 = scmp.eq.s32.totalorder %s23, 0
      %p134 = por %p132, %p133
      %s136 = sadd.s32 %s135, 1
      %p139 = scmp.eq.s32.totalorder %s17, 1
      %p140 = scmp.ne.s32.totalorder %s135, %s137
      %p141 = scmp.eq.s32.totalorder %s17, 0
      %p142 = por %p140, %p141
      %p143 = scmp.ne.s32.totalorder %s135, %s137
      %p144 = scmp.eq.s32.totalorder %s22, 1
      %p145 = por %p143, %p144
      %p146 = scmp.ne.s32.totalorder %s137, %s138
      %p147 = scmp.eq.s32.totalorder %s22, 0
      %p148 = por %p146, %p147
      %p149 = scmp.ne.s32.totalorder %s137, %s138
      %p150 = scmp.eq.s32.totalorder %s23, 1
      %p151 = por %p149, %p150
      %p153 = scmp.ne.s32.totalorder %s138, %s152
      %p154 = scmp.eq.s32.totalorder %s23, 0
      %p155 = por %p153, %p154
      %s157 = sadd.s32 %s156, 1
      %p160 = scmp.eq.s32.totalorder %s17, 1
      %p161 = scmp.ne.s32.totalorder %s156, %s158
      %p162 = scmp.eq.s32.totalorder %s17, 0
      %p163 = por %p161, %p162
      %p164 = scmp.ne.s32.totalorder %s156, %s158
      %p165 = scmp.eq.s32.totalorder %s22, 1
      %p166 = por %p164, %p165
      %p167 = scmp.ne.s32.totalorder %s158, %s159
      %p168 = scmp.eq.s32.totalorder %s22, 0
      %p169 = por %p167, %p168
      %p170 = scmp.ne.s32.totalorder %s158, %s159
      %p171 = scmp.eq.s32.totalorder %s23, 1
      %p172 = por %p170, %p171
      %p174 = scmp.ne.s32.totalorder %s159, %s173
      %p175 = scmp.eq.s32.totalorder %s23, 0
      %p176 = por %p174, %p175
      %s178 = sadd.s32 %s177, 1
      %p181 = scmp.eq.s32.totalorder %s17, 1
      %p182 = scmp.ne.s32.totalorder %s177, %s179
      %p183 = scmp.eq.s32.totalorder %s17, 0
      %p184 = por %p182, %p183
      %p185 = scmp.ne.s32.totalorder %s177, %s179
      %p186 = scmp.eq.s32.totalorder %s22, 1
      %p187 = por %p185, %p186
      %p188 = scmp.ne.s32.totalorder %s179, %s180
      %p189 = scmp.eq.s32.totalorder %s22, 0
      %p190 = por %p188, %p189
      %p191 = scmp.ne.s32.totalorder %s179, %s180
      %p192 = scmp.eq.s32.totalorder %s23, 1
      %p193 = por %p191, %p192
      %p195 = scmp.ne.s32.totalorder %s180, %s194
      %p196 = scmp.eq.s32.totalorder %s23, 0
      %p197 = por %p195, %p196
      %s198 = ssub.s32 %s17, %s24
      %p199 = scmp.eq.s32.totalorder %s198, 0
      %s201 = sadd.s32 %s200, 1
      %s202 = scalar_select %p199, %s200, %s201
      %p205 = pneg %p199
      %p206 = scmp.eq.s32.totalorder %s17, 1
      %p207 = por %p205, %p206
      %p208 = scmp.ne.s32.totalorder %s200, %s203
      %p209 = scmp.eq.s32.totalorder %s17, 0
      %p210 = por %p208, %p209
      %p211 = scmp.ne.s32.totalorder %s200, %s203
      %p212 = scmp.eq.s32.totalorder %s22, 1
      %p213 = por %p211, %p212
      %p214 = scmp.ne.s32.totalorder %s203, %s204
      %p215 = scmp.eq.s32.totalorder %s22, 0
      %p216 = por %p214, %p215
      %p217 = scmp.ne.s32.totalorder %s203, %s204
      %p218 = scmp.eq.s32.totalorder %s23, 1
      %p219 = por %p217, %p218
      %p221 = scmp.ne.s32.totalorder %s204, %s220
      %p222 = scmp.eq.s32.totalorder %s23, 0
      %p223 = por %p221, %p222
      %p224 = scmp.le.s32.totalorder 1, %s17
      %p225 = scmp.lt.s32.totalorder %s17, 3
      %p226 = pnand %p224, %p225
      %p227 = pneg %p226
      // Predicated region
      $region9: #{bigram_forward.1} parent=5 // pred_check
        _
      $region10: #{bigram_forward.1} parent=5 // pred_check_branch
        %229 = sbr.rel (%p226) target = $region12
      $region11: #{bigram_forward.1} parent=5 // pred_region
        %s230 = ssub.s32 %s17, 1
        // Predicated region
        $region13: #{bigram_forward.1} parent=11 // pred_check
          %p231 = pneg %p64
        $region14: #{bigram_forward.1} parent=11 // pred_check_branch
          %233 = sbr.rel (%p231) target = $region16
        $region15: #{bigram_forward.1} parent=11 // pred_region
          _
        $region16: #{bigram_forward.1} parent=11 // pred_fallthru
          _
        // Predicated region
        $region17: #{bigram_forward.1} parent=11 // pred_check
          %p234 = pneg %p85
        $region18: #{bigram_forward.1} parent=11 // pred_check_branch
          %236 = sbr.rel (%p234) target = $region20
        $region19: #{bigram_forward.1} parent=11 // pred_region
          _
        $region20: #{bigram_forward.1} parent=11 // pred_fallthru
          _
        // Predicated region
        $region21: #{bigram_forward.1} parent=11 // pred_check
          %p237 = pneg %p106
        $region22: #{bigram_forward.1} parent=11 // pred_check_branch
          %239 = sbr.rel (%p237) target = $region24
        $region23: #{bigram_forward.1} parent=11 // pred_region
          _
        $region24: #{bigram_forward.1} parent=11 // pred_fallthru
          _
        // Predicated region
        $region25: #{bigram_forward.1} parent=11 // pred_check
          %p240 = pneg %p127
        $region26: #{bigram_forward.1} parent=11 // pred_check_branch
          %242 = sbr.rel (%p240) target = $region28
        $region27: #{bigram_forward.1} parent=11 // pred_region
          _
        $region28: #{bigram_forward.1} parent=11 // pred_fallthru
          _
        // Predicated region
        $region29: #{bigram_forward.1} parent=11 // pred_check
          %p243 = pneg %p148
        $region30: #{bigram_forward.1} parent=11 // pred_check_branch
          %245 = sbr.rel (%p243) target = $region32
        $region31: #{bigram_forward.1} parent=11 // pred_region
          _
        $region32: #{bigram_forward.1} parent=11 // pred_fallthru
          _
        // Predicated region
        $region33: #{bigram_forward.1} parent=11 // pred_check
          %p246 = pneg %p169
        $region34: #{bigram_forward.1} parent=11 // pred_check_branch
          %248 = sbr.rel (%p246) target = $region36
        $region35: #{bigram_forward.1} parent=11 // pred_region
          _
        $region36: #{bigram_forward.1} parent=11 // pred_fallthru
          _
        // Predicated region
        $region37: #{bigram_forward.1} parent=11 // pred_check
          %p249 = pneg %p190
        $region38: #{bigram_forward.1} parent=11 // pred_check_branch
          %251 = sbr.rel (%p249) target = $region40
        $region39: #{bigram_forward.1} parent=11 // pred_region
          _
        $region40: #{bigram_forward.1} parent=11 // pred_fallthru
          _
      $region12: #{bigram_forward.1} parent=5 // pred_fallthru
        _
      %p252 = scmp.lt.s32.totalorder %s17, 2
      // Predicated region
      $region41: #{bigram_forward.1} parent=5 // pred_check
        %p253 = pneg %p252
      $region42: #{bigram_forward.1} parent=5 // pred_check_branch
        %255 = sbr.rel (%p253) target = $region44
      $region43: #{bigram_forward.1} parent=5 // pred_region
        // Predicated region
        $region45: #{bigram_forward.1} parent=43 // pred_check
          %p256 = pneg %p37
        $region46: #{bigram_forward.1} parent=43 // pred_check_branch
          %258 = sbr.rel (%p256) target = $region48
        $region47: #{bigram_forward.1} parent=43 // pred_region
          %s259 = smul.u32 16, %s17
          %p260 = scmp.lt.s32.totalorder %s259, 31
          %s261 = scalar_select %p260, %s259, 31
          %s262 = smul.addr %s261, 8
          %s263 = scalar_lea.vmem %s0, %s262
          %s264 = smul.u32 16, %s17
        $region48: #{bigram_forward.1} parent=43 // pred_fallthru
          _
      $region44: #{bigram_forward.1} parent=5 // pred_fallthru
        _
      %p265 = scmp.le.s32.totalorder 1, %s17
      %p266 = scmp.lt.s32.totalorder %s17, 3
      %p267 = pnand %p265, %p266
      %p268 = pneg %p267
      // Predicated region
      $region49: #{bigram_forward.1} parent=5 // pred_check
        _
      $region50: #{bigram_forward.1} parent=5 // pred_check_branch
        %270 = sbr.rel (%p267) target = $region52
      $region51: #{bigram_forward.1} parent=5 // pred_region
        %s271 = ssub.s32 %s17, 1
        %s272 = smul.u32 16, %s22
        %p273 = scmp.lt.s32.totalorder %s272, 31
        %s274 = scalar_select %p273, %s272, 31
        %s275 = smul.addr %s274, 8
        %s276 = scalar_lea.vmem %s0, %s275
        %p277 = pneg %p43
        %p278 = pneg %p40
        %p279 = pneg %p64
        %p280 = pneg %p61
        %p281 = pneg %p85
        %p282 = pneg %p82
        %p283 = pneg %p106
        %p284 = pneg %p103
        %p285 = pneg %p127
        %p286 = pneg %p124
        %p287 = pneg %p148
        %p288 = pneg %p145
        %p289 = pneg %p169
        %p290 = pneg %p166
        %p291 = pneg %p190
        %p292 = pneg %p187
        %p293 = pneg %p216
        %p294 = pneg %p213
        %s295 = sand.u32 %s203, 1
        %s296 = scalar_lea.sflag [#allocation3], %s295
        %s297 = sand.u32 %s203, 1
        %s298 = smul.addr %s297, 128
        %s299 = scalar_lea.vmem [#allocation2], %s298
        %s300 = smul.u32 16, %s22
        %p301 = scmp.lt.s32.totalorder %s300, 31
        %s302 = scalar_select %p301, %s300, 31
        %s303 = smul.addr %s302, 8
        %s304 = scalar_lea.vmem %s0, %s303
        %s305 = smul.u32 16, %s22
        %s306 = smul.u32 16, %s22
        %v307 = vld [vmem:[%s304] sm:$0xff]
        %v308 = vld [vmem:[%s304 + $0x8] sm:$0xff]
        %v309 = vld [vmem:[%s304 + $0x10] sm:$0xff]
        %v310 = vld [vmem:[%s304 + $0x18] sm:$0xff]
        %v311 = vld [vmem:[%s304 + $0x20] sm:$0xff]
        %v312 = vld [vmem:[%s304 + $0x28] sm:$0xff]
        %v313 = vld [vmem:[%s304 + $0x30] sm:$0xff]
        %v314 = vld [vmem:[%s304 + $0x38] sm:$0xff]
        %v315 = vld [vmem:[%s304 + $0x40] sm:$0xff]
        %v316 = vld [vmem:[%s304 + $0x48] sm:$0xff]
        %v317 = vld [vmem:[%s304 + $0x50] sm:$0xff]
        %v318 = vld [vmem:[%s304 + $0x58] sm:$0xff]
        %v319 = vld [vmem:[%s304 + $0x60] sm:$0xff]
        %v320 = vld [vmem:[%s304 + $0x68] sm:$0xff]
        %v321 = vld [vmem:[%s304 + $0x70] sm:$0xff]
        %v322 = vld [vmem:[%s304 + $0x78] sm:$0xff]
        %v323 = vlaneseq
        %v324 = vand.u32 %v323, 127
        %325 = vset.pattern.permute.xlu0 0
        %326 = vperm.xlu0 %325, %v307
        %v327 = vpop.permute.xlu0 %326
        %328 = vset.pattern.permute.xlu0 0
        %329 = vperm.xlu0 %328, %v308
        %v330 = vpop.permute.xlu0 %329
        %331 = vset.pattern.permute.xlu0 0
        %332 = vperm.xlu0 %331, %v309
        %v333 = vpop.permute.xlu0 %332
        %334 = vset.pattern.permute.xlu0 0
        %335 = vperm.xlu0 %334, %v310
        %v336 = vpop.permute.xlu0 %335
        %337 = vset.pattern.permute.xlu0 0
        %338 = vperm.xlu0 %337, %v311
        %v339 = vpop.permute.xlu0 %338
        %340 = vset.pattern.permute.xlu0 0
        %341 = vperm.xlu0 %340, %v312
        %v342 = vpop.permute.xlu0 %341
        %343 = vset.pattern.permute.xlu0 0
        %344 = vperm.xlu0 %343, %v313
        %v345 = vpop.permute.xlu0 %344
        %346 = vset.pattern.permute.xlu0 0
        %347 = vperm.xlu0 %346, %v314
        %v348 = vpop.permute.xlu0 %347
        %349 = vset.pattern.permute.xlu0 0
        %350 = vperm.xlu0 %349, %v315
        %v351 = vpop.permute.xlu0 %350
        %352 = vset.pattern.permute.xlu0 0
        %353 = vperm.xlu0 %352, %v316
        %v354 = vpop.permute.xlu0 %353
        %355 = vset.pattern.permute.xlu0 0
        %356 = vperm.xlu0 %355, %v317
        %v357 = vpop.permute.xlu0 %356
        %358 = vset.pattern.permute.xlu0 0
        %359 = vperm.xlu0 %358, %v318
        %v360 = vpop.permute.xlu0 %359
        %361 = vset.pattern.permute.xlu0 0
        %362 = vperm.xlu0 %361, %v319
        %v363 = vpop.permute.xlu0 %362
        %364 = vset.pattern.permute.xlu0 0
        %365 = vperm.xlu0 %364, %v320
        %v366 = vpop.permute.xlu0 %365
        %367 = vset.pattern.permute.xlu0 0
        %368 = vperm.xlu0 %367, %v321
        %v369 = vpop.permute.xlu0 %368
        %370 = vset.pattern.permute.xlu0 0
        %371 = vperm.xlu0 %370, %v322
        %v372 = vpop.permute.xlu0 %371
        %vm373 = vcmp.eq.s32.totalorder %v324, %v327
        %vm374 = vcmp.eq.s32.totalorder %v324, %v330
        %vm375 = vcmp.eq.s32.totalorder %v324, %v333
        %vm376 = vcmp.eq.s32.totalorder %v324, %v336
        %vm377 = vcmp.eq.s32.totalorder %v324, %v339
        %vm378 = vcmp.eq.s32.totalorder %v324, %v342
        %vm379 = vcmp.eq.s32.totalorder %v324, %v345
        %vm380 = vcmp.eq.s32.totalorder %v324, %v348
        %vm381 = vcmp.eq.s32.totalorder %v324, %v351
        %vm382 = vcmp.eq.s32.totalorder %v324, %v354
        %vm383 = vcmp.eq.s32.totalorder %v324, %v357
        %vm384 = vcmp.eq.s32.totalorder %v324, %v360
        %vm385 = vcmp.eq.s32.totalorder %v324, %v363
        %vm386 = vcmp.eq.s32.totalorder %v324, %v366
        %vm387 = vcmp.eq.s32.totalorder %v324, %v369
        %vm388 = vcmp.eq.s32.totalorder %v324, %v372
        %v389 = vsel %vm373, 1, 0
        %v390 = vsel %vm374, 1, 0
        %v391 = vsel %vm375, 1, 0
        %v392 = vsel %vm376, 1, 0
        %v393 = vsel %vm377, 1, 0
        %v394 = vsel %vm378, 1, 0
        %v395 = vsel %vm379, 1, 0
        %v396 = vsel %vm380, 1, 0
        %v397 = vsel %vm381, 1, 0
        %v398 = vsel %vm382, 1, 0
        %v399 = vsel %vm383, 1, 0
        %v400 = vsel %vm384, 1, 0
        %v401 = vsel %vm385, 1, 0
        %v402 = vsel %vm386, 1, 0
        %v403 = vsel %vm387, 1, 0
        %v404 = vsel %vm388, 1, 0
        %v405 = vcvt.s32.f32 %v389
        %v406 = vcvt.s32.f32 %v390
        %v407 = vcvt.s32.f32 %v391
        %v408 = vcvt.s32.f32 %v392
        %v409 = vcvt.s32.f32 %v393
        %v410 = vcvt.s32.f32 %v394
        %v411 = vcvt.s32.f32 %v395
        %v412 = vcvt.s32.f32 %v396
        %v413 = vcvt.s32.f32 %v397
        %v414 = vcvt.s32.f32 %v398
        %v415 = vcvt.s32.f32 %v399
        %v416 = vcvt.s32.f32 %v400
        %v417 = vcvt.s32.f32 %v401
        %v418 = vcvt.s32.f32 %v402
        %v419 = vcvt.s32.f32 %v403
        %v420 = vcvt.s32.f32 %v404
        %v421 = vld [vmem:[%s1] sm:$0xff]
        %v422 = vld [vmem:[%s1 + $0x8] sm:$0xff]
        %v423 = vld [vmem:[%s1 + $0x10] sm:$0xff]
        %v424 = vld [vmem:[%s1 + $0x18] sm:$0xff]
        %v425 = vld [vmem:[%s1 + $0x20] sm:$0xff]
        %v426 = vld [vmem:[%s1 + $0x28] sm:$0xff]
        %v427 = vld [vmem:[%s1 + $0x30] sm:$0xff]
        %v428 = vld [vmem:[%s1 + $0x38] sm:$0xff]
        %v429 = vld [vmem:[%s1 + $0x40] sm:$0xff]
        %v430 = vld [vmem:[%s1 + $0x48] sm:$0xff]
        %v431 = vld [vmem:[%s1 + $0x50] sm:$0xff]
        %v432 = vld [vmem:[%s1 + $0x58] sm:$0xff]
        %v433 = vld [vmem:[%s1 + $0x60] sm:$0xff]
        %v434 = vld [vmem:[%s1 + $0x68] sm:$0xff]
        %v435 = vld [vmem:[%s1 + $0x70] sm:$0xff]
        %v436 = vld [vmem:[%s1 + $0x78] sm:$0xff]
        %v437 = vld [vmem:[%s2] sm:$0xff]
        %v438 = vld [vmem:[%s2 + $0x8] sm:$0xff]
        %v439 = vld [vmem:[%s2 + $0x10] sm:$0xff]
        %v440 = vld [vmem:[%s2 + $0x18] sm:$0xff]
        %v441 = vld [vmem:[%s2 + $0x20] sm:$0xff]
        %v442 = vld [vmem:[%s2 + $0x28] sm:$0xff]
        %v443 = vld [vmem:[%s2 + $0x30] sm:$0xff]
        %v444 = vld [vmem:[%s2 + $0x38] sm:$0xff]
        %v445 = vld [vmem:[%s2 + $0x40] sm:$0xff]
        %v446 = vld [vmem:[%s2 + $0x48] sm:$0xff]
        %v447 = vld [vmem:[%s2 + $0x50] sm:$0xff]
        %v448 = vld [vmem:[%s2 + $0x58] sm:$0xff]
        %v449 = vld [vmem:[%s2 + $0x60] sm:$0xff]
        %v450 = vld [vmem:[%s2 + $0x68] sm:$0xff]
        %v451 = vld [vmem:[%s2 + $0x70] sm:$0xff]
        %v452 = vld [vmem:[%s2 + $0x78] sm:$0xff]
        %453 = vmatprep.subr.mxu0 0.0
        %454 = vmatpush1.msra.mxu0 %v421
        %455 = vmatprep.subr.mxu0 0.0
        %456 = vmatpush1.msra.mxu0 %v422
        %457 = vmatprep.subr.mxu0 0.0
        %458 = vmatpush1.msra.mxu0 %v423
        %459 = vmatprep.subr.mxu0 0.0
        %460 = vmatpush1.msra.mxu0 %v424
        %461 = vmatprep.subr.mxu0 0.0
        %462 = vmatpush1.msra.mxu0 %v425
        %463 = vmatprep.subr.mxu0 0.0
        %464 = vmatpush1.msra.mxu0 %v426
        %465 = vmatprep.subr.mxu0 0.0
        %466 = vmatpush1.msra.mxu0 %v427
        %467 = vmatprep.subr.mxu0 0.0
        %468 = vmatpush1.msra.mxu0 %v428
        %469 = vmatprep.subr.mxu0 0.0
        %470 = vmatpush1.msra.mxu0 %v429
        %471 = vmatprep.subr.mxu0 0.0
        %472 = vmatpush1.msra.mxu0 %v430
        %473 = vmatprep.subr.mxu0 0.0
        %474 = vmatpush1.msra.mxu0 %v431
        %475 = vmatprep.subr.mxu0 0.0
        %476 = vmatpush1.msra.mxu0 %v432
        %477 = vmatprep.subr.mxu0 0.0
        %478 = vmatpush1.msra.mxu0 %v433
        %479 = vmatprep.subr.mxu0 0.0
        %480 = vmatpush1.msra.mxu0 %v434
        %481 = vmatprep.subr.mxu0 0.0
        %482 = vmatpush1.msra.mxu0 %v435
        %483 = vmatprep.subr.mxu0 0.0
        %484 = vmatpush1.msra.mxu0 %v436
        %485 = vmatprep.subr.mxu0 0.0
        %486 = vmatpush1.msra.mxu0 0.0
        %487 = vmatprep.subr.mxu0 0.0
        %488 = vmatpush1.msra.mxu0 0.0
        %489 = vmatprep.subr.mxu0 0.0
        %490 = vmatpush1.msra.mxu0 0.0
        %491 = vmatprep.subr.mxu0 0.0
        %492 = vmatpush1.msra.mxu0 0.0
        %493 = vmatprep.subr.mxu0 0.0
        %494 = vmatpush1.msra.mxu0 0.0
        %495 = vmatprep.subr.mxu0 0.0
        %496 = vmatpush1.msra.mxu0 0.0
        %497 = vmatprep.subr.mxu0 0.0
        %498 = vmatpush1.msra.mxu0 0.0
        %499 = vmatprep.subr.mxu0 0.0
        %500 = vmatpush1.msra.mxu0 0.0
        %501 = vmatprep.subr.mxu0 0.0
        %502 = vmatpush1.msra.mxu0 0.0
        %503 = vmatprep.subr.mxu0 0.0
        %504 = vmatpush1.msra.mxu0 0.0
        %505 = vmatprep.subr.mxu0 0.0
        %506 = vmatpush1.msra.mxu0 0.0
        %507 = vmatprep.subr.mxu0 0.0
        %508 = vmatpush1.msra.mxu0 0.0
        %509 = vmatprep.subr.mxu0 0.0
        %510 = vmatpush1.msra.mxu0 0.0
        %511 = vmatprep.subr.mxu0 0.0
        %512 = vmatpush1.msra.mxu0 0.0
        %513 = vmatprep.subr.mxu0 0.0
        %514 = vmatpush1.msra.mxu0 0.0
        %515 = vmatprep.subr.mxu0 0.0
        %516 = vmatpush1.msra.mxu0 0.0
        %517 = vmatprep.mubr.f32.mxu0 0.0
        %518 = vmatmul.mubr.f32.gmra.mrb[0].mxu0 %v405
        %v519 = vpop.f32.mrb[0].mxu0
        %v520 = vadd.f32 %v437, %v519
        %v521 = vpop.f32.mrb[0].mxu0
        %522 = vmatprep.mubr.f32.mxu0 0.0
        %523 = vmatmul.mubr.f32.gmra.mrb[0].mxu0 %v406
        %v524 = vpop.f32.mrb[0].mxu0
        %v525 = vadd.f32 %v438, %v524
        %v526 = vpop.f32.mrb[0].mxu0
        %527 = vmatprep.mubr.f32.mxu0 0.0
        %528 = vmatmul.mubr.f32.gmra.mrb[0].mxu0 %v407
        %v529 = vpop.f32.mrb[0].mxu0
        %v530 = vadd.f32 %v439, %v529
        %v531 = vpop.f32.mrb[0].mxu0
        %532 = vmatprep.mubr.f32.mxu0 0.0
        %533 = vmatmul.mubr.f32.gmra.mrb[0].mxu0 %v408
        %v534 = vpop.f32.mrb[0].mxu0
        %v535 = vadd.f32 %v440, %v534
        %v536 = vpop.f32.mrb[0].mxu0
        %537 = vmatprep.mubr.f32.mxu0 0.0
        %538 = vmatmul.mubr.f32.gmra.mrb[0].mxu0 %v409
        %v539 = vpop.f32.mrb[0].mxu0
        %v540 = vadd.f32 %v441, %v539
        %v541 = vpop.f32.mrb[0].mxu0
        %542 = vmatprep.mubr.f32.mxu0 0.0
        %543 = vmatmul.mubr.f32.gmra.mrb[0].mxu0 %v410
        %v544 = vpop.f32.mrb[0].mxu0
        %v545 = vadd.f32 %v442, %v544
        %v546 = vpop.f32.mrb[0].mxu0
        %547 = vmatprep.mubr.f32.mxu0 0.0
        %548 = vmatmul.mubr.f32.gmra.mrb[0].mxu0 %v411
        %v549 = vpop.f32.mrb[0].mxu0
        %v550 = vadd.f32 %v443, %v549
        %v551 = vpop.f32.mrb[0].mxu0
        %552 = vmatprep.mubr.f32.mxu0 0.0
        %553 = vmatmul.mubr.f32.gmra.mrb[0].mxu0 %v412
        %v554 = vpop.f32.mrb[0].mxu0
        %v555 = vadd.f32 %v444, %v554
        %v556 = vpop.f32.mrb[0].mxu0
        %557 = vmatprep.mubr.f32.mxu0 0.0
        %558 = vmatmul.mubr.f32.gmra.mrb[0].mxu0 %v413
        %v559 = vpop.f32.mrb[0].mxu0
        %v560 = vadd.f32 %v445, %v559
        %v561 = vpop.f32.mrb[0].mxu0
        %562 = vmatprep.mubr.f32.mxu0 0.0
        %563 = vmatmul.mubr.f32.gmra.mrb[0].mxu0 %v414
        %v564 = vpop.f32.mrb[0].mxu0
        %v565 = vadd.f32 %v446, %v564
        %v566 = vpop.f32.mrb[0].mxu0
        %567 = vmatprep.mubr.f32.mxu0 0.0
        %568 = vmatmul.mubr.f32.gmra.mrb[0].mxu0 %v415
        %v569 = vpop.f32.mrb[0].mxu0
        %v570 = vadd.f32 %v447, %v569
        %v571 = vpop.f32.mrb[0].mxu0
        %572 = vmatprep.mubr.f32.mxu0 0.0
        %573 = vmatmul.mubr.f32.gmra.mrb[0].mxu0 %v416
        %v574 = vpop.f32.mrb[0].mxu0
        %v575 = vadd.f32 %v448, %v574
        %v576 = vpop.f32.mrb[0].mxu0
        %577 = vmatprep.mubr.f32.mxu0 0.0
        %578 = vmatmul.mubr.f32.gmra.mrb[0].mxu0 %v417
        %v579 = vpop.f32.mrb[0].mxu0
        %v580 = vadd.f32 %v449, %v579
        %v581 = vpop.f32.mrb[0].mxu0
        %582 = vmatprep.mubr.f32.mxu0 0.0
        %583 = vmatmul.mubr.f32.gmra.mrb[0].mxu0 %v418
        %v584 = vpop.f32.mrb[0].mxu0
        %v585 = vadd.f32 %v450, %v584
        %v586 = vpop.f32.mrb[0].mxu0
        %587 = vmatprep.mubr.f32.mxu0 0.0
        %588 = vmatmul.mubr.f32.gmra.mrb[0].mxu0 %v419
        %v589 = vpop.f32.mrb[0].mxu0
        %v590 = vadd.f32 %v451, %v589
        %v591 = vpop.f32.mrb[0].mxu0
        %592 = vmatprep.mubr.f32.mxu0 0.0
        %593 = vmatmul.mubr.f32.gmra.mrb[0].mxu0 %v420
        %v594 = vpop.f32.mrb[0].mxu0
        %v595 = vadd.f32 %v452, %v594
        %v596 = vpop.f32.mrb[0].mxu0
        %597 = vdwg.mxu0
        %v598 = vld [vmem:[%s3] sm:$0xff]
        %v599 = vld [vmem:[%s3 + $0x8] sm:$0xff]
        %v600 = vld [vmem:[%s3 + $0x10] sm:$0xff]
        %v601 = vld [vmem:[%s3 + $0x18] sm:$0xff]
        %vm602 = vcmask 261120
        %v604 = vsel %vm602, %v520, 0
        %v607 = vsel %vm602, %v525, 0
        %v610 = vsel %vm602, %v530, 0
        %v613 = vsel %vm602, %v535, 0
        %v616 = vsel %vm602, %v540, 0
        %v619 = vsel %vm602, %v545, 0
        %v622 = vsel %vm602, %v550, 0
        %v625 = vsel %vm602, %v555, 0
        %v628 = vsel %vm602, %v560, 0
        %v631 = vsel %vm602, %v565, 0
        %v634 = vsel %vm602, %v570, 0
        %v637 = vsel %vm602, %v575, 0
        %v640 = vsel %vm602, %v580, 0
        %v643 = vsel %vm602, %v585, 0
        %v646 = vsel %vm602, %v590, 0
        %v649 = vsel %vm602, %v595, 0
        %651 = vmatprep.subr.mxu0 0.0
        %652 = vmatpush1.msra.mxu0 %v598
        %653 = vmatprep.subr.mxu0 0.0
        %654 = vmatpush1.msra.mxu0 %v599
        %655 = vmatprep.subr.mxu0 0.0
        %656 = vmatpush1.msra.mxu0 %v600
        %657 = vmatprep.subr.mxu0 0.0
        %658 = vmatpush1.msra.mxu0 %v601
        %659 = vmatprep.subr.mxu0 0.0
        %660 = vmatpush1.msra.mxu0 0.0
        %661 = vmatprep.subr.mxu0 0.0
        %662 = vmatpush1.msra.mxu0 0.0
        %663 = vmatprep.subr.mxu0 0.0
        %664 = vmatpush1.msra.mxu0 0.0
        %665 = vmatprep.subr.mxu0 0.0
        %666 = vmatpush1.msra.mxu0 0.0
        %667 = vmatprep.subr.mxu0 0.0
        %668 = vmatpush1.msra.mxu0 0.0
        %669 = vmatprep.subr.mxu0 0.0
        %670 = vmatpush1.msra.mxu0 0.0
        %671 = vmatprep.subr.mxu0 0.0
        %672 = vmatpush1.msra.mxu0 0.0
        %673 = vmatprep.subr.mxu0 0.0
        %674 = vmatpush1.msra.mxu0 0.0
        %675 = vmatprep.subr.mxu0 0.0
        %676 = vmatpush1.msra.mxu0 0.0
        %677 = vmatprep.subr.mxu0 0.0
        %678 = vmatpush1.msra.mxu0 0.0
        %679 = vmatprep.subr.mxu0 0.0
        %680 = vmatpush1.msra.mxu0 0.0
        %681 = vmatprep.subr.mxu0 0.0
        %682 = vmatpush1.msra.mxu0 0.0
        %683 = vmatprep.subr.mxu0 0.0
        %684 = vmatpush1.msra.mxu0 0.0
        %685 = vmatprep.subr.mxu0 0.0
        %686 = vmatpush1.msra.mxu0 0.0
        %687 = vmatprep.subr.mxu0 0.0
        %688 = vmatpush1.msra.mxu0 0.0
        %689 = vmatprep.subr.mxu0 0.0
        %690 = vmatpush1.msra.mxu0 0.0
        %691 = vmatprep.subr.mxu0 0.0
        %692 = vmatpush1.msra.mxu0 0.0
        %693 = vmatprep.subr.mxu0 0.0
        %694 = vmatpush1.msra.mxu0 0.0
        %695 = vmatprep.subr.mxu0 0.0
        %696 = vmatpush1.msra.mxu0 0.0
        %697 = vmatprep.subr.mxu0 0.0
        %698 = vmatpush1.msra.mxu0 0.0
        %699 = vmatprep.subr.mxu0 0.0
        %700 = vmatpush1.msra.mxu0 0.0
        %701 = vmatprep.subr.mxu0 0.0
        %702 = vmatpush1.msra.mxu0 0.0
        %703 = vmatprep.subr.mxu0 0.0
        %704 = vmatpush1.msra.mxu0 0.0
        %705 = vmatprep.subr.mxu0 0.0
        %706 = vmatpush1.msra.mxu0 0.0
        %707 = vmatprep.subr.mxu0 0.0
        %708 = vmatpush1.msra.mxu0 0.0
        %709 = vmatprep.subr.mxu0 0.0
        %710 = vmatpush1.msra.mxu0 0.0
        %711 = vmatprep.subr.mxu0 0.0
        %712 = vmatpush1.msra.mxu0 0.0
        %713 = vmatprep.subr.mxu0 0.0
        %714 = vmatpush1.msra.mxu0 0.0
        %715 = vmatprep.mubr.f32.mxu0 0.0
        %716 = vmatmul.mubr.f32.gmra.mrb[0].mxu0 %v604
        %v717 = vpop.f32.mrb[0].mxu0
        %v718 = vadd.f32 0.0, %v717
        %v719 = vpop.f32.mrb[0].mxu0
        %720 = vmatprep.mubr.f32.mxu0 0.0
        %721 = vmatmul.mubr.f32.gmra.mrb[0].mxu0 %v607
        %v722 = vpop.f32.mrb[0].mxu0
        %v723 = vadd.f32 0.0, %v722
        %v724 = vpop.f32.mrb[0].mxu0
        %725 = vmatprep.mubr.f32.mxu0 0.0
        %726 = vmatmul.mubr.f32.gmra.mrb[0].mxu0 %v610
        %v727 = vpop.f32.mrb[0].mxu0
        %v728 = vadd.f32 0.0, %v727
        %v729 = vpop.f32.mrb[0].mxu0
        %730 = vmatprep.mubr.f32.mxu0 0.0
        %731 = vmatmul.mubr.f32.gmra.mrb[0].mxu0 %v613
        %v732 = vpop.f32.mrb[0].mxu0
        %v733 = vadd.f32 0.0, %v732
        %v734 = vpop.f32.mrb[0].mxu0
        %735 = vmatprep.mubr.f32.mxu0 0.0
        %736 = vmatmul.mubr.f32.gmra.mrb[0].mxu0 %v616
        %v737 = vpop.f32.mrb[0].mxu0
        %v738 = vadd.f32 0.0, %v737
        %v739 = vpop.f32.mrb[0].mxu0
        %740 = vmatprep.mubr.f32.mxu0 0.0
        %741 = vmatmul.mubr.f32.gmra.mrb[0].mxu0 %v619
        %v742 = vpop.f32.mrb[0].mxu0
        %v743 = vadd.f32 0.0, %v742
        %v744 = vpop.f32.mrb[0].mxu0
        %745 = vmatprep.mubr.f32.mxu0 0.0
        %746 = vmatmul.mubr.f32.gmra.mrb[0].mxu0 %v622
        %v747 = vpop.f32.mrb[0].mxu0
        %v748 = vadd.f32 0.0, %v747
        %v749 = vpop.f32.mrb[0].mxu0
        %750 = vmatprep.mubr.f32.mxu0 0.0
        %751 = vmatmul.mubr.f32.gmra.mrb[0].mxu0 %v625
        %v752 = vpop.f32.mrb[0].mxu0
        %v753 = vadd.f32 0.0, %v752
        %v754 = vpop.f32.mrb[0].mxu0
        %755 = vmatprep.mubr.f32.mxu0 0.0
        %756 = vmatmul.mubr.f32.gmra.mrb[0].mxu0 %v628
        %v757 = vpop.f32.mrb[0].mxu0
        %v758 = vadd.f32 0.0, %v757
        %v759 = vpop.f32.mrb[0].mxu0
        %760 = vmatprep.mubr.f32.mxu0 0.0
        %761 = vmatmul.mubr.f32.gmra.mrb[0].mxu0 %v631
        %v762 = vpop.f32.mrb[0].mxu0
        %v763 = vadd.f32 0.0, %v762
        %v764 = vpop.f32.mrb[0].mxu0
        %765 = vmatprep.mubr.f32.mxu0 0.0
        %766 = vmatmul.mubr.f32.gmra.mrb[0].mxu0 %v634
        %v767 = vpop.f32.mrb[0].mxu0
        %v768 = vadd.f32 0.0, %v767
        %v769 = vpop.f32.mrb[0].mxu0
        %770 = vmatprep.mubr.f32.mxu0 0.0
        %771 = vmatmul.mubr.f32.gmra.mrb[0].mxu0 %v637
        %v772 = vpop.f32.mrb[0].mxu0
        %v773 = vadd.f32 0.0, %v772
        %v774 = vpop.f32.mrb[0].mxu0
        %775 = vmatprep.mubr.f32.mxu0 0.0
        %776 = vmatmul.mubr.f32.gmra.mrb[0].mxu0 %v640
        %v777 = vpop.f32.mrb[0].mxu0
        %v778 = vadd.f32 0.0, %v777
        %v779 = vpop.f32.mrb[0].mxu0
        %780 = vmatprep.mubr.f32.mxu0 0.0
        %781 = vmatmul.mubr.f32.gmra.mrb[0].mxu0 %v643
        %v782 = vpop.f32.mrb[0].mxu0
        %v783 = vadd.f32 0.0, %v782
        %v784 = vpop.f32.mrb[0].mxu0
        %785 = vmatprep.mubr.f32.mxu0 0.0
        %786 = vmatmul.mubr.f32.gmra.mrb[0].mxu0 %v646
        %v787 = vpop.f32.mrb[0].mxu0
        %v788 = vadd.f32 0.0, %v787
        %v789 = vpop.f32.mrb[0].mxu0
        %790 = vmatprep.mubr.f32.mxu0 0.0
        %791 = vmatmul.mubr.f32.gmra.mrb[0].mxu0 %v649
        %v792 = vpop.f32.mrb[0].mxu0
        %v793 = vadd.f32 0.0, %v792
        %v794 = vpop.f32.mrb[0].mxu0
        %795 = vdwg.mxu0
        %v796 = vld [vmem:[%s4] sm:$0xff]
        %v797 = vld [vmem:[%s4 + $0x8] sm:$0xff]
        %v798 = vld [vmem:[%s4 + $0x10] sm:$0xff]
        %v799 = vld [vmem:[%s4 + $0x18] sm:$0xff]
        %800 = vmatprep.subr.mxu0 0.0
        %801 = vmatpush1.msra.mxu0 %v796
        %802 = vmatprep.subr.mxu0 0.0
        %803 = vmatpush1.msra.mxu0 %v797
        %804 = vmatprep.subr.mxu0 0.0
        %805 = vmatpush1.msra.mxu0 %v798
        %806 = vmatprep.subr.mxu0 0.0
        %807 = vmatpush1.msra.mxu0 %v799
        %808 = vmatprep.subr.mxu0 0.0
        %809 = vmatpush1.msra.mxu0 0.0
        %810 = vmatprep.subr.mxu0 0.0
        %811 = vmatpush1.msra.mxu0 0.0
        %812 = vmatprep.subr.mxu0 0.0
        %813 = vmatpush1.msra.mxu0 0.0
        %814 = vmatprep.subr.mxu0 0.0
        %815 = vmatpush1.msra.mxu0 0.0
        %816 = vmatprep.subr.mxu0 0.0
        %817 = vmatpush1.msra.mxu0 0.0
        %818 = vmatprep.subr.mxu0 0.0
        %819 = vmatpush1.msra.mxu0 0.0
        %820 = vmatprep.subr.mxu0 0.0
        %821 = vmatpush1.msra.mxu0 0.0
        %822 = vmatprep.subr.mxu0 0.0
        %823 = vmatpush1.msra.mxu0 0.0
        %824 = vmatprep.subr.mxu0 0.0
        %825 = vmatpush1.msra.mxu0 0.0
        %826 = vmatprep.subr.mxu0 0.0
        %827 = vmatpush1.msra.mxu0 0.0
        %828 = vmatprep.subr.mxu0 0.0
        %829 = vmatpush1.msra.mxu0 0.0
        %830 = vmatprep.subr.mxu0 0.0
        %831 = vmatpush1.msra.mxu0 0.0
        %832 = vmatprep.subr.mxu0 0.0
        %833 = vmatpush1.msra.mxu0 0.0
        %834 = vmatprep.subr.mxu0 0.0
        %835 = vmatpush1.msra.mxu0 0.0
        %836 = vmatprep.subr.mxu0 0.0
        %837 = vmatpush1.msra.mxu0 0.0
        %838 = vmatprep.subr.mxu0 0.0
        %839 = vmatpush1.msra.mxu0 0.0
        %840 = vmatprep.subr.mxu0 0.0
        %841 = vmatpush1.msra.mxu0 0.0
        %842 = vmatprep.subr.mxu0 0.0
        %843 = vmatpush1.msra.mxu0 0.0
        %844 = vmatprep.subr.mxu0 0.0
        %845 = vmatpush1.msra.mxu0 0.0
        %846 = vmatprep.subr.mxu0 0.0
        %847 = vmatpush1.msra.mxu0 0.0
        %848 = vmatprep.subr.mxu0 0.0
        %849 = vmatpush1.msra.mxu0 0.0
        %850 = vmatprep.subr.mxu0 0.0
        %851 = vmatpush1.msra.mxu0 0.0
        %852 = vmatprep.subr.mxu0 0.0
        %853 = vmatpush1.msra.mxu0 0.0
        %854 = vmatprep.subr.mxu0 0.0
        %855 = vmatpush1.msra.mxu0 0.0
        %856 = vmatprep.subr.mxu0 0.0
        %857 = vmatpush1.msra.mxu0 0.0
        %858 = vmatprep.subr.mxu0 0.0
        %859 = vmatpush1.msra.mxu0 0.0
        %860 = vmatprep.subr.mxu0 0.0
        %861 = vmatpush1.msra.mxu0 0.0
        %862 = vmatprep.subr.mxu0 0.0
        %863 = vmatpush1.msra.mxu0 0.0
        %864 = vmatprep.mubr.f32.mxu0 0.0
        %865 = vmatmul.mubr.f32.gmra.mrb[0].mxu0 %v604
        %v866 = vpop.f32.mrb[0].mxu0
        %v867 = vadd.f32 0.0, %v866
        %v868 = vpop.f32.mrb[0].mxu0
        %869 = vmatprep.mubr.f32.mxu0 0.0
        %870 = vmatmul.mubr.f32.gmra.mrb[0].mxu0 %v607
        %v871 = vpop.f32.mrb[0].mxu0
        %v872 = vadd.f32 0.0, %v871
        %v873 = vpop.f32.mrb[0].mxu0
        %874 = vmatprep.mubr.f32.mxu0 0.0
        %875 = vmatmul.mubr.f32.gmra.mrb[0].mxu0 %v610
        %v876 = vpop.f32.mrb[0].mxu0
        %v877 = vadd.f32 0.0, %v876
        %v878 = vpop.f32.mrb[0].mxu0
        %879 = vmatprep.mubr.f32.mxu0 0.0
        %880 = vmatmul.mubr.f32.gmra.mrb[0].mxu0 %v613
        %v881 = vpop.f32.mrb[0].mxu0
        %v882 = vadd.f32 0.0, %v881
        %v883 = vpop.f32.mrb[0].mxu0
        %884 = vmatprep.mubr.f32.mxu0 0.0
        %885 = vmatmul.mubr.f32.gmra.mrb[0].mxu0 %v616
        %v886 = vpop.f32.mrb[0].mxu0
        %v887 = vadd.f32 0.0, %v886
        %v888 = vpop.f32.mrb[0].mxu0
        %889 = vmatprep.mubr.f32.mxu0 0.0
        %890 = vmatmul.mubr.f32.gmra.mrb[0].mxu0 %v619
        %v891 = vpop.f32.mrb[0].mxu0
        %v892 = vadd.f32 0.0, %v891
        %v893 = vpop.f32.mrb[0].mxu0
        %894 = vmatprep.mubr.f32.mxu0 0.0
        %895 = vmatmul.mubr.f32.gmra.mrb[0].mxu0 %v622
        %v896 = vpop.f32.mrb[0].mxu0
        %v897 = vadd.f32 0.0, %v896
        %v898 = vpop.f32.mrb[0].mxu0
        %899 = vmatprep.mubr.f32.mxu0 0.0
        %900 = vmatmul.mubr.f32.gmra.mrb[0].mxu0 %v625
        %v901 = vpop.f32.mrb[0].mxu0
        %v902 = vadd.f32 0.0, %v901
        %v903 = vpop.f32.mrb[0].mxu0
        %904 = vmatprep.mubr.f32.mxu0 0.0
        %905 = vmatmul.mubr.f32.gmra.mrb[0].mxu0 %v628
        %v906 = vpop.f32.mrb[0].mxu0
        %v907 = vadd.f32 0.0, %v906
        %v908 = vpop.f32.mrb[0].mxu0
        %909 = vmatprep.mubr.f32.mxu0 0.0
        %910 = vmatmul.mubr.f32.gmra.mrb[0].mxu0 %v631
        %v911 = vpop.f32.mrb[0].mxu0
        %v912 = vadd.f32 0.0, %v911
        %v913 = vpop.f32.mrb[0].mxu0
        %914 = vmatprep.mubr.f32.mxu0 0.0
        %915 = vmatmul.mubr.f32.gmra.mrb[0].mxu0 %v634
        %v916 = vpop.f32.mrb[0].mxu0
        %v917 = vadd.f32 0.0, %v916
        %v918 = vpop.f32.mrb[0].mxu0
        %919 = vmatprep.mubr.f32.mxu0 0.0
        %920 = vmatmul.mubr.f32.gmra.mrb[0].mxu0 %v637
        %v921 = vpop.f32.mrb[0].mxu0
        %v922 = vadd.f32 0.0, %v921
        %v923 = vpop.f32.mrb[0].mxu0
        %924 = vmatprep.mubr.f32.mxu0 0.0
        %925 = vmatmul.mubr.f32.gmra.mrb[0].mxu0 %v640
        %v926 = vpop.f32.mrb[0].mxu0
        %v927 = vadd.f32 0.0, %v926
        %v928 = vpop.f32.mrb[0].mxu0
        %929 = vmatprep.mubr.f32.mxu0 0.0
        %930 = vmatmul.mubr.f32.gmra.mrb[0].mxu0 %v643
        %v931 = vpop.f32.mrb[0].mxu0
        %v932 = vadd.f32 0.0, %v931
        %v933 = vpop.f32.mrb[0].mxu0
        %934 = vmatprep.mubr.f32.mxu0 0.0
        %935 = vmatmul.mubr.f32.gmra.mrb[0].mxu0 %v646
        %v936 = vpop.f32.mrb[0].mxu0
        %v937 = vadd.f32 0.0, %v936
        %v938 = vpop.f32.mrb[0].mxu0
        %939 = vmatprep.mubr.f32.mxu0 0.0
        %940 = vmatmul.mubr.f32.gmra.mrb[0].mxu0 %v649
        %v941 = vpop.f32.mrb[0].mxu0
        %v942 = vadd.f32 0.0, %v941
        %v943 = vpop.f32.mrb[0].mxu0
        %944 = vdwg.mxu0
        %v945 = vld [vmem:[%s5] sm:$0xff]
        %v946 = vld [vmem:[%s5 + $0x8] sm:$0xff]
        %v947 = vld [vmem:[%s5 + $0x10] sm:$0xff]
        %v948 = vld [vmem:[%s5 + $0x18] sm:$0xff]
        %949 = vmatprep.subr.mxu0 0.0
        %950 = vmatpush1.msra.mxu0 %v945
        %951 = vmatprep.subr.mxu0 0.0
        %952 = vmatpush1.msra.mxu0 %v946
        %953 = vmatprep.subr.mxu0 0.0
        %954 = vmatpush1.msra.mxu0 %v947
        %955 = vmatprep.subr.mxu0 0.0
        %956 = vmatpush1.msra.mxu0 %v948
        %957 = vmatprep.subr.mxu0 0.0
        %958 = vmatpush1.msra.mxu0 0.0
        %959 = vmatprep.subr.mxu0 0.0
        %960 = vmatpush1.msra.mxu0 0.0
        %961 = vmatprep.subr.mxu0 0.0
        %962 = vmatpush1.msra.mxu0 0.0
        %963 = vmatprep.subr.mxu0 0.0
        %964 = vmatpush1.msra.mxu0 0.0
        %965 = vmatprep.subr.mxu0 0.0
        %966 = vmatpush1.msra.mxu0 0.0
        %967 = vmatprep.subr.mxu0 0.0
        %968 = vmatpush1.msra.mxu0 0.0
        %969 = vmatprep.subr.mxu0 0.0
        %970 = vmatpush1.msra.mxu0 0.0
        %971 = vmatprep.subr.mxu0 0.0
        %972 = vmatpush1.msra.mxu0 0.0
        %973 = vmatprep.subr.mxu0 0.0
        %974 = vmatpush1.msra.mxu0 0.0
        %975 = vmatprep.subr.mxu0 0.0
        %976 = vmatpush1.msra.mxu0 0.0
        %977 = vmatprep.subr.mxu0 0.0
        %978 = vmatpush1.msra.mxu0 0.0
        %979 = vmatprep.subr.mxu0 0.0
        %980 = vmatpush1.msra.mxu0 0.0
        %981 = vmatprep.subr.mxu0 0.0
        %982 = vmatpush1.msra.mxu0 0.0
        %983 = vmatprep.subr.mxu0 0.0
        %984 = vmatpush1.msra.mxu0 0.0
        %985 = vmatprep.subr.mxu0 0.0
        %986 = vmatpush1.msra.mxu0 0.0
        %987 = vmatprep.subr.mxu0 0.0
        %988 = vmatpush1.msra.mxu0 0.0
        %989 = vmatprep.subr.mxu0 0.0
        %990 = vmatpush1.msra.mxu0 0.0
        %991 = vmatprep.subr.mxu0 0.0
        %992 = vmatpush1.msra.mxu0 0.0
        %993 = vmatprep.subr.mxu0 0.0
        %994 = vmatpush1.msra.mxu0 0.0
        %995 = vmatprep.subr.mxu0 0.0
        %996 = vmatpush1.msra.mxu0 0.0
        %997 = vmatprep.subr.mxu0 0.0
        %998 = vmatpush1.msra.mxu0 0.0
        %999 = vmatprep.subr.mxu0 0.0
        %1000 = vmatpush1.msra.mxu0 0.0
        %1001 = vmatprep.subr.mxu0 0.0
        %1002 = vmatpush1.msra.mxu0 0.0
        %1003 = vmatprep.subr.mxu0 0.0
        %1004 = vmatpush1.msra.mxu0 0.0
        %1005 = vmatprep.subr.mxu0 0.0
        %1006 = vmatpush1.msra.mxu0 0.0
        %1007 = vmatprep.subr.mxu0 0.0
        %1008 = vmatpush1.msra.mxu0 0.0
        %1009 = vmatprep.subr.mxu0 0.0
        %1010 = vmatpush1.msra.mxu0 0.0
        %1011 = vmatprep.subr.mxu0 0.0
        %1012 = vmatpush1.msra.mxu0 0.0
        %1013 = vmatprep.mubr.f32.mxu0 0.0
        %1014 = vmatmul.mubr.f32.gmra.mrb[0].mxu0 %v604
        %v1015 = vpop.f32.mrb[0].mxu0
        %v1016 = vadd.f32 0.0, %v1015
        %v1017 = vpop.f32.mrb[0].mxu0
        %1018 = vmatprep.mubr.f32.mxu0 0.0
        %1019 = vmatmul.mubr.f32.gmra.mrb[0].mxu0 %v607
        %v1020 = vpop.f32.mrb[0].mxu0
        %v1021 = vadd.f32 0.0, %v1020
        %v1022 = vpop.f32.mrb[0].mxu0
        %1023 = vmatprep.mubr.f32.mxu0 0.0
        %1024 = vmatmul.mubr.f32.gmra.mrb[0].mxu0 %v610
        %v1025 = vpop.f32.mrb[0].mxu0
        %v1026 = vadd.f32 0.0, %v1025
        %v1027 = vpop.f32.mrb[0].mxu0
        %1028 = vmatprep.mubr.f32.mxu0 0.0
        %1029 = vmatmul.mubr.f32.gmra.mrb[0].mxu0 %v613
        %v1030 = vpop.f32.mrb[0].mxu0
        %v1031 = vadd.f32 0.0, %v1030
        %v1032 = vpop.f32.mrb[0].mxu0
        %1033 = vmatprep.mubr.f32.mxu0 0.0
        %1034 = vmatmul.mubr.f32.gmra.mrb[0].mxu0 %v616
        %v1035 = vpop.f32.mrb[0].mxu0
        %v1036 = vadd.f32 0.0, %v1035
        %v1037 = vpop.f32.mrb[0].mxu0
        %1038 = vmatprep.mubr.f32.mxu0 0.0
        %1039 = vmatmul.mubr.f32.gmra.mrb[0].mxu0 %v619
        %v1040 = vpop.f32.mrb[0].mxu0
        %v1041 = vadd.f32 0.0, %v1040
        %v1042 = vpop.f32.mrb[0].mxu0
        %1043 = vmatprep.mubr.f32.mxu0 0.0
        %1044 = vmatmul.mubr.f32.gmra.mrb[0].mxu0 %v622
        %v1045 = vpop.f32.mrb[0].mxu0
        %v1046 = vadd.f32 0.0, %v1045
        %v1047 = vpop.f32.mrb[0].mxu0
        %1048 = vmatprep.mubr.f32.mxu0 0.0
        %1049 = vmatmul.mubr.f32.gmra.mrb[0].mxu0 %v625
        %v1050 = vpop.f32.mrb[0].mxu0
        %v1051 = vadd.f32 0.0, %v1050
        %v1052 = vpop.f32.mrb[0].mxu0
        %1053 = vmatprep.mubr.f32.mxu0 0.0
        %1054 = vmatmul.mubr.f32.gmra.mrb[0].mxu0 %v628
        %v1055 = vpop.f32.mrb[0].mxu0
        %v1056 = vadd.f32 0.0, %v1055
        %v1057 = vpop.f32.mrb[0].mxu0
        %1058 = vmatprep.mubr.f32.mxu0 0.0
        %1059 = vmatmul.mubr.f32.gmra.mrb[0].mxu0 %v631
        %v1060 = vpop.f32.mrb[0].mxu0
        %v1061 = vadd.f32 0.0, %v1060
        %v1062 = vpop.f32.mrb[0].mxu0
        %1063 = vmatprep.mubr.f32.mxu0 0.0
        %1064 = vmatmul.mubr.f32.gmra.mrb[0].mxu0 %v634
        %v1065 = vpop.f32.mrb[0].mxu0
        %v1066 = vadd.f32 0.0, %v1065
        %v1067 = vpop.f32.mrb[0].mxu0
        %1068 = vmatprep.mubr.f32.mxu0 0.0
        %1069 = vmatmul.mubr.f32.gmra.mrb[0].mxu0 %v637
        %v1070 = vpop.f32.mrb[0].mxu0
        %v1071 = vadd.f32 0.0, %v1070
        %v1072 = vpop.f32.mrb[0].mxu0
        %1073 = vmatprep.mubr.f32.mxu0 0.0
        %1074 = vmatmul.mubr.f32.gmra.mrb[0].mxu0 %v640
        %v1075 = vpop.f32.mrb[0].mxu0
        %v1076 = vadd.f32 0.0, %v1075
        %v1077 = vpop.f32.mrb[0].mxu0
        %1078 = vmatprep.mubr.f32.mxu0 0.0
        %1079 = vmatmul.mubr.f32.gmra.mrb[0].mxu0 %v643
        %v1080 = vpop.f32.mrb[0].mxu0
        %v1081 = vadd.f32 0.0, %v1080
        %v1082 = vpop.f32.mrb[0].mxu0
        %1083 = vmatprep.mubr.f32.mxu0 0.0
        %1084 = vmatmul.mubr.f32.gmra.mrb[0].mxu0 %v646
        %v1085 = vpop.f32.mrb[0].mxu0
        %v1086 = vadd.f32 0.0, %v1085
        %v1087 = vpop.f32.mrb[0].mxu0
        %1088 = vmatprep.mubr.f32.mxu0 0.0
        %1089 = vmatmul.mubr.f32.gmra.mrb[0].mxu0 %v649
        %v1090 = vpop.f32.mrb[0].mxu0
        %v1091 = vadd.f32 0.0, %v1090
        %v1092 = vpop.f32.mrb[0].mxu0
        %1093 = vdwg.mxu0
        %v1095 = vsel %vm602, %v867, 0
        %v1098 = vsel %vm602, %v718, 0
        %1100 = vmatprep.subr.mxu0 0.0
        %1101 = vmatpush1.xpose.msra.mxu0 %v1098
        %1102 = vmatprep.subr.mxu0 0.0
        %1103 = vmatpush1.xpose.msra.mxu0 0.0
        %1104 = vmatprep.subr.mxu0 0.0
        %1105 = vmatpush1.xpose.msra.mxu0 0.0
        %1106 = vmatprep.subr.mxu0 0.0
        %1107 = vmatpush1.xpose.msra.mxu0 0.0
        %1108 = vmatprep.subr.mxu0 0.0
        %1109 = vmatpush1.xpose.msra.mxu0 0.0
        %1110 = vmatprep.subr.mxu0 0.0
        %1111 = vmatpush1.xpose.msra.mxu0 0.0
        %1112 = vmatprep.subr.mxu0 0.0
        %1113 = vmatpush1.xpose.msra.mxu0 0.0
        %1114 = vmatprep.subr.mxu0 0.0
        %1115 = vmatpush1.xpose.msra.mxu0 0.0
        %1116 = vmatprep.subr.mxu0 0.0
        %1117 = vmatpush1.xpose.msra.mxu0 0.0
        %1118 = vmatprep.subr.mxu0 0.0
        %1119 = vmatpush1.xpose.msra.mxu0 0.0
        %1120 = vmatprep.subr.mxu0 0.0
        %1121 = vmatpush1.xpose.msra.mxu0 0.0
        %1122 = vmatprep.subr.mxu0 0.0
        %1123 = vmatpush1.xpose.msra.mxu0 0.0
        %1124 = vmatprep.subr.mxu0 0.0
        %1125 = vmatpush1.xpose.msra.mxu0 0.0
        %1126 = vmatprep.subr.mxu0 0.0
        %1127 = vmatpush1.xpose.msra.mxu0 0.0
        %1128 = vmatprep.subr.mxu0 0.0
        %1129 = vmatpush1.xpose.msra.mxu0 0.0
        %1130 = vmatprep.subr.mxu0 0.0
        %1131 = vmatpush1.xpose.msra.mxu0 0.0
        %1132 = vmatprep.subr.mxu0 0.0
        %1133 = vmatpush1.xpose.msra.mxu0 0.0
        %1134 = vmatprep.subr.mxu0 0.0
        %1135 = vmatpush1.xpose.msra.mxu0 0.0
        %1136 = vmatprep.subr.mxu0 0.0
        %1137 = vmatpush1.xpose.msra.mxu0 0.0
        %1138 = vmatprep.subr.mxu0 0.0
        %1139 = vmatpush1.xpose.msra.mxu0 0.0
        %1140 = vmatprep.subr.mxu0 0.0
        %1141 = vmatpush1.xpose.msra.mxu0 0.0
        %1142 = vmatprep.subr.mxu0 0.0
        %1143 = vmatpush1.xpose.msra.mxu0 0.0
        %1144 = vmatprep.subr.mxu0 0.0
        %1145 = vmatpush1.xpose.msra.mxu0 0.0
        %1146 = vmatprep.subr.mxu0 0.0
        %1147 = vmatpush1.xpose.msra.mxu0 0.0
        %1148 = vmatprep.subr.mxu0 0.0
        %1149 = vmatpush1.xpose.msra.mxu0 0.0
        %1150 = vmatprep.subr.mxu0 0.0
        %1151 = vmatpush1.xpose.msra.mxu0 0.0
        %1152 = vmatprep.subr.mxu0 0.0
        %1153 = vmatpush1.xpose.msra.mxu0 0.0
        %1154 = vmatprep.subr.mxu0 0.0
        %1155 = vmatpush1.xpose.msra.mxu0 0.0
        %1156 = vmatprep.subr.mxu0 0.0
        %1157 = vmatpush1.xpose.msra.mxu0 0.0
        %1158 = vmatprep.subr.mxu0 0.0
        %1159 = vmatpush1.xpose.msra.mxu0 0.0
        %1160 = vmatprep.subr.mxu0 0.0
        %1161 = vmatpush1.xpose.msra.mxu0 0.0
        %1162 = vmatprep.subr.mxu0 0.0
        %1163 = vmatpush1.xpose.msra.mxu0 0.0
        %1164 = vmatprep.mubr.f32.mxu0 0.0
        %1165 = vmatmul.mubr.f32.gmra.mrb[0].mxu0 %v1095
        %v1166 = vpop.f32.mrb[0].mxu0
        %v1167 = vadd.f32 0.0, %v1166
        %v1168 = vpop.f32.mrb[0].mxu0
        %1169 = vdwg.mxu0
        %v1171 = vsel %vm602, %v872, 0
        %v1174 = vsel %vm602, %v723, 0
        %1176 = vmatprep.subr.mxu0 0.0
        %1177 = vmatpush1.xpose.msra.mxu0 %v1174
        %1178 = vmatprep.subr.mxu0 0.0
        %1179 = vmatpush1.xpose.msra.mxu0 0.0
        %1180 = vmatprep.subr.mxu0 0.0
        %1181 = vmatpush1.xpose.msra.mxu0 0.0
        %1182 = vmatprep.subr.mxu0 0.0
        %1183 = vmatpush1.xpose.msra.mxu0 0.0
        %1184 = vmatprep.subr.mxu0 0.0
        %1185 = vmatpush1.xpose.msra.mxu0 0.0
        %1186 = vmatprep.subr.mxu0 0.0
        %1187 = vmatpush1.xpose.msra.mxu0 0.0
        %1188 = vmatprep.subr.mxu0 0.0
        %1189 = vmatpush1.xpose.msra.mxu0 0.0
        %1190 = vmatprep.subr.mxu0 0.0
        %1191 = vmatpush1.xpose.msra.mxu0 0.0
        %1192 = vmatprep.subr.mxu0 0.0
        %1193 = vmatpush1.xpose.msra.mxu0 0.0
        %1194 = vmatprep.subr.mxu0 0.0
        %1195 = vmatpush1.xpose.msra.mxu0 0.0
        %1196 = vmatprep.subr.mxu0 0.0
        %1197 = vmatpush1.xpose.msra.mxu0 0.0
        %1198 = vmatprep.subr.mxu0 0.0
        %1199 = vmatpush1.xpose.msra.mxu0 0.0
        %1200 = vmatprep.subr.mxu0 0.0
        %1201 = vmatpush1.xpose.msra.mxu0 0.0
        %1202 = vmatprep.subr.mxu0 0.0
        %1203 = vmatpush1.xpose.msra.mxu0 0.0
        %1204 = vmatprep.subr.mxu0 0.0
        %1205 = vmatpush1.xpose.msra.mxu0 0.0
        %1206 = vmatprep.subr.mxu0 0.0
        %1207 = vmatpush1.xpose.msra.mxu0 0.0
        %1208 = vmatprep.subr.mxu0 0.0
        %1209 = vmatpush1.xpose.msra.mxu0 0.0
        %1210 = vmatprep.subr.mxu0 0.0
        %1211 = vmatpush1.xpose.msra.mxu0 0.0
        %1212 = vmatprep.subr.mxu0 0.0
        %1213 = vmatpush1.xpose.msra.mxu0 0.0
        %1214 = vmatprep.subr.mxu0 0.0
        %1215 = vmatpush1.xpose.msra.mxu0 0.0
        %1216 = vmatprep.subr.mxu0 0.0
        %1217 = vmatpush1.xpose.msra.mxu0 0.0
        %1218 = vmatprep.subr.mxu0 0.0
        %1219 = vmatpush1.xpose.msra.mxu0 0.0
        %1220 = vmatprep.subr.mxu0 0.0
        %1221 = vmatpush1.xpose.msra.mxu0 0.0
        %1222 = vmatprep.subr.mxu0 0.0
        %1223 = vmatpush1.xpose.msra.mxu0 0.0
        %1224 = vmatprep.subr.mxu0 0.0
        %1225 = vmatpush1.xpose.msra.mxu0 0.0
        %1226 = vmatprep.subr.mxu0 0.0
        %1227 = vmatpush1.xpose.msra.mxu0 0.0
        %1228 = vmatprep.subr.mxu0 0.0
        %1229 = vmatpush1.xpose.msra.mxu0 0.0
        %1230 = vmatprep.subr.mxu0 0.0
        %1231 = vmatpush1.xpose.msra.mxu0 0.0
        %1232 = vmatprep.subr.mxu0 0.0
        %1233 = vmatpush1.xpose.msra.mxu0 0.0
        %1234 = vmatprep.subr.mxu0 0.0
        %1235 = vmatpush1.xpose.msra.mxu0 0.0
        %1236 = vmatprep.subr.mxu0 0.0
        %1237 = vmatpush1.xpose.msra.mxu0 0.0
        %1238 = vmatprep.subr.mxu0 0.0
        %1239 = vmatpush1.xpose.msra.mxu0 0.0
        %1240 = vmatprep.mubr.f32.mxu0 0.0
        %1241 = vmatmul.mubr.f32.gmra.mrb[0].mxu0 %v1171
        %v1242 = vpop.f32.mrb[0].mxu0
        %v1243 = vadd.f32 0.0, %v1242
        %v1244 = vpop.f32.mrb[0].mxu0
        %1245 = vdwg.mxu0
        %v1247 = vsel %vm602, %v877, 0
        %v1250 = vsel %vm602, %v728, 0
        %1252 = vmatprep.subr.mxu0 0.0
        %1253 = vmatpush1.xpose.msra.mxu0 %v1250
        %1254 = vmatprep.subr.mxu0 0.0
        %1255 = vmatpush1.xpose.msra.mxu0 0.0
        %1256 = vmatprep.subr.mxu0 0.0
        %1257 = vmatpush1.xpose.msra.mxu0 0.0
        %1258 = vmatprep.subr.mxu0 0.0
        %1259 = vmatpush1.xpose.msra.mxu0 0.0
        %1260 = vmatprep.subr.mxu0 0.0
        %1261 = vmatpush1.xpose.msra.mxu0 0.0
        %1262 = vmatprep.subr.mxu0 0.0
        %1263 = vmatpush1.xpose.msra.mxu0 0.0
        %1264 = vmatprep.subr.mxu0 0.0
        %1265 = vmatpush1.xpose.msra.mxu0 0.0
        %1266 = vmatprep.subr.mxu0 0.0
        %1267 = vmatpush1.xpose.msra.mxu0 0.0
        %1268 = vmatprep.subr.mxu0 0.0
        %1269 = vmatpush1.xpose.msra.mxu0 0.0
        %1270 = vmatprep.subr.mxu0 0.0
        %1271 = vmatpush1.xpose.msra.mxu0 0.0
        %1272 = vmatprep.subr.mxu0 0.0
        %1273 = vmatpush1.xpose.msra.mxu0 0.0
        %1274 = vmatprep.subr.mxu0 0.0
        %1275 = vmatpush1.xpose.msra.mxu0 0.0
        %1276 = vmatprep.subr.mxu0 0.0
        %1277 = vmatpush1.xpose.msra.mxu0 0.0
        %1278 = vmatprep.subr.mxu0 0.0
        %1279 = vmatpush1.xpose.msra.mxu0 0.0
        %1280 = vmatprep.subr.mxu0 0.0
        %1281 = vmatpush1.xpose.msra.mxu0 0.0
        %1282 = vmatprep.subr.mxu0 0.0
        %1283 = vmatpush1.xpose.msra.mxu0 0.0
        %1284 = vmatprep.subr.mxu0 0.0
        %1285 = vmatpush1.xpose.msra.mxu0 0.0
        %1286 = vmatprep.subr.mxu0 0.0
        %1287 = vmatpush1.xpose.msra.mxu0 0.0
        %1288 = vmatprep.subr.mxu0 0.0
        %1289 = vmatpush1.xpose.msra.mxu0 0.0
        %1290 = vmatprep.subr.mxu0 0.0
        %1291 = vmatpush1.xpose.msra.mxu0 0.0
        %1292 = vmatprep.subr.mxu0 0.0
        %1293 = vmatpush1.xpose.msra.mxu0 0.0
        %1294 = vmatprep.subr.mxu0 0.0
        %1295 = vmatpush1.xpose.msra.mxu0 0.0
        %1296 = vmatprep.subr.mxu0 0.0
        %1297 = vmatpush1.xpose.msra.mxu0 0.0
        %1298 = vmatprep.subr.mxu0 0.0
        %1299 = vmatpush1.xpose.msra.mxu0 0.0
        %1300 = vmatprep.subr.mxu0 0.0
        %1301 = vmatpush1.xpose.msra.mxu0 0.0
        %1302 = vmatprep.subr.mxu0 0.0
        %1303 = vmatpush1.xpose.msra.mxu0 0.0
        %1304 = vmatprep.subr.mxu0 0.0
        %1305 = vmatpush1.xpose.msra.mxu0 0.0
        %1306 = vmatprep.subr.mxu0 0.0
        %1307 = vmatpush1.xpose.msra.mxu0 0.0
        %1308 = vmatprep.subr.mxu0 0.0
        %1309 = vmatpush1.xpose.msra.mxu0 0.0
        %1310 = vmatprep.subr.mxu0 0.0
        %1311 = vmatpush1.xpose.msra.mxu0 0.0
        %1312 = vmatprep.subr.mxu0 0.0
        %1313 = vmatpush1.xpose.msra.mxu0 0.0
        %1314 = vmatprep.subr.mxu0 0.0
        %1315 = vmatpush1.xpose.msra.mxu0 0.0
        %1316 = vmatprep.mubr.f32.mxu0 0.0
        %1317 = vmatmul.mubr.f32.gmra.mrb[0].mxu0 %v1247
        %v1318 = vpop.f32.mrb[0].mxu0
        %v1319 = vadd.f32 0.0, %v1318
        %v1320 = vpop.f32.mrb[0].mxu0
        %1321 = vdwg.mxu0
        %v1323 = vsel %vm602, %v882, 0
        %v1326 = vsel %vm602, %v733, 0
        %1328 = vmatprep.subr.mxu0 0.0
        %1329 = vmatpush1.xpose.msra.mxu0 %v1326
        %1330 = vmatprep.subr.mxu0 0.0
        %1331 = vmatpush1.xpose.msra.mxu0 0.0
        %1332 = vmatprep.subr.mxu0 0.0
        %1333 = vmatpush1.xpose.msra.mxu0 0.0
        %1334 = vmatprep.subr.mxu0 0.0
        %1335 = vmatpush1.xpose.msra.mxu0 0.0
        %1336 = vmatprep.subr.mxu0 0.0
        %1337 = vmatpush1.xpose.msra.mxu0 0.0
        %1338 = vmatprep.subr.mxu0 0.0
        %1339 = vmatpush1.xpose.msra.mxu0 0.0
        %1340 = vmatprep.subr.mxu0 0.0
        %1341 = vmatpush1.xpose.msra.mxu0 0.0
        %1342 = vmatprep.subr.mxu0 0.0
        %1343 = vmatpush1.xpose.msra.mxu0 0.0
        %1344 = vmatprep.subr.mxu0 0.0
        %1345 = vmatpush1.xpose.msra.mxu0 0.0
        %1346 = vmatprep.subr.mxu0 0.0
        %1347 = vmatpush1.xpose.msra.mxu0 0.0
        %1348 = vmatprep.subr.mxu0 0.0
        %1349 = vmatpush1.xpose.msra.mxu0 0.0
        %1350 = vmatprep.subr.mxu0 0.0
        %1351 = vmatpush1.xpose.msra.mxu0 0.0
        %1352 = vmatprep.subr.mxu0 0.0
        %1353 = vmatpush1.xpose.msra.mxu0 0.0
        %1354 = vmatprep.subr.mxu0 0.0
        %1355 = vmatpush1.xpose.msra.mxu0 0.0
        %1356 = vmatprep.subr.mxu0 0.0
        %1357 = vmatpush1.xpose.msra.mxu0 0.0
        %1358 = vmatprep.subr.mxu0 0.0
        %1359 = vmatpush1.xpose.msra.mxu0 0.0
        %1360 = vmatprep.subr.mxu0 0.0
        %1361 = vmatpush1.xpose.msra.mxu0 0.0
        %1362 = vmatprep.subr.mxu0 0.0
        %1363 = vmatpush1.xpose.msra.mxu0 0.0
        %1364 = vmatprep.subr.mxu0 0.0
        %1365 = vmatpush1.xpose.msra.mxu0 0.0
        %1366 = vmatprep.subr.mxu0 0.0
        %1367 = vmatpush1.xpose.msra.mxu0 0.0
        %1368 = vmatprep.subr.mxu0 0.0
        %1369 = vmatpush1.xpose.msra.mxu0 0.0
        %1370 = vmatprep.subr.mxu0 0.0
        %1371 = vmatpush1.xpose.msra.mxu0 0.0
        %1372 = vmatprep.subr.mxu0 0.0
        %1373 = vmatpush1.xpose.msra.mxu0 0.0
        %1374 = vmatprep.subr.mxu0 0.0
        %1375 = vmatpush1.xpose.msra.mxu0 0.0
        %1376 = vmatprep.subr.mxu0 0.0
        %1377 = vmatpush1.xpose.msra.mxu0 0.0
        %1378 = vmatprep.subr.mxu0 0.0
        %1379 = vmatpush1.xpose.msra.mxu0 0.0
        %1380 = vmatprep.subr.mxu0 0.0
        %1381 = vmatpush1.xpose.msra.mxu0 0.0
        %1382 = vmatprep.subr.mxu0 0.0
        %1383 = vmatpush1.xpose.msra.mxu0 0.0
        %1384 = vmatprep.subr.mxu0 0.0
        %1385 = vmatpush1.xpose.msra.mxu0 0.0
        %1386 = vmatprep.subr.mxu0 0.0
        %1387 = vmatpush1.xpose.msra.mxu0 0.0
        %1388 = vmatprep.subr.mxu0 0.0
        %1389 = vmatpush1.xpose.msra.mxu0 0.0
        %1390 = vmatprep.subr.mxu0 0.0
        %1391 = vmatpush1.xpose.msra.mxu0 0.0
        %1392 = vmatprep.mubr.f32.mxu0 0.0
        %1393 = vmatmul.mubr.f32.gmra.mrb[0].mxu0 %v1323
        %v1394 = vpop.f32.mrb[0].mxu0
        %v1395 = vadd.f32 0.0, %v1394
        %v1396 = vpop.f32.mrb[0].mxu0
        %1397 = vdwg.mxu0
        %v1399 = vsel %vm602, %v887, 0
        %v1402 = vsel %vm602, %v738, 0
        %1404 = vmatprep.subr.mxu0 0.0
        %1405 = vmatpush1.xpose.msra.mxu0 %v1402
        %1406 = vmatprep.subr.mxu0 0.0
        %1407 = vmatpush1.xpose.msra.mxu0 0.0
        %1408 = vmatprep.subr.mxu0 0.0
        %1409 = vmatpush1.xpose.msra.mxu0 0.0
        %1410 = vmatprep.subr.mxu0 0.0
        %1411 = vmatpush1.xpose.msra.mxu0 0.0
        %1412 = vmatprep.subr.mxu0 0.0
        %1413 = vmatpush1.xpose.msra.mxu0 0.0
        %1414 = vmatprep.subr.mxu0 0.0
        %1415 = vmatpush1.xpose.msra.mxu0 0.0
        %1416 = vmatprep.subr.mxu0 0.0
        %1417 = vmatpush1.xpose.msra.mxu0 0.0
        %1418 = vmatprep.subr.mxu0 0.0
        %1419 = vmatpush1.xpose.msra.mxu0 0.0
        %1420 = vmatprep.subr.mxu0 0.0
        %1421 = vmatpush1.xpose.msra.mxu0 0.0
        %1422 = vmatprep.subr.mxu0 0.0
        %1423 = vmatpush1.xpose.msra.mxu0 0.0
        %1424 = vmatprep.subr.mxu0 0.0
        %1425 = vmatpush1.xpose.msra.mxu0 0.0
        %1426 = vmatprep.subr.mxu0 0.0
        %1427 = vmatpush1.xpose.msra.mxu0 0.0
        %1428 = vmatprep.subr.mxu0 0.0
        %1429 = vmatpush1.xpose.msra.mxu0 0.0
        %1430 = vmatprep.subr.mxu0 0.0
        %1431 = vmatpush1.xpose.msra.mxu0 0.0
        %1432 = vmatprep.subr.mxu0 0.0
        %1433 = vmatpush1.xpose.msra.mxu0 0.0
        %1434 = vmatprep.subr.mxu0 0.0
        %1435 = vmatpush1.xpose.msra.mxu0 0.0
        %1436 = vmatprep.subr.mxu0 0.0
        %1437 = vmatpush1.xpose.msra.mxu0 0.0
        %1438 = vmatprep.subr.mxu0 0.0
        %1439 = vmatpush1.xpose.msra.mxu0 0.0
        %1440 = vmatprep.subr.mxu0 0.0
        %1441 = vmatpush1.xpose.msra.mxu0 0.0
        %1442 = vmatprep.subr.mxu0 0.0
        %1443 = vmatpush1.xpose.msra.mxu0 0.0
        %1444 = vmatprep.subr.mxu0 0.0
        %1445 = vmatpush1.xpose.msra.mxu0 0.0
        %1446 = vmatprep.subr.mxu0 0.0
        %1447 = vmatpush1.xpose.msra.mxu0 0.0
        %1448 = vmatprep.subr.mxu0 0.0
        %1449 = vmatpush1.xpose.msra.mxu0 0.0
        %1450 = vmatprep.subr.mxu0 0.0
        %1451 = vmatpush1.xpose.msra.mxu0 0.0
        %1452 = vmatprep.subr.mxu0 0.0
        %1453 = vmatpush1.xpose.msra.mxu0 0.0
        %1454 = vmatprep.subr.mxu0 0.0
        %1455 = vmatpush1.xpose.msra.mxu0 0.0
        %1456 = vmatprep.subr.mxu0 0.0
        %1457 = vmatpush1.xpose.msra.mxu0 0.0
        %1458 = vmatprep.subr.mxu0 0.0
        %1459 = vmatpush1.xpose.msra.mxu0 0.0
        %1460 = vmatprep.subr.mxu0 0.0
        %1461 = vmatpush1.xpose.msra.mxu0 0.0
        %1462 = vmatprep.subr.mxu0 0.0
        %1463 = vmatpush1.xpose.msra.mxu0 0.0
        %1464 = vmatprep.subr.mxu0 0.0
        %1465 = vmatpush1.xpose.msra.mxu0 0.0
        %1466 = vmatprep.subr.mxu0 0.0
        %1467 = vmatpush1.xpose.msra.mxu0 0.0
        %1468 = vmatprep.mubr.f32.mxu0 0.0
        %1469 = vmatmul.mubr.f32.gmra.mrb[0].mxu0 %v1399
        %v1470 = vpop.f32.mrb[0].mxu0
        %v1471 = vadd.f32 0.0, %v1470
        %v1472 = vpop.f32.mrb[0].mxu0
        %1473 = vdwg.mxu0
        %v1475 = vsel %vm602, %v892, 0
        %v1478 = vsel %vm602, %v743, 0
        %1480 = vmatprep.subr.mxu0 0.0
        %1481 = vmatpush1.xpose.msra.mxu0 %v1478
        %1482 = vmatprep.subr.mxu0 0.0
        %1483 = vmatpush1.xpose.msra.mxu0 0.0
        %1484 = vmatprep.subr.mxu0 0.0
        %1485 = vmatpush1.xpose.msra.mxu0 0.0
        %1486 = vmatprep.subr.mxu0 0.0
        %1487 = vmatpush1.xpose.msra.mxu0 0.0
        %1488 = vmatprep.subr.mxu0 0.0
        %1489 = vmatpush1.xpose.msra.mxu0 0.0
        %1490 = vmatprep.subr.mxu0 0.0
        %1491 = vmatpush1.xpose.msra.mxu0 0.0
        %1492 = vmatprep.subr.mxu0 0.0
        %1493 = vmatpush1.xpose.msra.mxu0 0.0
        %1494 = vmatprep.subr.mxu0 0.0
        %1495 = vmatpush1.xpose.msra.mxu0 0.0
        %1496 = vmatprep.subr.mxu0 0.0
        %1497 = vmatpush1.xpose.msra.mxu0 0.0
        %1498 = vmatprep.subr.mxu0 0.0
        %1499 = vmatpush1.xpose.msra.mxu0 0.0
        %1500 = vmatprep.subr.mxu0 0.0
        %1501 = vmatpush1.xpose.msra.mxu0 0.0
        %1502 = vmatprep.subr.mxu0 0.0
        %1503 = vmatpush1.xpose.msra.mxu0 0.0
        %1504 = vmatprep.subr.mxu0 0.0
        %1505 = vmatpush1.xpose.msra.mxu0 0.0
        %1506 = vmatprep.subr.mxu0 0.0
        %1507 = vmatpush1.xpose.msra.mxu0 0.0
        %1508 = vmatprep.subr.mxu0 0.0
        %1509 = vmatpush1.xpose.msra.mxu0 0.0
        %1510 = vmatprep.subr.mxu0 0.0
        %1511 = vmatpush1.xpose.msra.mxu0 0.0
        %1512 = vmatprep.subr.mxu0 0.0
        %1513 = vmatpush1.xpose.msra.mxu0 0.0
        %1514 = vmatprep.subr.mxu0 0.0
        %1515 = vmatpush1.xpose.msra.mxu0 0.0
        %1516 = vmatprep.subr.mxu0 0.0
        %1517 = vmatpush1.xpose.msra.mxu0 0.0
        %1518 = vmatprep.subr.mxu0 0.0
        %1519 = vmatpush1.xpose.msra.mxu0 0.0
        %1520 = vmatprep.subr.mxu0 0.0
        %1521 = vmatpush1.xpose.msra.mxu0 0.0
        %1522 = vmatprep.subr.mxu0 0.0
        %1523 = vmatpush1.xpose.msra.mxu0 0.0
        %1524 = vmatprep.subr.mxu0 0.0
        %1525 = vmatpush1.xpose.msra.mxu0 0.0
        %1526 = vmatprep.subr.mxu0 0.0
        %1527 = vmatpush1.xpose.msra.mxu0 0.0
        %1528 = vmatprep.subr.mxu0 0.0
        %1529 = vmatpush1.xpose.msra.mxu0 0.0
        %1530 = vmatprep.subr.mxu0 0.0
        %1531 = vmatpush1.xpose.msra.mxu0 0.0
        %1532 = vmatprep.subr.mxu0 0.0
        %1533 = vmatpush1.xpose.msra.mxu0 0.0
        %1534 = vmatprep.subr.mxu0 0.0
        %1535 = vmatpush1.xpose.msra.mxu0 0.0
        %1536 = vmatprep.subr.mxu0 0.0
        %1537 = vmatpush1.xpose.msra.mxu0 0.0
        %1538 = vmatprep.subr.mxu0 0.0
        %1539 = vmatpush1.xpose.msra.mxu0 0.0
        %1540 = vmatprep.subr.mxu0 0.0
        %1541 = vmatpush1.xpose.msra.mxu0 0.0
        %1542 = vmatprep.subr.mxu0 0.0
        %1543 = vmatpush1.xpose.msra.mxu0 0.0
        %1544 = vmatprep.mubr.f32.mxu0 0.0
        %1545 = vmatmul.mubr.f32.gmra.mrb[0].mxu0 %v1475
        %v1546 = vpop.f32.mrb[0].mxu0
        %v1547 = vadd.f32 0.0, %v1546
        %v1548 = vpop.f32.mrb[0].mxu0
        %1549 = vdwg.mxu0
        %v1551 = vsel %vm602, %v897, 0
        %v1554 = vsel %vm602, %v748, 0
        %1556 = vmatprep.subr.mxu0 0.0
        %1557 = vmatpush1.xpose.msra.mxu0 %v1554
        %1558 = vmatprep.subr.mxu0 0.0
        %1559 = vmatpush1.xpose.msra.mxu0 0.0
        %1560 = vmatprep.subr.mxu0 0.0
        %1561 = vmatpush1.xpose.msra.mxu0 0.0
        %1562 = vmatprep.subr.mxu0 0.0
        %1563 = vmatpush1.xpose.msra.mxu0 0.0
        %1564 = vmatprep.subr.mxu0 0.0
        %1565 = vmatpush1.xpose.msra.mxu0 0.0
        %1566 = vmatprep.subr.mxu0 0.0
        %1567 = vmatpush1.xpose.msra.mxu0 0.0
        %1568 = vmatprep.subr.mxu0 0.0
        %1569 = vmatpush1.xpose.msra.mxu0 0.0
        %1570 = vmatprep.subr.mxu0 0.0
        %1571 = vmatpush1.xpose.msra.mxu0 0.0
        %1572 = vmatprep.subr.mxu0 0.0
        %1573 = vmatpush1.xpose.msra.mxu0 0.0
        %1574 = vmatprep.subr.mxu0 0.0
        %1575 = vmatpush1.xpose.msra.mxu0 0.0
        %1576 = vmatprep.subr.mxu0 0.0
        %1577 = vmatpush1.xpose.msra.mxu0 0.0
        %1578 = vmatprep.subr.mxu0 0.0
        %1579 = vmatpush1.xpose.msra.mxu0 0.0
        %1580 = vmatprep.subr.mxu0 0.0
        %1581 = vmatpush1.xpose.msra.mxu0 0.0
        %1582 = vmatprep.subr.mxu0 0.0
        %1583 = vmatpush1.xpose.msra.mxu0 0.0
        %1584 = vmatprep.subr.mxu0 0.0
        %1585 = vmatpush1.xpose.msra.mxu0 0.0
        %1586 = vmatprep.subr.mxu0 0.0
        %1587 = vmatpush1.xpose.msra.mxu0 0.0
        %1588 = vmatprep.subr.mxu0 0.0
        %1589 = vmatpush1.xpose.msra.mxu0 0.0
        %1590 = vmatprep.subr.mxu0 0.0
        %1591 = vmatpush1.xpose.msra.mxu0 0.0
        %1592 = vmatprep.subr.mxu0 0.0
        %1593 = vmatpush1.xpose.msra.mxu0 0.0
        %1594 = vmatprep.subr.mxu0 0.0
        %1595 = vmatpush1.xpose.msra.mxu0 0.0
        %1596 = vmatprep.subr.mxu0 0.0
        %1597 = vmatpush1.xpose.msra.mxu0 0.0
        %1598 = vmatprep.subr.mxu0 0.0
        %1599 = vmatpush1.xpose.msra.mxu0 0.0
        %1600 = vmatprep.subr.mxu0 0.0
        %1601 = vmatpush1.xpose.msra.mxu0 0.0
        %1602 = vmatprep.subr.mxu0 0.0
        %1603 = vmatpush1.xpose.msra.mxu0 0.0
        %1604 = vmatprep.subr.mxu0 0.0
        %1605 = vmatpush1.xpose.msra.mxu0 0.0
        %1606 = vmatprep.subr.mxu0 0.0
        %1607 = vmatpush1.xpose.msra.mxu0 0.0
        %1608 = vmatprep.subr.mxu0 0.0
        %1609 = vmatpush1.xpose.msra.mxu0 0.0
        %1610 = vmatprep.subr.mxu0 0.0
        %1611 = vmatpush1.xpose.msra.mxu0 0.0
        %1612 = vmatprep.subr.mxu0 0.0
        %1613 = vmatpush1.xpose.msra.mxu0 0.0
        %1614 = vmatprep.subr.mxu0 0.0
        %1615 = vmatpush1.xpose.msra.mxu0 0.0
        %1616 = vmatprep.subr.mxu0 0.0
        %1617 = vmatpush1.xpose.msra.mxu0 0.0
        %1618 = vmatprep.subr.mxu0 0.0
        %1619 = vmatpush1.xpose.msra.mxu0 0.0
        %1620 = vmatprep.mubr.f32.mxu0 0.0
        %1621 = vmatmul.mubr.f32.gmra.mrb[0].mxu0 %v1551
        %v1622 = vpop.f32.mrb[0].mxu0
        %v1623 = vadd.f32 0.0, %v1622
        %v1624 = vpop.f32.mrb[0].mxu0
        %1625 = vdwg.mxu0
        %v1627 = vsel %vm602, %v902, 0
        %v1630 = vsel %vm602, %v753, 0
        %1632 = vmatprep.subr.mxu0 0.0
        %1633 = vmatpush1.xpose.msra.mxu0 %v1630
        %1634 = vmatprep.subr.mxu0 0.0
        %1635 = vmatpush1.xpose.msra.mxu0 0.0
        %1636 = vmatprep.subr.mxu0 0.0
        %1637 = vmatpush1.xpose.msra.mxu0 0.0
        %1638 = vmatprep.subr.mxu0 0.0
        %1639 = vmatpush1.xpose.msra.mxu0 0.0
        %1640 = vmatprep.subr.mxu0 0.0
        %1641 = vmatpush1.xpose.msra.mxu0 0.0
        %1642 = vmatprep.subr.mxu0 0.0
        %1643 = vmatpush1.xpose.msra.mxu0 0.0
        %1644 = vmatprep.subr.mxu0 0.0
        %1645 = vmatpush1.xpose.msra.mxu0 0.0
        %1646 = vmatprep.subr.mxu0 0.0
        %1647 = vmatpush1.xpose.msra.mxu0 0.0
        %1648 = vmatprep.subr.mxu0 0.0
        %1649 = vmatpush1.xpose.msra.mxu0 0.0
        %1650 = vmatprep.subr.mxu0 0.0
        %1651 = vmatpush1.xpose.msra.mxu0 0.0
        %1652 = vmatprep.subr.mxu0 0.0
        %1653 = vmatpush1.xpose.msra.mxu0 0.0
        %1654 = vmatprep.subr.mxu0 0.0
        %1655 = vmatpush1.xpose.msra.mxu0 0.0
        %1656 = vmatprep.subr.mxu0 0.0
        %1657 = vmatpush1.xpose.msra.mxu0 0.0
        %1658 = vmatprep.subr.mxu0 0.0
        %1659 = vmatpush1.xpose.msra.mxu0 0.0
        %1660 = vmatprep.subr.mxu0 0.0
        %1661 = vmatpush1.xpose.msra.mxu0 0.0
        %1662 = vmatprep.subr.mxu0 0.0
        %1663 = vmatpush1.xpose.msra.mxu0 0.0
        %1664 = vmatprep.subr.mxu0 0.0
        %1665 = vmatpush1.xpose.msra.mxu0 0.0
        %1666 = vmatprep.subr.mxu0 0.0
        %1667 = vmatpush1.xpose.msra.mxu0 0.0
        %1668 = vmatprep.subr.mxu0 0.0
        %1669 = vmatpush1.xpose.msra.mxu0 0.0
        %1670 = vmatprep.subr.mxu0 0.0
        %1671 = vmatpush1.xpose.msra.mxu0 0.0
        %1672 = vmatprep.subr.mxu0 0.0
        %1673 = vmatpush1.xpose.msra.mxu0 0.0
        %1674 = vmatprep.subr.mxu0 0.0
        %1675 = vmatpush1.xpose.msra.mxu0 0.0
        %1676 = vmatprep.subr.mxu0 0.0
        %1677 = vmatpush1.xpose.msra.mxu0 0.0
        %1678 = vmatprep.subr.mxu0 0.0
        %1679 = vmatpush1.xpose.msra.mxu0 0.0
        %1680 = vmatprep.subr.mxu0 0.0
        %1681 = vmatpush1.xpose.msra.mxu0 0.0
        %1682 = vmatprep.subr.mxu0 0.0
        %1683 = vmatpush1.xpose.msra.mxu0 0.0
        %1684 = vmatprep.subr.mxu0 0.0
        %1685 = vmatpush1.xpose.msra.mxu0 0.0
        %1686 = vmatprep.subr.mxu0 0.0
        %1687 = vmatpush1.xpose.msra.mxu0 0.0
        %1688 = vmatprep.subr.mxu0 0.0
        %1689 = vmatpush1.xpose.msra.mxu0 0.0
        %1690 = vmatprep.subr.mxu0 0.0
        %1691 = vmatpush1.xpose.msra.mxu0 0.0
        %1692 = vmatprep.subr.mxu0 0.0
        %1693 = vmatpush1.xpose.msra.mxu0 0.0
        %1694 = vmatprep.subr.mxu0 0.0
        %1695 = vmatpush1.xpose.msra.mxu0 0.0
        %1696 = vmatprep.mubr.f32.mxu0 0.0
        %1697 = vmatmul.mubr.f32.gmra.mrb[0].mxu0 %v1627
        %v1698 = vpop.f32.mrb[0].mxu0
        %v1699 = vadd.f32 0.0, %v1698
        %v1700 = vpop.f32.mrb[0].mxu0
        %1701 = vdwg.mxu0
        %v1703 = vsel %vm602, %v907, 0
        %v1706 = vsel %vm602, %v758, 0
        %1708 = vmatprep.subr.mxu0 0.0
        %1709 = vmatpush1.xpose.msra.mxu0 %v1706
        %1710 = vmatprep.subr.mxu0 0.0
        %1711 = vmatpush1.xpose.msra.mxu0 0.0
        %1712 = vmatprep.subr.mxu0 0.0
        %1713 = vmatpush1.xpose.msra.mxu0 0.0
        %1714 = vmatprep.subr.mxu0 0.0
        %1715 = vmatpush1.xpose.msra.mxu0 0.0
        %1716 = vmatprep.subr.mxu0 0.0
        %1717 = vmatpush1.xpose.msra.mxu0 0.0
        %1718 = vmatprep.subr.mxu0 0.0
        %1719 = vmatpush1.xpose.msra.mxu0 0.0
        %1720 = vmatprep.subr.mxu0 0.0
        %1721 = vmatpush1.xpose.msra.mxu0 0.0
        %1722 = vmatprep.subr.mxu0 0.0
        %1723 = vmatpush1.xpose.msra.mxu0 0.0
        %1724 = vmatprep.subr.mxu0 0.0
        %1725 = vmatpush1.xpose.msra.mxu0 0.0
        %1726 = vmatprep.subr.mxu0 0.0
        %1727 = vmatpush1.xpose.msra.mxu0 0.0
        %1728 = vmatprep.subr.mxu0 0.0
        %1729 = vmatpush1.xpose.msra.mxu0 0.0
        %1730 = vmatprep.subr.mxu0 0.0
        %1731 = vmatpush1.xpose.msra.mxu0 0.0
        %1732 = vmatprep.subr.mxu0 0.0
        %1733 = vmatpush1.xpose.msra.mxu0 0.0
        %1734 = vmatprep.subr.mxu0 0.0
        %1735 = vmatpush1.xpose.msra.mxu0 0.0
        %1736 = vmatprep.subr.mxu0 0.0
        %1737 = vmatpush1.xpose.msra.mxu0 0.0
        %1738 = vmatprep.subr.mxu0 0.0
        %1739 = vmatpush1.xpose.msra.mxu0 0.0
        %1740 = vmatprep.subr.mxu0 0.0
        %1741 = vmatpush1.xpose.msra.mxu0 0.0
        %1742 = vmatprep.subr.mxu0 0.0
        %1743 = vmatpush1.xpose.msra.mxu0 0.0
        %1744 = vmatprep.subr.mxu0 0.0
        %1745 = vmatpush1.xpose.msra.mxu0 0.0
        %1746 = vmatprep.subr.mxu0 0.0
        %1747 = vmatpush1.xpose.msra.mxu0 0.0
        %1748 = vmatprep.subr.mxu0 0.0
        %1749 = vmatpush1.xpose.msra.mxu0 0.0
        %1750 = vmatprep.subr.mxu0 0.0
        %1751 = vmatpush1.xpose.msra.mxu0 0.0
        %1752 = vmatprep.subr.mxu0 0.0
        %1753 = vmatpush1.xpose.msra.mxu0 0.0
        %1754 = vmatprep.subr.mxu0 0.0
        %1755 = vmatpush1.xpose.msra.mxu0 0.0
        %1756 = vmatprep.subr.mxu0 0.0
        %1757 = vmatpush1.xpose.msra.mxu0 0.0
        %1758 = vmatprep.subr.mxu0 0.0
        %1759 = vmatpush1.xpose.msra.mxu0 0.0
        %1760 = vmatprep.subr.mxu0 0.0
        %1761 = vmatpush1.xpose.msra.mxu0 0.0
        %1762 = vmatprep.subr.mxu0 0.0
        %1763 = vmatpush1.xpose.msra.mxu0 0.0
        %1764 = vmatprep.subr.mxu0 0.0
        %1765 = vmatpush1.xpose.msra.mxu0 0.0
        %1766 = vmatprep.subr.mxu0 0.0
        %1767 = vmatpush1.xpose.msra.mxu0 0.0
        %1768 = vmatprep.subr.mxu0 0.0
        %1769 = vmatpush1.xpose.msra.mxu0 0.0
        %1770 = vmatprep.subr.mxu0 0.0
        %1771 = vmatpush1.xpose.msra.mxu0 0.0
        %1772 = vmatprep.mubr.f32.mxu0 0.0
        %1773 = vmatmul.mubr.f32.gmra.mrb[0].mxu0 %v1703
        %v1774 = vpop.f32.mrb[0].mxu0
        %v1775 = vadd.f32 0.0, %v1774
        %v1776 = vpop.f32.mrb[0].mxu0
        %1777 = vdwg.mxu0
        %v1779 = vsel %vm602, %v912, 0
        %v1782 = vsel %vm602, %v763, 0
        %1784 = vmatprep.subr.mxu0 0.0
        %1785 = vmatpush1.xpose.msra.mxu0 %v1782
        %1786 = vmatprep.subr.mxu0 0.0
        %1787 = vmatpush1.xpose.msra.mxu0 0.0
        %1788 = vmatprep.subr.mxu0 0.0
        %1789 = vmatpush1.xpose.msra.mxu0 0.0
        %1790 = vmatprep.subr.mxu0 0.0
        %1791 = vmatpush1.xpose.msra.mxu0 0.0
        %1792 = vmatprep.subr.mxu0 0.0
        %1793 = vmatpush1.xpose.msra.mxu0 0.0
        %1794 = vmatprep.subr.mxu0 0.0
        %1795 = vmatpush1.xpose.msra.mxu0 0.0
        %1796 = vmatprep.subr.mxu0 0.0
        %1797 = vmatpush1.xpose.msra.mxu0 0.0
        %1798 = vmatprep.subr.mxu0 0.0
        %1799 = vmatpush1.xpose.msra.mxu0 0.0
        %1800 = vmatprep.subr.mxu0 0.0
        %1801 = vmatpush1.xpose.msra.mxu0 0.0
        %1802 = vmatprep.subr.mxu0 0.0
        %1803 = vmatpush1.xpose.msra.mxu0 0.0
        %1804 = vmatprep.subr.mxu0 0.0
        %1805 = vmatpush1.xpose.msra.mxu0 0.0
        %1806 = vmatprep.subr.mxu0 0.0
        %1807 = vmatpush1.xpose.msra.mxu0 0.0
        %1808 = vmatprep.subr.mxu0 0.0
        %1809 = vmatpush1.xpose.msra.mxu0 0.0
        %1810 = vmatprep.subr.mxu0 0.0
        %1811 = vmatpush1.xpose.msra.mxu0 0.0
        %1812 = vmatprep.subr.mxu0 0.0
        %1813 = vmatpush1.xpose.msra.mxu0 0.0
        %1814 = vmatprep.subr.mxu0 0.0
        %1815 = vmatpush1.xpose.msra.mxu0 0.0
        %1816 = vmatprep.subr.mxu0 0.0
        %1817 = vmatpush1.xpose.msra.mxu0 0.0
        %1818 = vmatprep.subr.mxu0 0.0
        %1819 = vmatpush1.xpose.msra.mxu0 0.0
        %1820 = vmatprep.subr.mxu0 0.0
        %1821 = vmatpush1.xpose.msra.mxu0 0.0
        %1822 = vmatprep.subr.mxu0 0.0
        %1823 = vmatpush1.xpose.msra.mxu0 0.0
        %1824 = vmatprep.subr.mxu0 0.0
        %1825 = vmatpush1.xpose.msra.mxu0 0.0
        %1826 = vmatprep.subr.mxu0 0.0
        %1827 = vmatpush1.xpose.msra.mxu0 0.0
        %1828 = vmatprep.subr.mxu0 0.0
        %1829 = vmatpush1.xpose.msra.mxu0 0.0
        %1830 = vmatprep.subr.mxu0 0.0
        %1831 = vmatpush1.xpose.msra.mxu0 0.0
        %1832 = vmatprep.subr.mxu0 0.0
        %1833 = vmatpush1.xpose.msra.mxu0 0.0
        %1834 = vmatprep.subr.mxu0 0.0
        %1835 = vmatpush1.xpose.msra.mxu0 0.0
        %1836 = vmatprep.subr.mxu0 0.0
        %1837 = vmatpush1.xpose.msra.mxu0 0.0
        %1838 = vmatprep.subr.mxu0 0.0
        %1839 = vmatpush1.xpose.msra.mxu0 0.0
        %1840 = vmatprep.subr.mxu0 0.0
        %1841 = vmatpush1.xpose.msra.mxu0 0.0
        %1842 = vmatprep.subr.mxu0 0.0
        %1843 = vmatpush1.xpose.msra.mxu0 0.0
        %1844 = vmatprep.subr.mxu0 0.0
        %1845 = vmatpush1.xpose.msra.mxu0 0.0
        %1846 = vmatprep.subr.mxu0 0.0
        %1847 = vmatpush1.xpose.msra.mxu0 0.0
        %1848 = vmatprep.mubr.f32.mxu0 0.0
        %1849 = vmatmul.mubr.f32.gmra.mrb[0].mxu0 %v1779
        %v1850 = vpop.f32.mrb[0].mxu0
        %v1851 = vadd.f32 0.0, %v1850
        %v1852 = vpop.f32.mrb[0].mxu0
        %1853 = vdwg.mxu0
        %v1855 = vsel %vm602, %v917, 0
        %v1858 = vsel %vm602, %v768, 0
        %1860 = vmatprep.subr.mxu0 0.0
        %1861 = vmatpush1.xpose.msra.mxu0 %v1858
        %1862 = vmatprep.subr.mxu0 0.0
        %1863 = vmatpush1.xpose.msra.mxu0 0.0
        %1864 = vmatprep.subr.mxu0 0.0
        %1865 = vmatpush1.xpose.msra.mxu0 0.0
        %1866 = vmatprep.subr.mxu0 0.0
        %1867 = vmatpush1.xpose.msra.mxu0 0.0
        %1868 = vmatprep.subr.mxu0 0.0
        %1869 = vmatpush1.xpose.msra.mxu0 0.0
        %1870 = vmatprep.subr.mxu0 0.0
        %1871 = vmatpush1.xpose.msra.mxu0 0.0
        %1872 = vmatprep.subr.mxu0 0.0
        %1873 = vmatpush1.xpose.msra.mxu0 0.0
        %1874 = vmatprep.subr.mxu0 0.0
        %1875 = vmatpush1.xpose.msra.mxu0 0.0
        %1876 = vmatprep.subr.mxu0 0.0
        %1877 = vmatpush1.xpose.msra.mxu0 0.0
        %1878 = vmatprep.subr.mxu0 0.0
        %1879 = vmatpush1.xpose.msra.mxu0 0.0
        %1880 = vmatprep.subr.mxu0 0.0
        %1881 = vmatpush1.xpose.msra.mxu0 0.0
        %1882 = vmatprep.subr.mxu0 0.0
        %1883 = vmatpush1.xpose.msra.mxu0 0.0
        %1884 = vmatprep.subr.mxu0 0.0
        %1885 = vmatpush1.xpose.msra.mxu0 0.0
        %1886 = vmatprep.subr.mxu0 0.0
        %1887 = vmatpush1.xpose.msra.mxu0 0.0
        %1888 = vmatprep.subr.mxu0 0.0
        %1889 = vmatpush1.xpose.msra.mxu0 0.0
        %1890 = vmatprep.subr.mxu0 0.0
        %1891 = vmatpush1.xpose.msra.mxu0 0.0
        %1892 = vmatprep.subr.mxu0 0.0
        %1893 = vmatpush1.xpose.msra.mxu0 0.0
        %1894 = vmatprep.subr.mxu0 0.0
        %1895 = vmatpush1.xpose.msra.mxu0 0.0
        %1896 = vmatprep.subr.mxu0 0.0
        %1897 = vmatpush1.xpose.msra.mxu0 0.0
        %1898 = vmatprep.subr.mxu0 0.0
        %1899 = vmatpush1.xpose.msra.mxu0 0.0
        %1900 = vmatprep.subr.mxu0 0.0
        %1901 = vmatpush1.xpose.msra.mxu0 0.0
        %1902 = vmatprep.subr.mxu0 0.0
        %1903 = vmatpush1.xpose.msra.mxu0 0.0
        %1904 = vmatprep.subr.mxu0 0.0
        %1905 = vmatpush1.xpose.msra.mxu0 0.0
        %1906 = vmatprep.subr.mxu0 0.0
        %1907 = vmatpush1.xpose.msra.mxu0 0.0
        %1908 = vmatprep.subr.mxu0 0.0
        %1909 = vmatpush1.xpose.msra.mxu0 0.0
        %1910 = vmatprep.subr.mxu0 0.0
        %1911 = vmatpush1.xpose.msra.mxu0 0.0
        %1912 = vmatprep.subr.mxu0 0.0
        %1913 = vmatpush1.xpose.msra.mxu0 0.0
        %1914 = vmatprep.subr.mxu0 0.0
        %1915 = vmatpush1.xpose.msra.mxu0 0.0
        %1916 = vmatprep.subr.mxu0 0.0
        %1917 = vmatpush1.xpose.msra.mxu0 0.0
        %1918 = vmatprep.subr.mxu0 0.0
        %1919 = vmatpush1.xpose.msra.mxu0 0.0
        %1920 = vmatprep.subr.mxu0 0.0
        %1921 = vmatpush1.xpose.msra.mxu0 0.0
        %1922 = vmatprep.subr.mxu0 0.0
        %1923 = vmatpush1.xpose.msra.mxu0 0.0
        %1924 = vmatprep.mubr.f32.mxu0 0.0
        %1925 = vmatmul.mubr.f32.gmra.mrb[0].mxu0 %v1855
        %v1926 = vpop.f32.mrb[0].mxu0
        %v1927 = vadd.f32 0.0, %v1926
        %v1928 = vpop.f32.mrb[0].mxu0
        %1929 = vdwg.mxu0
        %v1931 = vsel %vm602, %v922, 0
        %v1934 = vsel %vm602, %v773, 0
        %1936 = vmatprep.subr.mxu0 0.0
        %1937 = vmatpush1.xpose.msra.mxu0 %v1934
        %1938 = vmatprep.subr.mxu0 0.0
        %1939 = vmatpush1.xpose.msra.mxu0 0.0
        %1940 = vmatprep.subr.mxu0 0.0
        %1941 = vmatpush1.xpose.msra.mxu0 0.0
        %1942 = vmatprep.subr.mxu0 0.0
        %1943 = vmatpush1.xpose.msra.mxu0 0.0
        %1944 = vmatprep.subr.mxu0 0.0
        %1945 = vmatpush1.xpose.msra.mxu0 0.0
        %1946 = vmatprep.subr.mxu0 0.0
        %1947 = vmatpush1.xpose.msra.mxu0 0.0
        %1948 = vmatprep.subr.mxu0 0.0
        %1949 = vmatpush1.xpose.msra.mxu0 0.0
        %1950 = vmatprep.subr.mxu0 0.0
        %1951 = vmatpush1.xpose.msra.mxu0 0.0
        %1952 = vmatprep.subr.mxu0 0.0
        %1953 = vmatpush1.xpose.msra.mxu0 0.0
        %1954 = vmatprep.subr.mxu0 0.0
        %1955 = vmatpush1.xpose.msra.mxu0 0.0
        %1956 = vmatprep.subr.mxu0 0.0
        %1957 = vmatpush1.xpose.msra.mxu0 0.0
        %1958 = vmatprep.subr.mxu0 0.0
        %1959 = vmatpush1.xpose.msra.mxu0 0.0
        %1960 = vmatprep.subr.mxu0 0.0
        %1961 = vmatpush1.xpose.msra.mxu0 0.0
        %1962 = vmatprep.subr.mxu0 0.0
        %1963 = vmatpush1.xpose.msra.mxu0 0.0
        %1964 = vmatprep.subr.mxu0 0.0
        %1965 = vmatpush1.xpose.msra.mxu0 0.0
        %1966 = vmatprep.subr.mxu0 0.0
        %1967 = vmatpush1.xpose.msra.mxu0 0.0
        %1968 = vmatprep.subr.mxu0 0.0
        %1969 = vmatpush1.xpose.msra.mxu0 0.0
        %1970 = vmatprep.subr.mxu0 0.0
        %1971 = vmatpush1.xpose.msra.mxu0 0.0
        %1972 = vmatprep.subr.mxu0 0.0
        %1973 = vmatpush1.xpose.msra.mxu0 0.0
        %1974 = vmatprep.subr.mxu0 0.0
        %1975 = vmatpush1.xpose.msra.mxu0 0.0
        %1976 = vmatprep.subr.mxu0 0.0
        %1977 = vmatpush1.xpose.msra.mxu0 0.0
        %1978 = vmatprep.subr.mxu0 0.0
        %1979 = vmatpush1.xpose.msra.mxu0 0.0
        %1980 = vmatprep.subr.mxu0 0.0
        %1981 = vmatpush1.xpose.msra.mxu0 0.0
        %1982 = vmatprep.subr.mxu0 0.0
        %1983 = vmatpush1.xpose.msra.mxu0 0.0
        %1984 = vmatprep.subr.mxu0 0.0
        %1985 = vmatpush1.xpose.msra.mxu0 0.0
        %1986 = vmatprep.subr.mxu0 0.0
        %1987 = vmatpush1.xpose.msra.mxu0 0.0
        %1988 = vmatprep.subr.mxu0 0.0
        %1989 = vmatpush1.xpose.msra.mxu0 0.0
        %1990 = vmatprep.subr.mxu0 0.0
        %1991 = vmatpush1.xpose.msra.mxu0 0.0
        %1992 = vmatprep.subr.mxu0 0.0
        %1993 = vmatpush1.xpose.msra.mxu0 0.0
        %1994 = vmatprep.subr.mxu0 0.0
        %1995 = vmatpush1.xpose.msra.mxu0 0.0
        %1996 = vmatprep.subr.mxu0 0.0
        %1997 = vmatpush1.xpose.msra.mxu0 0.0
        %1998 = vmatprep.subr.mxu0 0.0
        %1999 = vmatpush1.xpose.msra.mxu0 0.0
        %2000 = vmatprep.mubr.f32.mxu0 0.0
        %2001 = vmatmul.mubr.f32.gmra.mrb[0].mxu0 %v1931
        %v2002 = vpop.f32.mrb[0].mxu0
        %v2003 = vadd.f32 0.0, %v2002
        %v2004 = vpop.f32.mrb[0].mxu0
        %2005 = vdwg.mxu0
        %v2007 = vsel %vm602, %v927, 0
        %v2010 = vsel %vm602, %v778, 0
        %2012 = vmatprep.subr.mxu0 0.0
        %2013 = vmatpush1.xpose.msra.mxu0 %v2010
        %2014 = vmatprep.subr.mxu0 0.0
        %2015 = vmatpush1.xpose.msra.mxu0 0.0
        %2016 = vmatprep.subr.mxu0 0.0
        %2017 = vmatpush1.xpose.msra.mxu0 0.0
        %2018 = vmatprep.subr.mxu0 0.0
        %2019 = vmatpush1.xpose.msra.mxu0 0.0
        %2020 = vmatprep.subr.mxu0 0.0
        %2021 = vmatpush1.xpose.msra.mxu0 0.0
        %2022 = vmatprep.subr.mxu0 0.0
        %2023 = vmatpush1.xpose.msra.mxu0 0.0
        %2024 = vmatprep.subr.mxu0 0.0
        %2025 = vmatpush1.xpose.msra.mxu0 0.0
        %2026 = vmatprep.subr.mxu0 0.0
        %2027 = vmatpush1.xpose.msra.mxu0 0.0
        %2028 = vmatprep.subr.mxu0 0.0
        %2029 = vmatpush1.xpose.msra.mxu0 0.0
        %2030 = vmatprep.subr.mxu0 0.0
        %2031 = vmatpush1.xpose.msra.mxu0 0.0
        %2032 = vmatprep.subr.mxu0 0.0
        %2033 = vmatpush1.xpose.msra.mxu0 0.0
        %2034 = vmatprep.subr.mxu0 0.0
        %2035 = vmatpush1.xpose.msra.mxu0 0.0
        %2036 = vmatprep.subr.mxu0 0.0
        %2037 = vmatpush1.xpose.msra.mxu0 0.0
        %2038 = vmatprep.subr.mxu0 0.0
        %2039 = vmatpush1.xpose.msra.mxu0 0.0
        %2040 = vmatprep.subr.mxu0 0.0
        %2041 = vmatpush1.xpose.msra.mxu0 0.0
        %2042 = vmatprep.subr.mxu0 0.0
        %2043 = vmatpush1.xpose.msra.mxu0 0.0
        %2044 = vmatprep.subr.mxu0 0.0
        %2045 = vmatpush1.xpose.msra.mxu0 0.0
        %2046 = vmatprep.subr.mxu0 0.0
        %2047 = vmatpush1.xpose.msra.mxu0 0.0
        %2048 = vmatprep.subr.mxu0 0.0
        %2049 = vmatpush1.xpose.msra.mxu0 0.0
        %2050 = vmatprep.subr.mxu0 0.0
        %2051 = vmatpush1.xpose.msra.mxu0 0.0
        %2052 = vmatprep.subr.mxu0 0.0
        %2053 = vmatpush1.xpose.msra.mxu0 0.0
        %2054 = vmatprep.subr.mxu0 0.0
        %2055 = vmatpush1.xpose.msra.mxu0 0.0
        %2056 = vmatprep.subr.mxu0 0.0
        %2057 = vmatpush1.xpose.msra.mxu0 0.0
        %2058 = vmatprep.subr.mxu0 0.0
        %2059 = vmatpush1.xpose.msra.mxu0 0.0
        %2060 = vmatprep.subr.mxu0 0.0
        %2061 = vmatpush1.xpose.msra.mxu0 0.0
        %2062 = vmatprep.subr.mxu0 0.0
        %2063 = vmatpush1.xpose.msra.mxu0 0.0
        %2064 = vmatprep.subr.mxu0 0.0
        %2065 = vmatpush1.xpose.msra.mxu0 0.0
        %2066 = vmatprep.subr.mxu0 0.0
        %2067 = vmatpush1.xpose.msra.mxu0 0.0
        %2068 = vmatprep.subr.mxu0 0.0
        %2069 = vmatpush1.xpose.msra.mxu0 0.0
        %2070 = vmatprep.subr.mxu0 0.0
        %2071 = vmatpush1.xpose.msra.mxu0 0.0
        %2072 = vmatprep.subr.mxu0 0.0
        %2073 = vmatpush1.xpose.msra.mxu0 0.0
        %2074 = vmatprep.subr.mxu0 0.0
        %2075 = vmatpush1.xpose.msra.mxu0 0.0
        %2076 = vmatprep.mubr.f32.mxu0 0.0
        %2077 = vmatmul.mubr.f32.gmra.mrb[0].mxu0 %v2007
        %v2078 = vpop.f32.mrb[0].mxu0
        %v2079 = vadd.f32 0.0, %v2078
        %v2080 = vpop.f32.mrb[0].mxu0
        %2081 = vdwg.mxu0
        %v2083 = vsel %vm602, %v932, 0
        %v2086 = vsel %vm602, %v783, 0
        %2088 = vmatprep.subr.mxu0 0.0
        %2089 = vmatpush1.xpose.msra.mxu0 %v2086
        %2090 = vmatprep.subr.mxu0 0.0
        %2091 = vmatpush1.xpose.msra.mxu0 0.0
        %2092 = vmatprep.subr.mxu0 0.0
        %2093 = vmatpush1.xpose.msra.mxu0 0.0
        %2094 = vmatprep.subr.mxu0 0.0
        %2095 = vmatpush1.xpose.msra.mxu0 0.0
        %2096 = vmatprep.subr.mxu0 0.0
        %2097 = vmatpush1.xpose.msra.mxu0 0.0
        %2098 = vmatprep.subr.mxu0 0.0
        %2099 = vmatpush1.xpose.msra.mxu0 0.0
        %2100 = vmatprep.subr.mxu0 0.0
        %2101 = vmatpush1.xpose.msra.mxu0 0.0
        %2102 = vmatprep.subr.mxu0 0.0
        %2103 = vmatpush1.xpose.msra.mxu0 0.0
        %2104 = vmatprep.subr.mxu0 0.0
        %2105 = vmatpush1.xpose.msra.mxu0 0.0
        %2106 = vmatprep.subr.mxu0 0.0
        %2107 = vmatpush1.xpose.msra.mxu0 0.0
        %2108 = vmatprep.subr.mxu0 0.0
        %2109 = vmatpush1.xpose.msra.mxu0 0.0
        %2110 = vmatprep.subr.mxu0 0.0
        %2111 = vmatpush1.xpose.msra.mxu0 0.0
        %2112 = vmatprep.subr.mxu0 0.0
        %2113 = vmatpush1.xpose.msra.mxu0 0.0
        %2114 = vmatprep.subr.mxu0 0.0
        %2115 = vmatpush1.xpose.msra.mxu0 0.0
        %2116 = vmatprep.subr.mxu0 0.0
        %2117 = vmatpush1.xpose.msra.mxu0 0.0
        %2118 = vmatprep.subr.mxu0 0.0
        %2119 = vmatpush1.xpose.msra.mxu0 0.0
        %2120 = vmatprep.subr.mxu0 0.0
        %2121 = vmatpush1.xpose.msra.mxu0 0.0
        %2122 = vmatprep.subr.mxu0 0.0
        %2123 = vmatpush1.xpose.msra.mxu0 0.0
        %2124 = vmatprep.subr.mxu0 0.0
        %2125 = vmatpush1.xpose.msra.mxu0 0.0
        %2126 = vmatprep.subr.mxu0 0.0
        %2127 = vmatpush1.xpose.msra.mxu0 0.0
        %2128 = vmatprep.subr.mxu0 0.0
        %2129 = vmatpush1.xpose.msra.mxu0 0.0
        %2130 = vmatprep.subr.mxu0 0.0
        %2131 = vmatpush1.xpose.msra.mxu0 0.0
        %2132 = vmatprep.subr.mxu0 0.0
        %2133 = vmatpush1.xpose.msra.mxu0 0.0
        %2134 = vmatprep.subr.mxu0 0.0
        %2135 = vmatpush1.xpose.msra.mxu0 0.0
        %2136 = vmatprep.subr.mxu0 0.0
        %2137 = vmatpush1.xpose.msra.mxu0 0.0
        %2138 = vmatprep.subr.mxu0 0.0
        %2139 = vmatpush1.xpose.msra.mxu0 0.0
        %2140 = vmatprep.subr.mxu0 0.0
        %2141 = vmatpush1.xpose.msra.mxu0 0.0
        %2142 = vmatprep.subr.mxu0 0.0
        %2143 = vmatpush1.xpose.msra.mxu0 0.0
        %2144 = vmatprep.subr.mxu0 0.0
        %2145 = vmatpush1.xpose.msra.mxu0 0.0
        %2146 = vmatprep.subr.mxu0 0.0
        %2147 = vmatpush1.xpose.msra.mxu0 0.0
        %2148 = vmatprep.subr.mxu0 0.0
        %2149 = vmatpush1.xpose.msra.mxu0 0.0
        %2150 = vmatprep.subr.mxu0 0.0
        %2151 = vmatpush1.xpose.msra.mxu0 0.0
        %2152 = vmatprep.mubr.f32.mxu0 0.0
        %2153 = vmatmul.mubr.f32.gmra.mrb[0].mxu0 %v2083
        %v2154 = vpop.f32.mrb[0].mxu0
        %v2155 = vadd.f32 0.0, %v2154
        %v2156 = vpop.f32.mrb[0].mxu0
        %2157 = vdwg.mxu0
        %v2159 = vsel %vm602, %v937, 0
        %v2162 = vsel %vm602, %v788, 0
        %2164 = vmatprep.subr.mxu0 0.0
        %2165 = vmatpush1.xpose.msra.mxu0 %v2162
        %2166 = vmatprep.subr.mxu0 0.0
        %2167 = vmatpush1.xpose.msra.mxu0 0.0
        %2168 = vmatprep.subr.mxu0 0.0
        %2169 = vmatpush1.xpose.msra.mxu0 0.0
        %2170 = vmatprep.subr.mxu0 0.0
        %2171 = vmatpush1.xpose.msra.mxu0 0.0
        %2172 = vmatprep.subr.mxu0 0.0
        %2173 = vmatpush1.xpose.msra.mxu0 0.0
        %2174 = vmatprep.subr.mxu0 0.0
        %2175 = vmatpush1.xpose.msra.mxu0 0.0
        %2176 = vmatprep.subr.mxu0 0.0
        %2177 = vmatpush1.xpose.msra.mxu0 0.0
        %2178 = vmatprep.subr.mxu0 0.0
        %2179 = vmatpush1.xpose.msra.mxu0 0.0
        %2180 = vmatprep.subr.mxu0 0.0
        %2181 = vmatpush1.xpose.msra.mxu0 0.0
        %2182 = vmatprep.subr.mxu0 0.0
        %2183 = vmatpush1.xpose.msra.mxu0 0.0
        %2184 = vmatprep.subr.mxu0 0.0
        %2185 = vmatpush1.xpose.msra.mxu0 0.0
        %2186 = vmatprep.subr.mxu0 0.0
        %2187 = vmatpush1.xpose.msra.mxu0 0.0
        %2188 = vmatprep.subr.mxu0 0.0
        %2189 = vmatpush1.xpose.msra.mxu0 0.0
        %2190 = vmatprep.subr.mxu0 0.0
        %2191 = vmatpush1.xpose.msra.mxu0 0.0
        %2192 = vmatprep.subr.mxu0 0.0
        %2193 = vmatpush1.xpose.msra.mxu0 0.0
        %2194 = vmatprep.subr.mxu0 0.0
        %2195 = vmatpush1.xpose.msra.mxu0 0.0
        %2196 = vmatprep.subr.mxu0 0.0
        %2197 = vmatpush1.xpose.msra.mxu0 0.0
        %2198 = vmatprep.subr.mxu0 0.0
        %2199 = vmatpush1.xpose.msra.mxu0 0.0
        %2200 = vmatprep.subr.mxu0 0.0
        %2201 = vmatpush1.xpose.msra.mxu0 0.0
        %2202 = vmatprep.subr.mxu0 0.0
        %2203 = vmatpush1.xpose.msra.mxu0 0.0
        %2204 = vmatprep.subr.mxu0 0.0
        %2205 = vmatpush1.xpose.msra.mxu0 0.0
        %2206 = vmatprep.subr.mxu0 0.0
        %2207 = vmatpush1.xpose.msra.mxu0 0.0
        %2208 = vmatprep.subr.mxu0 0.0
        %2209 = vmatpush1.xpose.msra.mxu0 0.0
        %2210 = vmatprep.subr.mxu0 0.0
        %2211 = vmatpush1.xpose.msra.mxu0 0.0
        %2212 = vmatprep.subr.mxu0 0.0
        %2213 = vmatpush1.xpose.msra.mxu0 0.0
        %2214 = vmatprep.subr.mxu0 0.0
        %2215 = vmatpush1.xpose.msra.mxu0 0.0
        %2216 = vmatprep.subr.mxu0 0.0
        %2217 = vmatpush1.xpose.msra.mxu0 0.0
        %2218 = vmatprep.subr.mxu0 0.0
        %2219 = vmatpush1.xpose.msra.mxu0 0.0
        %2220 = vmatprep.subr.mxu0 0.0
        %2221 = vmatpush1.xpose.msra.mxu0 0.0
        %2222 = vmatprep.subr.mxu0 0.0
        %2223 = vmatpush1.xpose.msra.mxu0 0.0
        %2224 = vmatprep.subr.mxu0 0.0
        %2225 = vmatpush1.xpose.msra.mxu0 0.0
        %2226 = vmatprep.subr.mxu0 0.0
        %2227 = vmatpush1.xpose.msra.mxu0 0.0
        %2228 = vmatprep.mubr.f32.mxu0 0.0
        %2229 = vmatmul.mubr.f32.gmra.mrb[0].mxu0 %v2159
        %v2230 = vpop.f32.mrb[0].mxu0
        %v2231 = vadd.f32 0.0, %v2230
        %v2232 = vpop.f32.mrb[0].mxu0
        %2233 = vdwg.mxu0
        %v2235 = vsel %vm602, %v942, 0
        %v2238 = vsel %vm602, %v793, 0
        %2240 = vmatprep.subr.mxu0 0.0
        %2241 = vmatpush1.xpose.msra.mxu0 %v2238
        %2242 = vmatprep.subr.mxu0 0.0
        %2243 = vmatpush1.xpose.msra.mxu0 0.0
        %2244 = vmatprep.subr.mxu0 0.0
        %2245 = vmatpush1.xpose.msra.mxu0 0.0
        %2246 = vmatprep.subr.mxu0 0.0
        %2247 = vmatpush1.xpose.msra.mxu0 0.0
        %2248 = vmatprep.subr.mxu0 0.0
        %2249 = vmatpush1.xpose.msra.mxu0 0.0
        %2250 = vmatprep.subr.mxu0 0.0
        %2251 = vmatpush1.xpose.msra.mxu0 0.0
        %2252 = vmatprep.subr.mxu0 0.0
        %2253 = vmatpush1.xpose.msra.mxu0 0.0
        %2254 = vmatprep.subr.mxu0 0.0
        %2255 = vmatpush1.xpose.msra.mxu0 0.0
        %2256 = vmatprep.subr.mxu0 0.0
        %2257 = vmatpush1.xpose.msra.mxu0 0.0
        %2258 = vmatprep.subr.mxu0 0.0
        %2259 = vmatpush1.xpose.msra.mxu0 0.0
        %2260 = vmatprep.subr.mxu0 0.0
        %2261 = vmatpush1.xpose.msra.mxu0 0.0
        %2262 = vmatprep.subr.mxu0 0.0
        %2263 = vmatpush1.xpose.msra.mxu0 0.0
        %2264 = vmatprep.subr.mxu0 0.0
        %2265 = vmatpush1.xpose.msra.mxu0 0.0
        %2266 = vmatprep.subr.mxu0 0.0
        %2267 = vmatpush1.xpose.msra.mxu0 0.0
        %2268 = vmatprep.subr.mxu0 0.0
        %2269 = vmatpush1.xpose.msra.mxu0 0.0
        %2270 = vmatprep.subr.mxu0 0.0
        %2271 = vmatpush1.xpose.msra.mxu0 0.0
        %2272 = vmatprep.subr.mxu0 0.0
        %2273 = vmatpush1.xpose.msra.mxu0 0.0
        %2274 = vmatprep.subr.mxu0 0.0
        %2275 = vmatpush1.xpose.msra.mxu0 0.0
        %2276 = vmatprep.subr.mxu0 0.0
        %2277 = vmatpush1.xpose.msra.mxu0 0.0
        %2278 = vmatprep.subr.mxu0 0.0
        %2279 = vmatpush1.xpose.msra.mxu0 0.0
        %2280 = vmatprep.subr.mxu0 0.0
        %2281 = vmatpush1.xpose.msra.mxu0 0.0
        %2282 = vmatprep.subr.mxu0 0.0
        %2283 = vmatpush1.xpose.msra.mxu0 0.0
        %2284 = vmatprep.subr.mxu0 0.0
        %2285 = vmatpush1.xpose.msra.mxu0 0.0
        %2286 = vmatprep.subr.mxu0 0.0
        %2287 = vmatpush1.xpose.msra.mxu0 0.0
        %2288 = vmatprep.subr.mxu0 0.0
        %2289 = vmatpush1.xpose.msra.mxu0 0.0
        %2290 = vmatprep.subr.mxu0 0.0
        %2291 = vmatpush1.xpose.msra.mxu0 0.0
        %2292 = vmatprep.subr.mxu0 0.0
        %2293 = vmatpush1.xpose.msra.mxu0 0.0
        %2294 = vmatprep.subr.mxu0 0.0
        %2295 = vmatpush1.xpose.msra.mxu0 0.0
        %2296 = vmatprep.subr.mxu0 0.0
        %2297 = vmatpush1.xpose.msra.mxu0 0.0
        %2298 = vmatprep.subr.mxu0 0.0
        %2299 = vmatpush1.xpose.msra.mxu0 0.0
        %2300 = vmatprep.subr.mxu0 0.0
        %2301 = vmatpush1.xpose.msra.mxu0 0.0
        %2302 = vmatprep.subr.mxu0 0.0
        %2303 = vmatpush1.xpose.msra.mxu0 0.0
        %2304 = vmatprep.mubr.f32.mxu0 0.0
        %2305 = vmatmul.mubr.f32.gmra.mrb[0].mxu0 %v2235
        %v2306 = vpop.f32.mrb[0].mxu0
        %v2307 = vadd.f32 0.0, %v2306
        %v2308 = vpop.f32.mrb[0].mxu0
        %2309 = vdwg.mxu0
        %v2310 = vmul.f32 %v1167, 0.17677669
        %v2311 = vmul.f32 %v1243, 0.17677669
        %v2312 = vmul.f32 %v1319, 0.17677669
        %v2313 = vmul.f32 %v1395, 0.17677669
        %v2314 = vmul.f32 %v1471, 0.17677669
        %v2315 = vmul.f32 %v1547, 0.17677669
        %v2316 = vmul.f32 %v1623, 0.17677669
        %v2317 = vmul.f32 %v1699, 0.17677669
        %v2318 = vmul.f32 %v1775, 0.17677669
        %v2319 = vmul.f32 %v1851, 0.17677669
        %v2320 = vmul.f32 %v1927, 0.17677669
        %v2321 = vmul.f32 %v2003, 0.17677669
        %v2322 = vmul.f32 %v2079, 0.17677669
        %v2323 = vmul.f32 %v2155, 0.17677669
        %v2324 = vmul.f32 %v2231, 0.17677669
        %v2325 = vmul.f32 %v2307, 0.17677669
        %v2326 = vlaneseq
        %v2327 = vshrl.u32 %v2326, 7
        %vm2328 = vcmp.gt.s32.totalorder %v324, %v2327
        %v2329 = vsel %vm2328, -inf, %v2310
        %v2330 = vsel %vm2328, -inf, %v2311
        %v2331 = vsel %vm2328, -inf, %v2312
        %v2332 = vsel %vm2328, -inf, %v2313
        %v2333 = vsel %vm2328, -inf, %v2314
        %v2334 = vsel %vm2328, -inf, %v2315
        %v2335 = vsel %vm2328, -inf, %v2316
        %v2336 = vsel %vm2328, -inf, %v2317
        %v2337 = vsel %vm2328, -inf, %v2318
        %v2338 = vsel %vm2328, -inf, %v2319
        %v2339 = vsel %vm2328, -inf, %v2320
        %v2340 = vsel %vm2328, -inf, %v2321
        %v2341 = vsel %vm2328, -inf, %v2322
        %v2342 = vsel %vm2328, -inf, %v2323
        %v2343 = vsel %vm2328, -inf, %v2324
        %v2344 = vsel %vm2328, -inf, %v2325
        %vm2345 = vcmask 64512
        %v2346 = vsel %vm2345, %v2329, -inf
        %v2347 = vrot.slane %v2346, 4
        %v2348 = vmax.f32 %v2346, %v2347
        %v2349 = vrot.slane %v2348, 2
        %v2350 = vmax.f32 %v2348, %v2349
        %v2351 = vrot.slane %v2350, 1
        %v2352 = vmax.f32 %v2350, %v2351
        %v2353 = vsel %vm2345, %v2330, -inf
        %v2354 = vrot.slane %v2353, 4
        %v2355 = vmax.f32 %v2353, %v2354
        %v2356 = vrot.slane %v2355, 2
        %v2357 = vmax.f32 %v2355, %v2356
        %v2358 = vrot.slane %v2357, 1
        %v2359 = vmax.f32 %v2357, %v2358
        %v2360 = vsel %vm2345, %v2331, -inf
        %v2361 = vrot.slane %v2360, 4
        %v2362 = vmax.f32 %v2360, %v2361
        %v2363 = vrot.slane %v2362, 2
        %v2364 = vmax.f32 %v2362, %v2363
        %v2365 = vrot.slane %v2364, 1
        %v2366 = vmax.f32 %v2364, %v2365
        %v2367 = vsel %vm2345, %v2332, -inf
        %v2368 = vrot.slane %v2367, 4
        %v2369 = vmax.f32 %v2367, %v2368
        %v2370 = vrot.slane %v2369, 2
        %v2371 = vmax.f32 %v2369, %v2370
        %v2372 = vrot.slane %v2371, 1
        %v2373 = vmax.f32 %v2371, %v2372
        %v2374 = vsel %vm2345, %v2333, -inf
        %v2375 = vrot.slane %v2374, 4
        %v2376 = vmax.f32 %v2374, %v2375
        %v2377 = vrot.slane %v2376, 2
        %v2378 = vmax.f32 %v2376, %v2377
        %v2379 = vrot.slane %v2378, 1
        %v2380 = vmax.f32 %v2378, %v2379
        %v2381 = vsel %vm2345, %v2334, -inf
        %v2382 = vrot.slane %v2381, 4
        %v2383 = vmax.f32 %v2381, %v2382
        %v2384 = vrot.slane %v2383, 2
        %v2385 = vmax.f32 %v2383, %v2384
        %v2386 = vrot.slane %v2385, 1
        %v2387 = vmax.f32 %v2385, %v2386
        %v2388 = vsel %vm2345, %v2335, -inf
        %v2389 = vrot.slane %v2388, 4
        %v2390 = vmax.f32 %v2388, %v2389
        %v2391 = vrot.slane %v2390, 2
        %v2392 = vmax.f32 %v2390, %v2391
        %v2393 = vrot.slane %v2392, 1
        %v2394 = vmax.f32 %v2392, %v2393
        %v2395 = vsel %vm2345, %v2336, -inf
        %v2396 = vrot.slane %v2395, 4
        %v2397 = vmax.f32 %v2395, %v2396
        %v2398 = vrot.slane %v2397, 2
        %v2399 = vmax.f32 %v2397, %v2398
        %v2400 = vrot.slane %v2399, 1
        %v2401 = vmax.f32 %v2399, %v2400
        %v2402 = vsel %vm2345, %v2337, -inf
        %v2403 = vrot.slane %v2402, 4
        %v2404 = vmax.f32 %v2402, %v2403
        %v2405 = vrot.slane %v2404, 2
        %v2406 = vmax.f32 %v2404, %v2405
        %v2407 = vrot.slane %v2406, 1
        %v2408 = vmax.f32 %v2406, %v2407
        %v2409 = vsel %vm2345, %v2338, -inf
        %v2410 = vrot.slane %v2409, 4
        %v2411 = vmax.f32 %v2409, %v2410
        %v2412 = vrot.slane %v2411, 2
        %v2413 = vmax.f32 %v2411, %v2412
        %v2414 = vrot.slane %v2413, 1
        %v2415 = vmax.f32 %v2413, %v2414
        %v2416 = vsel %vm2345, %v2339, -inf
        %v2417 = vrot.slane %v2416, 4
        %v2418 = vmax.f32 %v2416, %v2417
        %v2419 = vrot.slane %v2418, 2
        %v2420 = vmax.f32 %v2418, %v2419
        %v2421 = vrot.slane %v2420, 1
        %v2422 = vmax.f32 %v2420, %v2421
        %v2423 = vsel %vm2345, %v2340, -inf
        %v2424 = vrot.slane %v2423, 4
        %v2425 = vmax.f32 %v2423, %v2424
        %v2426 = vrot.slane %v2425, 2
        %v2427 = vmax.f32 %v2425, %v2426
        %v2428 = vrot.slane %v2427, 1
        %v2429 = vmax.f32 %v2427, %v2428
        %v2430 = vsel %vm2345, %v2341, -inf
        %v2431 = vrot.slane %v2430, 4
        %v2432 = vmax.f32 %v2430, %v2431
        %v2433 = vrot.slane %v2432, 2
        %v2434 = vmax.f32 %v2432, %v2433
        %v2435 = vrot.slane %v2434, 1
        %v2436 = vmax.f32 %v2434, %v2435
        %v2437 = vsel %vm2345, %v2342, -inf
        %v2438 = vrot.slane %v2437, 4
        %v2439 = vmax.f32 %v2437, %v2438
        %v2440 = vrot.slane %v2439, 2
        %v2441 = vmax.f32 %v2439, %v2440
        %v2442 = vrot.slane %v2441, 1
        %v2443 = vmax.f32 %v2441, %v2442
        %v2444 = vsel %vm2345, %v2343, -inf
        %v2445 = vrot.slane %v2444, 4
        %v2446 = vmax.f32 %v2444, %v2445
        %v2447 = vrot.slane %v2446, 2
        %v2448 = vmax.f32 %v2446, %v2447
        %v2449 = vrot.slane %v2448, 1
        %v2450 = vmax.f32 %v2448, %v2449
        %v2451 = vsel %vm2345, %v2344, -inf
        %v2452 = vrot.slane %v2451, 4
        %v2453 = vmax.f32 %v2451, %v2452
        %v2454 = vrot.slane %v2453, 2
        %v2455 = vmax.f32 %v2453, %v2454
        %v2456 = vrot.slane %v2455, 1
        %v2457 = vmax.f32 %v2455, %v2456
        %v2458 = vsub.f32 %v2329, %v2352
        %v2459 = vsub.f32 %v2330, %v2359
        %v2460 = vsub.f32 %v2331, %v2366
        %v2461 = vsub.f32 %v2332, %v2373
        %v2462 = vsub.f32 %v2333, %v2380
        %v2463 = vsub.f32 %v2334, %v2387
        %v2464 = vsub.f32 %v2335, %v2394
        %v2465 = vsub.f32 %v2336, %v2401
        %v2466 = vsub.f32 %v2337, %v2408
        %v2467 = vsub.f32 %v2338, %v2415
        %v2468 = vsub.f32 %v2339, %v2422
        %v2469 = vsub.f32 %v2340, %v2429
        %v2470 = vsub.f32 %v2341, %v2436
        %v2471 = vsub.f32 %v2342, %v2443
        %v2472 = vsub.f32 %v2343, %v2450
        %v2473 = vsub.f32 %v2344, %v2457
        %v2474 = vmul.f32 %v2458, 1.442695
        %v2475 = vpow.pop %v2474
        %v2476 = vmul.f32 %v2459, 1.442695
        %v2477 = vpow.pop %v2476
        %v2478 = vmul.f32 %v2460, 1.442695
        %v2479 = vpow.pop %v2478
        %v2480 = vmul.f32 %v2461, 1.442695
        %v2481 = vpow.pop %v2480
        %v2482 = vmul.f32 %v2462, 1.442695
        %v2483 = vpow.pop %v2482
        %v2484 = vmul.f32 %v2463, 1.442695
        %v2485 = vpow.pop %v2484
        %v2486 = vmul.f32 %v2464, 1.442695
        %v2487 = vpow.pop %v2486
        %v2488 = vmul.f32 %v2465, 1.442695
        %v2489 = vpow.pop %v2488
        %v2490 = vmul.f32 %v2466, 1.442695
        %v2491 = vpow.pop %v2490
        %v2492 = vmul.f32 %v2467, 1.442695
        %v2493 = vpow.pop %v2492
        %v2494 = vmul.f32 %v2468, 1.442695
        %v2495 = vpow.pop %v2494
        %v2496 = vmul.f32 %v2469, 1.442695
        %v2497 = vpow.pop %v2496
        %v2498 = vmul.f32 %v2470, 1.442695
        %v2499 = vpow.pop %v2498
        %v2500 = vmul.f32 %v2471, 1.442695
        %v2501 = vpow.pop %v2500
        %v2502 = vmul.f32 %v2472, 1.442695
        %v2503 = vpow.pop %v2502
        %v2504 = vmul.f32 %v2473, 1.442695
        %v2505 = vpow.pop %v2504
        %v2506 = vsel %vm2345, %v2475, 0.0
        %v2507 = vrot.slane %v2506, 4
        %v2508 = vadd.f32 %v2506, %v2507
        %v2509 = vrot.slane %v2508, 2
        %v2510 = vadd.f32 %v2508, %v2509
        %v2511 = vrot.slane %v2510, 1
        %v2512 = vadd.f32 %v2510, %v2511
        %v2513 = vsel %vm2345, %v2477, 0.0
        %v2514 = vrot.slane %v2513, 4
        %v2515 = vadd.f32 %v2513, %v2514
        %v2516 = vrot.slane %v2515, 2
        %v2517 = vadd.f32 %v2515, %v2516
        %v2518 = vrot.slane %v2517, 1
        %v2519 = vadd.f32 %v2517, %v2518
        %v2520 = vsel %vm2345, %v2479, 0.0
        %v2521 = vrot.slane %v2520, 4
        %v2522 = vadd.f32 %v2520, %v2521
        %v2523 = vrot.slane %v2522, 2
        %v2524 = vadd.f32 %v2522, %v2523
        %v2525 = vrot.slane %v2524, 1
        %v2526 = vadd.f32 %v2524, %v2525
        %v2527 = vsel %vm2345, %v2481, 0.0
        %v2528 = vrot.slane %v2527, 4
        %v2529 = vadd.f32 %v2527, %v2528
        %v2530 = vrot.slane %v2529, 2
        %v2531 = vadd.f32 %v2529, %v2530
        %v2532 = vrot.slane %v2531, 1
        %v2533 = vadd.f32 %v2531, %v2532
        %v2534 = vsel %vm2345, %v2483, 0.0
        %v2535 = vrot.slane %v2534, 4
        %v2536 = vadd.f32 %v2534, %v2535
        %v2537 = vrot.slane %v2536, 2
        %v2538 = vadd.f32 %v2536, %v2537
        %v2539 = vrot.slane %v2538, 1
        %v2540 = vadd.f32 %v2538, %v2539
        %v2541 = vsel %vm2345, %v2485, 0.0
        %v2542 = vrot.slane %v2541, 4
        %v2543 = vadd.f32 %v2541, %v2542
        %v2544 = vrot.slane %v2543, 2
        %v2545 = vadd.f32 %v2543, %v2544
        %v2546 = vrot.slane %v2545, 1
        %v2547 = vadd.f32 %v2545, %v2546
        %v2548 = vsel %vm2345, %v2487, 0.0
        %v2549 = vrot.slane %v2548, 4
        %v2550 = vadd.f32 %v2548, %v2549
        %v2551 = vrot.slane %v2550, 2
        %v2552 = vadd.f32 %v2550, %v2551
        %v2553 = vrot.slane %v2552, 1
        %v2554 = vadd.f32 %v2552, %v2553
        %v2555 = vsel %vm2345, %v2489, 0.0
        %v2556 = vrot.slane %v2555, 4
        %v2557 = vadd.f32 %v2555, %v2556
        %v2558 = vrot.slane %v2557, 2
        %v2559 = vadd.f32 %v2557, %v2558
        %v2560 = vrot.slane %v2559, 1
        %v2561 = vadd.f32 %v2559, %v2560
        %v2562 = vsel %vm2345, %v2491, 0.0
        %v2563 = vrot.slane %v2562, 4
        %v2564 = vadd.f32 %v2562, %v2563
        %v2565 = vrot.slane %v2564, 2
        %v2566 = vadd.f32 %v2564, %v2565
        %v2567 = vrot.slane %v2566, 1
        %v2568 = vadd.f32 %v2566, %v2567
        %v2569 = vsel %vm2345, %v2493, 0.0
        %v2570 = vrot.slane %v2569, 4
        %v2571 = vadd.f32 %v2569, %v2570
        %v2572 = vrot.slane %v2571, 2
        %v2573 = vadd.f32 %v2571, %v2572
        %v2574 = vrot.slane %v2573, 1
        %v2575 = vadd.f32 %v2573, %v2574
        %v2576 = vsel %vm2345, %v2495, 0.0
        %v2577 = vrot.slane %v2576, 4
        %v2578 = vadd.f32 %v2576, %v2577
        %v2579 = vrot.slane %v2578, 2
        %v2580 = vadd.f32 %v2578, %v2579
        %v2581 = vrot.slane %v2580, 1
        %v2582 = vadd.f32 %v2580, %v2581
        %v2583 = vsel %vm2345, %v2497, 0.0
        %v2584 = vrot.slane %v2583, 4
        %v2585 = vadd.f32 %v2583, %v2584
        %v2586 = vrot.slane %v2585, 2
        %v2587 = vadd.f32 %v2585, %v2586
        %v2588 = vrot.slane %v2587, 1
        %v2589 = vadd.f32 %v2587, %v2588
        %v2590 = vsel %vm2345, %v2499, 0.0
        %v2591 = vrot.slane %v2590, 4
        %v2592 = vadd.f32 %v2590, %v2591
        %v2593 = vrot.slane %v2592, 2
        %v2594 = vadd.f32 %v2592, %v2593
        %v2595 = vrot.slane %v2594, 1
        %v2596 = vadd.f32 %v2594, %v2595
        %v2597 = vsel %vm2345, %v2501, 0.0
        %v2598 = vrot.slane %v2597, 4
        %v2599 = vadd.f32 %v2597, %v2598
        %v2600 = vrot.slane %v2599, 2
        %v2601 = vadd.f32 %v2599, %v2600
        %v2602 = vrot.slane %v2601, 1
        %v2603 = vadd.f32 %v2601, %v2602
        %v2604 = vsel %vm2345, %v2503, 0.0
        %v2605 = vrot.slane %v2604, 4
        %v2606 = vadd.f32 %v2604, %v2605
        %v2607 = vrot.slane %v2606, 2
        %v2608 = vadd.f32 %v2606, %v2607
        %v2609 = vrot.slane %v2608, 1
        %v2610 = vadd.f32 %v2608, %v2609
        %v2611 = vsel %vm2345, %v2505, 0.0
        %v2612 = vrot.slane %v2611, 4
        %v2613 = vadd.f32 %v2611, %v2612
        %v2614 = vrot.slane %v2613, 2
        %v2615 = vadd.f32 %v2613, %v2614
        %v2616 = vrot.slane %v2615, 1
        %v2617 = vadd.f32 %v2615, %v2616
        %v2618 = vrcp.pop %v2512
        %v2619 = vrcp.pop %v2519
        %v2620 = vrcp.pop %v2526
        %v2621 = vrcp.pop %v2533
        %v2622 = vrcp.pop %v2540
        %v2623 = vrcp.pop %v2547
        %v2624 = vrcp.pop %v2554
        %v2625 = vrcp.pop %v2561
        %v2626 = vrcp.pop %v2568
        %v2627 = vrcp.pop %v2575
        %v2628 = vrcp.pop %v2582
        %v2629 = vrcp.pop %v2589
        %v2630 = vrcp.pop %v2596
        %v2631 = vrcp.pop %v2603
        %v2632 = vrcp.pop %v2610
        %v2633 = vrcp.pop %v2617
        %v2634 = vmul.f32 %v2475, %v2618
        %v2635 = vmul.f32 %v2477, %v2619
        %v2636 = vmul.f32 %v2479, %v2620
        %v2637 = vmul.f32 %v2481, %v2621
        %v2638 = vmul.f32 %v2483, %v2622
        %v2639 = vmul.f32 %v2485, %v2623
        %v2640 = vmul.f32 %v2487, %v2624
        %v2641 = vmul.f32 %v2489, %v2625
        %v2642 = vmul.f32 %v2491, %v2626
        %v2643 = vmul.f32 %v2493, %v2627
        %v2644 = vmul.f32 %v2495, %v2628
        %v2645 = vmul.f32 %v2497, %v2629
        %v2646 = vmul.f32 %v2499, %v2630
        %v2647 = vmul.f32 %v2501, %v2631
        %v2648 = vmul.f32 %v2503, %v2632
        %v2649 = vmul.f32 %v2505, %v2633
        %v2651 = vsel %vm2345, %v2634, 0
        %2653 = vmatprep.subr.mxu0 0.0
        %2654 = vmatpush1.msra.mxu0 %v1016
        %2655 = vmatprep.subr.mxu0 0.0
        %2656 = vmatpush1.msra.mxu0 0.0
        %2657 = vmatprep.subr.mxu0 0.0
        %2658 = vmatpush1.msra.mxu0 0.0
        %2659 = vmatprep.subr.mxu0 0.0
        %2660 = vmatpush1.msra.mxu0 0.0
        %2661 = vmatprep.subr.mxu0 0.0
        %2662 = vmatpush1.msra.mxu0 0.0
        %2663 = vmatprep.subr.mxu0 0.0
        %2664 = vmatpush1.msra.mxu0 0.0
        %2665 = vmatprep.subr.mxu0 0.0
        %2666 = vmatpush1.msra.mxu0 0.0
        %2667 = vmatprep.subr.mxu0 0.0
        %2668 = vmatpush1.msra.mxu0 0.0
        %2669 = vmatprep.subr.mxu0 0.0
        %2670 = vmatpush1.msra.mxu0 0.0
        %2671 = vmatprep.subr.mxu0 0.0
        %2672 = vmatpush1.msra.mxu0 0.0
        %2673 = vmatprep.subr.mxu0 0.0
        %2674 = vmatpush1.msra.mxu0 0.0
        %2675 = vmatprep.subr.mxu0 0.0
        %2676 = vmatpush1.msra.mxu0 0.0
        %2677 = vmatprep.subr.mxu0 0.0
        %2678 = vmatpush1.msra.mxu0 0.0
        %2679 = vmatprep.subr.mxu0 0.0
        %2680 = vmatpush1.msra.mxu0 0.0
        %2681 = vmatprep.subr.mxu0 0.0
        %2682 = vmatpush1.msra.mxu0 0.0
        %2683 = vmatprep.subr.mxu0 0.0
        %2684 = vmatpush1.msra.mxu0 0.0
        %2685 = vmatprep.subr.mxu0 0.0
        %2686 = vmatpush1.msra.mxu0 0.0
        %2687 = vmatprep.subr.mxu0 0.0
        %2688 = vmatpush1.msra.mxu0 0.0
        %2689 = vmatprep.subr.mxu0 0.0
        %2690 = vmatpush1.msra.mxu0 0.0
        %2691 = vmatprep.subr.mxu0 0.0
        %2692 = vmatpush1.msra.mxu0 0.0
        %2693 = vmatprep.subr.mxu0 0.0
        %2694 = vmatpush1.msra.mxu0 0.0
        %2695 = vmatprep.subr.mxu0 0.0
        %2696 = vmatpush1.msra.mxu0 0.0
        %2697 = vmatprep.subr.mxu0 0.0
        %2698 = vmatpush1.msra.mxu0 0.0
        %2699 = vmatprep.subr.mxu0 0.0
        %2700 = vmatpush1.msra.mxu0 0.0
        %2701 = vmatprep.subr.mxu0 0.0
        %2702 = vmatpush1.msra.mxu0 0.0
        %2703 = vmatprep.subr.mxu0 0.0
        %2704 = vmatpush1.msra.mxu0 0.0
        %2705 = vmatprep.subr.mxu0 0.0
        %2706 = vmatpush1.msra.mxu0 0.0
        %2707 = vmatprep.subr.mxu0 0.0
        %2708 = vmatpush1.msra.mxu0 0.0
        %2709 = vmatprep.subr.mxu0 0.0
        %2710 = vmatpush1.msra.mxu0 0.0
        %2711 = vmatprep.subr.mxu0 0.0
        %2712 = vmatpush1.msra.mxu0 0.0
        %2713 = vmatprep.subr.mxu0 0.0
        %2714 = vmatpush1.msra.mxu0 0.0
        %2715 = vmatprep.subr.mxu0 0.0
        %2716 = vmatpush1.msra.mxu0 0.0
        %2717 = vmatprep.mubr.f32.mxu0 0.0
        %2718 = vmatmul.mubr.f32.gmra.mrb[0].mxu0 %v2651
        %v2719 = vpop.f32.mrb[0].mxu0
        %v2720 = vadd.f32 0.0, %v2719
        %v2721 = vpop.f32.mrb[0].mxu0
        %2722 = vdwg.mxu0
        %v2724 = vsel %vm2345, %v2635, 0
        %2726 = vmatprep.subr.mxu0 0.0
        %2727 = vmatpush1.msra.mxu0 %v1021
        %2728 = vmatprep.subr.mxu0 0.0
        %2729 = vmatpush1.msra.mxu0 0.0
        %2730 = vmatprep.subr.mxu0 0.0
        %2731 = vmatpush1.msra.mxu0 0.0
        %2732 = vmatprep.subr.mxu0 0.0
        %2733 = vmatpush1.msra.mxu0 0.0
        %2734 = vmatprep.subr.mxu0 0.0
        %2735 = vmatpush1.msra.mxu0 0.0
        %2736 = vmatprep.subr.mxu0 0.0
        %2737 = vmatpush1.msra.mxu0 0.0
        %2738 = vmatprep.subr.mxu0 0.0
        %2739 = vmatpush1.msra.mxu0 0.0
        %2740 = vmatprep.subr.mxu0 0.0
        %2741 = vmatpush1.msra.mxu0 0.0
        %2742 = vmatprep.subr.mxu0 0.0
        %2743 = vmatpush1.msra.mxu0 0.0
        %2744 = vmatprep.subr.mxu0 0.0
        %2745 = vmatpush1.msra.mxu0 0.0
        %2746 = vmatprep.subr.mxu0 0.0
        %2747 = vmatpush1.msra.mxu0 0.0
        %2748 = vmatprep.subr.mxu0 0.0
        %2749 = vmatpush1.msra.mxu0 0.0
        %2750 = vmatprep.subr.mxu0 0.0
        %2751 = vmatpush1.msra.mxu0 0.0
        %2752 = vmatprep.subr.mxu0 0.0
        %2753 = vmatpush1.msra.mxu0 0.0
        %2754 = vmatprep.subr.mxu0 0.0
        %2755 = vmatpush1.msra.mxu0 0.0
        %2756 = vmatprep.subr.mxu0 0.0
        %2757 = vmatpush1.msra.mxu0 0.0
        %2758 = vmatprep.subr.mxu0 0.0
        %2759 = vmatpush1.msra.mxu0 0.0
        %2760 = vmatprep.subr.mxu0 0.0
        %2761 = vmatpush1.msra.mxu0 0.0
        %2762 = vmatprep.subr.mxu0 0.0
        %2763 = vmatpush1.msra.mxu0 0.0
        %2764 = vmatprep.subr.mxu0 0.0
        %2765 = vmatpush1.msra.mxu0 0.0
        %2766 = vmatprep.subr.mxu0 0.0
        %2767 = vmatpush1.msra.mxu0 0.0
        %2768 = vmatprep.subr.mxu0 0.0
        %2769 = vmatpush1.msra.mxu0 0.0
        %2770 = vmatprep.subr.mxu0 0.0
        %2771 = vmatpush1.msra.mxu0 0.0
        %2772 = vmatprep.subr.mxu0 0.0
        %2773 = vmatpush1.msra.mxu0 0.0
        %2774 = vmatprep.subr.mxu0 0.0
        %2775 = vmatpush1.msra.mxu0 0.0
        %2776 = vmatprep.subr.mxu0 0.0
        %2777 = vmatpush1.msra.mxu0 0.0
        %2778 = vmatprep.subr.mxu0 0.0
        %2779 = vmatpush1.msra.mxu0 0.0
        %2780 = vmatprep.subr.mxu0 0.0
        %2781 = vmatpush1.msra.mxu0 0.0
        %2782 = vmatprep.subr.mxu0 0.0
        %2783 = vmatpush1.msra.mxu0 0.0
        %2784 = vmatprep.subr.mxu0 0.0
        %2785 = vmatpush1.msra.mxu0 0.0
        %2786 = vmatprep.subr.mxu0 0.0
        %2787 = vmatpush1.msra.mxu0 0.0
        %2788 = vmatprep.subr.mxu0 0.0
        %2789 = vmatpush1.msra.mxu0 0.0
        %2790 = vmatprep.mubr.f32.mxu0 0.0
        %2791 = vmatmul.mubr.f32.gmra.mrb[0].mxu0 %v2724
        %v2792 = vpop.f32.mrb[0].mxu0
        %v2793 = vadd.f32 0.0, %v2792
        %v2794 = vpop.f32.mrb[0].mxu0
        %2795 = vdwg.mxu0
        %v2797 = vsel %vm2345, %v2636, 0
        %2799 = vmatprep.subr.mxu0 0.0
        %2800 = vmatpush1.msra.mxu0 %v1026
        %2801 = vmatprep.subr.mxu0 0.0
        %2802 = vmatpush1.msra.mxu0 0.0
        %2803 = vmatprep.subr.mxu0 0.0
        %2804 = vmatpush1.msra.mxu0 0.0
        %2805 = vmatprep.subr.mxu0 0.0
        %2806 = vmatpush1.msra.mxu0 0.0
        %2807 = vmatprep.subr.mxu0 0.0
        %2808 = vmatpush1.msra.mxu0 0.0
        %2809 = vmatprep.subr.mxu0 0.0
        %2810 = vmatpush1.msra.mxu0 0.0
        %2811 = vmatprep.subr.mxu0 0.0
        %2812 = vmatpush1.msra.mxu0 0.0
        %2813 = vmatprep.subr.mxu0 0.0
        %2814 = vmatpush1.msra.mxu0 0.0
        %2815 = vmatprep.subr.mxu0 0.0
        %2816 = vmatpush1.msra.mxu0 0.0
        %2817 = vmatprep.subr.mxu0 0.0
        %2818 = vmatpush1.msra.mxu0 0.0
        %2819 = vmatprep.subr.mxu0 0.0
        %2820 = vmatpush1.msra.mxu0 0.0
        %2821 = vmatprep.subr.mxu0 0.0
        %2822 = vmatpush1.msra.mxu0 0.0
        %2823 = vmatprep.subr.mxu0 0.0
        %2824 = vmatpush1.msra.mxu0 0.0
        %2825 = vmatprep.subr.mxu0 0.0
        %2826 = vmatpush1.msra.mxu0 0.0
        %2827 = vmatprep.subr.mxu0 0.0
        %2828 = vmatpush1.msra.mxu0 0.0
        %2829 = vmatprep.subr.mxu0 0.0
        %2830 = vmatpush1.msra.mxu0 0.0
        %2831 = vmatprep.subr.mxu0 0.0
        %2832 = vmatpush1.msra.mxu0 0.0
        %2833 = vmatprep.subr.mxu0 0.0
        %2834 = vmatpush1.msra.mxu0 0.0
        %2835 = vmatprep.subr.mxu0 0.0
        %2836 = vmatpush1.msra.mxu0 0.0
        %2837 = vmatprep.subr.mxu0 0.0
        %2838 = vmatpush1.msra.mxu0 0.0
        %2839 = vmatprep.subr.mxu0 0.0
        %2840 = vmatpush1.msra.mxu0 0.0
        %2841 = vmatprep.subr.mxu0 0.0
        %2842 = vmatpush1.msra.mxu0 0.0
        %2843 = vmatprep.subr.mxu0 0.0
        %2844 = vmatpush1.msra.mxu0 0.0
        %2845 = vmatprep.subr.mxu0 0.0
        %2846 = vmatpush1.msra.mxu0 0.0
        %2847 = vmatprep.subr.mxu0 0.0
        %2848 = vmatpush1.msra.mxu0 0.0
        %2849 = vmatprep.subr.mxu0 0.0
        %2850 = vmatpush1.msra.mxu0 0.0
        %2851 = vmatprep.subr.mxu0 0.0
        %2852 = vmatpush1.msra.mxu0 0.0
        %2853 = vmatprep.subr.mxu0 0.0
        %2854 = vmatpush1.msra.mxu0 0.0
        %2855 = vmatprep.subr.mxu0 0.0
        %2856 = vmatpush1.msra.mxu0 0.0
        %2857 = vmatprep.subr.mxu0 0.0
        %2858 = vmatpush1.msra.mxu0 0.0
        %2859 = vmatprep.subr.mxu0 0.0
        %2860 = vmatpush1.msra.mxu0 0.0
        %2861 = vmatprep.subr.mxu0 0.0
        %2862 = vmatpush1.msra.mxu0 0.0
        %2863 = vmatprep.mubr.f32.mxu0 0.0
        %2864 = vmatmul.mubr.f32.gmra.mrb[0].mxu0 %v2797
        %v2865 = vpop.f32.mrb[0].mxu0
        %v2866 = vadd.f32 0.0, %v2865
        %v2867 = vpop.f32.mrb[0].mxu0
        %2868 = vdwg.mxu0
        %v2870 = vsel %vm2345, %v2637, 0
        %2872 = vmatprep.subr.mxu0 0.0
        %2873 = vmatpush1.msra.mxu0 %v1031
        %2874 = vmatprep.subr.mxu0 0.0
        %2875 = vmatpush1.msra.mxu0 0.0
        %2876 = vmatprep.subr.mxu0 0.0
        %2877 = vmatpush1.msra.mxu0 0.0
        %2878 = vmatprep.subr.mxu0 0.0
        %2879 = vmatpush1.msra.mxu0 0.0
        %2880 = vmatprep.subr.mxu0 0.0
        %2881 = vmatpush1.msra.mxu0 0.0
        %2882 = vmatprep.subr.mxu0 0.0
        %2883 = vmatpush1.msra.mxu0 0.0
        %2884 = vmatprep.subr.mxu0 0.0
        %2885 = vmatpush1.msra.mxu0 0.0
        %2886 = vmatprep.subr.mxu0 0.0
        %2887 = vmatpush1.msra.mxu0 0.0
        %2888 = vmatprep.subr.mxu0 0.0
        %2889 = vmatpush1.msra.mxu0 0.0
        %2890 = vmatprep.subr.mxu0 0.0
        %2891 = vmatpush1.msra.mxu0 0.0
        %2892 = vmatprep.subr.mxu0 0.0
        %2893 = vmatpush1.msra.mxu0 0.0
        %2894 = vmatprep.subr.mxu0 0.0
        %2895 = vmatpush1.msra.mxu0 0.0
        %2896 = vmatprep.subr.mxu0 0.0
        %2897 = vmatpush1.msra.mxu0 0.0
        %2898 = vmatprep.subr.mxu0 0.0
        %2899 = vmatpush1.msra.mxu0 0.0
        %2900 = vmatprep.subr.mxu0 0.0
        %2901 = vmatpush1.msra.mxu0 0.0
        %2902 = vmatprep.subr.mxu0 0.0
        %2903 = vmatpush1.msra.mxu0 0.0
        %2904 = vmatprep.subr.mxu0 0.0
        %2905 = vmatpush1.msra.mxu0 0.0
        %2906 = vmatprep.subr.mxu0 0.0
        %2907 = vmatpush1.msra.mxu0 0.0
        %2908 = vmatprep.subr.mxu0 0.0
        %2909 = vmatpush1.msra.mxu0 0.0
        %2910 = vmatprep.subr.mxu0 0.0
        %2911 = vmatpush1.msra.mxu0 0.0
        %2912 = vmatprep.subr.mxu0 0.0
        %2913 = vmatpush1.msra.mxu0 0.0
        %2914 = vmatprep.subr.mxu0 0.0
        %2915 = vmatpush1.msra.mxu0 0.0
        %2916 = vmatprep.subr.mxu0 0.0
        %2917 = vmatpush1.msra.mxu0 0.0
        %2918 = vmatprep.subr.mxu0 0.0
        %2919 = vmatpush1.msra.mxu0 0.0
        %2920 = vmatprep.subr.mxu0 0.0
        %2921 = vmatpush1.msra.mxu0 0.0
        %2922 = vmatprep.subr.mxu0 0.0
        %2923 = vmatpush1.msra.mxu0 0.0
        %2924 = vmatprep.subr.mxu0 0.0
        %2925 = vmatpush1.msra.mxu0 0.0
        %2926 = vmatprep.subr.mxu0 0.0
        %2927 = vmatpush1.msra.mxu0 0.0
        %2928 = vmatprep.subr.mxu0 0.0
        %2929 = vmatpush1.msra.mxu0 0.0
        %2930 = vmatprep.subr.mxu0 0.0
        %2931 = vmatpush1.msra.mxu0 0.0
        %2932 = vmatprep.subr.mxu0 0.0
        %2933 = vmatpush1.msra.mxu0 0.0
        %2934 = vmatprep.subr.mxu0 0.0
        %2935 = vmatpush1.msra.mxu0 0.0
        %2936 = vmatprep.mubr.f32.mxu0 0.0
        %2937 = vmatmul.mubr.f32.gmra.mrb[0].mxu0 %v2870
        %v2938 = vpop.f32.mrb[0].mxu0
        %v2939 = vadd.f32 0.0, %v2938
        %v2940 = vpop.f32.mrb[0].mxu0
        %2941 = vdwg.mxu0
        %v2943 = vsel %vm2345, %v2638, 0
        %2945 = vmatprep.subr.mxu0 0.0
        %2946 = vmatpush1.msra.mxu0 %v1036
        %2947 = vmatprep.subr.mxu0 0.0
        %2948 = vmatpush1.msra.mxu0 0.0
        %2949 = vmatprep.subr.mxu0 0.0
        %2950 = vmatpush1.msra.mxu0 0.0
        %2951 = vmatprep.subr.mxu0 0.0
        %2952 = vmatpush1.msra.mxu0 0.0
        %2953 = vmatprep.subr.mxu0 0.0
        %2954 = vmatpush1.msra.mxu0 0.0
        %2955 = vmatprep.subr.mxu0 0.0
        %2956 = vmatpush1.msra.mxu0 0.0
        %2957 = vmatprep.subr.mxu0 0.0
        %2958 = vmatpush1.msra.mxu0 0.0
        %2959 = vmatprep.subr.mxu0 0.0
        %2960 = vmatpush1.msra.mxu0 0.0
        %2961 = vmatprep.subr.mxu0 0.0
        %2962 = vmatpush1.msra.mxu0 0.0
        %2963 = vmatprep.subr.mxu0 0.0
        %2964 = vmatpush1.msra.mxu0 0.0
        %2965 = vmatprep.subr.mxu0 0.0
        %2966 = vmatpush1.msra.mxu0 0.0
        %2967 = vmatprep.subr.mxu0 0.0
        %2968 = vmatpush1.msra.mxu0 0.0
        %2969 = vmatprep.subr.mxu0 0.0
        %2970 = vmatpush1.msra.mxu0 0.0
        %2971 = vmatprep.subr.mxu0 0.0
        %2972 = vmatpush1.msra.mxu0 0.0
        %2973 = vmatprep.subr.mxu0 0.0
        %2974 = vmatpush1.msra.mxu0 0.0
        %2975 = vmatprep.subr.mxu0 0.0
        %2976 = vmatpush1.msra.mxu0 0.0
        %2977 = vmatprep.subr.mxu0 0.0
        %2978 = vmatpush1.msra.mxu0 0.0
        %2979 = vmatprep.subr.mxu0 0.0
        %2980 = vmatpush1.msra.mxu0 0.0
        %2981 = vmatprep.subr.mxu0 0.0
        %2982 = vmatpush1.msra.mxu0 0.0
        %2983 = vmatprep.subr.mxu0 0.0
        %2984 = vmatpush1.msra.mxu0 0.0
        %2985 = vmatprep.subr.mxu0 0.0
        %2986 = vmatpush1.msra.mxu0 0.0
        %2987 = vmatprep.subr.mxu0 0.0
        %2988 = vmatpush1.msra.mxu0 0.0
        %2989 = vmatprep.subr.mxu0 0.0
        %2990 = vmatpush1.msra.mxu0 0.0
        %2991 = vmatprep.subr.mxu0 0.0
        %2992 = vmatpush1.msra.mxu0 0.0
        %2993 = vmatprep.subr.mxu0 0.0
        %2994 = vmatpush1.msra.mxu0 0.0
        %2995 = vmatprep.subr.mxu0 0.0
        %2996 = vmatpush1.msra.mxu0 0.0
        %2997 = vmatprep.subr.mxu0 0.0
        %2998 = vmatpush1.msra.mxu0 0.0
        %2999 = vmatprep.subr.mxu0 0.0
        %3000 = vmatpush1.msra.mxu0 0.0
        %3001 = vmatprep.subr.mxu0 0.0
        %3002 = vmatpush1.msra.mxu0 0.0
        %3003 = vmatprep.subr.mxu0 0.0
        %3004 = vmatpush1.msra.mxu0 0.0
        %3005 = vmatprep.subr.mxu0 0.0
        %3006 = vmatpush1.msra.mxu0 0.0
        %3007 = vmatprep.subr.mxu0 0.0
        %3008 = vmatpush1.msra.mxu0 0.0
        %3009 = vmatprep.mubr.f32.mxu0 0.0
        %3010 = vmatmul.mubr.f32.gmra.mrb[0].mxu0 %v2943
        %v3011 = vpop.f32.mrb[0].mxu0
        %v3012 = vadd.f32 0.0, %v3011
        %v3013 = vpop.f32.mrb[0].mxu0
        %3014 = vdwg.mxu0
        %v3016 = vsel %vm2345, %v2639, 0
        %3018 = vmatprep.subr.mxu0 0.0
        %3019 = vmatpush1.msra.mxu0 %v1041
        %3020 = vmatprep.subr.mxu0 0.0
        %3021 = vmatpush1.msra.mxu0 0.0
        %3022 = vmatprep.subr.mxu0 0.0
        %3023 = vmatpush1.msra.mxu0 0.0
        %3024 = vmatprep.subr.mxu0 0.0
        %3025 = vmatpush1.msra.mxu0 0.0
        %3026 = vmatprep.subr.mxu0 0.0
        %3027 = vmatpush1.msra.mxu0 0.0
        %3028 = vmatprep.subr.mxu0 0.0
        %3029 = vmatpush1.msra.mxu0 0.0
        %3030 = vmatprep.subr.mxu0 0.0
        %3031 = vmatpush1.msra.mxu0 0.0
        %3032 = vmatprep.subr.mxu0 0.0
        %3033 = vmatpush1.msra.mxu0 0.0
        %3034 = vmatprep.subr.mxu0 0.0
        %3035 = vmatpush1.msra.mxu0 0.0
        %3036 = vmatprep.subr.mxu0 0.0
        %3037 = vmatpush1.msra.mxu0 0.0
        %3038 = vmatprep.subr.mxu0 0.0
        %3039 = vmatpush1.msra.mxu0 0.0
        %3040 = vmatprep.subr.mxu0 0.0
        %3041 = vmatpush1.msra.mxu0 0.0
        %3042 = vmatprep.subr.mxu0 0.0
        %3043 = vmatpush1.msra.mxu0 0.0
        %3044 = vmatprep.subr.mxu0 0.0
        %3045 = vmatpush1.msra.mxu0 0.0
        %3046 = vmatprep.subr.mxu0 0.0
        %3047 = vmatpush1.msra.mxu0 0.0
        %3048 = vmatprep.subr.mxu0 0.0
        %3049 = vmatpush1.msra.mxu0 0.0
        %3050 = vmatprep.subr.mxu0 0.0
        %3051 = vmatpush1.msra.mxu0 0.0
        %3052 = vmatprep.subr.mxu0 0.0
        %3053 = vmatpush1.msra.mxu0 0.0
        %3054 = vmatprep.subr.mxu0 0.0
        %3055 = vmatpush1.msra.mxu0 0.0
        %3056 = vmatprep.subr.mxu0 0.0
        %3057 = vmatpush1.msra.mxu0 0.0
        %3058 = vmatprep.subr.mxu0 0.0
        %3059 = vmatpush1.msra.mxu0 0.0
        %3060 = vmatprep.subr.mxu0 0.0
        %3061 = vmatpush1.msra.mxu0 0.0
        %3062 = vmatprep.subr.mxu0 0.0
        %3063 = vmatpush1.msra.mxu0 0.0
        %3064 = vmatprep.subr.mxu0 0.0
        %3065 = vmatpush1.msra.mxu0 0.0
        %3066 = vmatprep.subr.mxu0 0.0
        %3067 = vmatpush1.msra.mxu0 0.0
        %3068 = vmatprep.subr.mxu0 0.0
        %3069 = vmatpush1.msra.mxu0 0.0
        %3070 = vmatprep.subr.mxu0 0.0
        %3071 = vmatpush1.msra.mxu0 0.0
        %3072 = vmatprep.subr.mxu0 0.0
        %3073 = vmatpush1.msra.mxu0 0.0
        %3074 = vmatprep.subr.mxu0 0.0
        %3075 = vmatpush1.msra.mxu0 0.0
        %3076 = vmatprep.subr.mxu0 0.0
        %3077 = vmatpush1.msra.mxu0 0.0
        %3078 = vmatprep.subr.mxu0 0.0
        %3079 = vmatpush1.msra.mxu0 0.0
        %3080 = vmatprep.subr.mxu0 0.0
        %3081 = vmatpush1.msra.mxu0 0.0
        %3082 = vmatprep.mubr.f32.mxu0 0.0
        %3083 = vmatmul.mubr.f32.gmra.mrb[0].mxu0 %v3016
        %v3084 = vpop.f32.mrb[0].mxu0
        %v3085 = vadd.f32 0.0, %v3084
        %v3086 = vpop.f32.mrb[0].mxu0
        %3087 = vdwg.mxu0
        %v3089 = vsel %vm2345, %v2640, 0
        %3091 = vmatprep.subr.mxu0 0.0
        %3092 = vmatpush1.msra.mxu0 %v1046
        %3093 = vmatprep.subr.mxu0 0.0
        %3094 = vmatpush1.msra.mxu0 0.0
        %3095 = vmatprep.subr.mxu0 0.0
        %3096 = vmatpush1.msra.mxu0 0.0
        %3097 = vmatprep.subr.mxu0 0.0
        %3098 = vmatpush1.msra.mxu0 0.0
        %3099 = vmatprep.subr.mxu0 0.0
        %3100 = vmatpush1.msra.mxu0 0.0
        %3101 = vmatprep.subr.mxu0 0.0
        %3102 = vmatpush1.msra.mxu0 0.0
        %3103 = vmatprep.subr.mxu0 0.0
        %3104 = vmatpush1.msra.mxu0 0.0
        %3105 = vmatprep.subr.mxu0 0.0
        %3106 = vmatpush1.msra.mxu0 0.0
        %3107 = vmatprep.subr.mxu0 0.0
        %3108 = vmatpush1.msra.mxu0 0.0
        %3109 = vmatprep.subr.mxu0 0.0
        %3110 = vmatpush1.msra.mxu0 0.0
        %3111 = vmatprep.subr.mxu0 0.0
        %3112 = vmatpush1.msra.mxu0 0.0
        %3113 = vmatprep.subr.mxu0 0.0
        %3114 = vmatpush1.msra.mxu0 0.0
        %3115 = vmatprep.subr.mxu0 0.0
        %3116 = vmatpush1.msra.mxu0 0.0
        %3117 = vmatprep.subr.mxu0 0.0
        %3118 = vmatpush1.msra.mxu0 0.0
        %3119 = vmatprep.subr.mxu0 0.0
        %3120 = vmatpush1.msra.mxu0 0.0
        %3121 = vmatprep.subr.mxu0 0.0
        %3122 = vmatpush1.msra.mxu0 0.0
        %3123 = vmatprep.subr.mxu0 0.0
        %3124 = vmatpush1.msra.mxu0 0.0
        %3125 = vmatprep.subr.mxu0 0.0
        %3126 = vmatpush1.msra.mxu0 0.0
        %3127 = vmatprep.subr.mxu0 0.0
        %3128 = vmatpush1.msra.mxu0 0.0
        %3129 = vmatprep.subr.mxu0 0.0
        %3130 = vmatpush1.msra.mxu0 0.0
        %3131 = vmatprep.subr.mxu0 0.0
        %3132 = vmatpush1.msra.mxu0 0.0
        %3133 = vmatprep.subr.mxu0 0.0
        %3134 = vmatpush1.msra.mxu0 0.0
        %3135 = vmatprep.subr.mxu0 0.0
        %3136 = vmatpush1.msra.mxu0 0.0
        %3137 = vmatprep.subr.mxu0 0.0
        %3138 = vmatpush1.msra.mxu0 0.0
        %3139 = vmatprep.subr.mxu0 0.0
        %3140 = vmatpush1.msra.mxu0 0.0
        %3141 = vmatprep.subr.mxu0 0.0
        %3142 = vmatpush1.msra.mxu0 0.0
        %3143 = vmatprep.subr.mxu0 0.0
        %3144 = vmatpush1.msra.mxu0 0.0
        %3145 = vmatprep.subr.mxu0 0.0
        %3146 = vmatpush1.msra.mxu0 0.0
        %3147 = vmatprep.subr.mxu0 0.0
        %3148 = vmatpush1.msra.mxu0 0.0
        %3149 = vmatprep.subr.mxu0 0.0
        %3150 = vmatpush1.msra.mxu0 0.0
        %3151 = vmatprep.subr.mxu0 0.0
        %3152 = vmatpush1.msra.mxu0 0.0
        %3153 = vmatprep.subr.mxu0 0.0
        %3154 = vmatpush1.msra.mxu0 0.0
        %3155 = vmatprep.mubr.f32.mxu0 0.0
        %3156 = vmatmul.mubr.f32.gmra.mrb[0].mxu0 %v3089
        %v3157 = vpop.f32.mrb[0].mxu0
        %v3158 = vadd.f32 0.0, %v3157
        %v3159 = vpop.f32.mrb[0].mxu0
        %3160 = vdwg.mxu0
        %v3162 = vsel %vm2345, %v2641, 0
        %3164 = vmatprep.subr.mxu0 0.0
        %3165 = vmatpush1.msra.mxu0 %v1051
        %3166 = vmatprep.subr.mxu0 0.0
        %3167 = vmatpush1.msra.mxu0 0.0
        %3168 = vmatprep.subr.mxu0 0.0
        %3169 = vmatpush1.msra.mxu0 0.0
        %3170 = vmatprep.subr.mxu0 0.0
        %3171 = vmatpush1.msra.mxu0 0.0
        %3172 = vmatprep.subr.mxu0 0.0
        %3173 = vmatpush1.msra.mxu0 0.0
        %3174 = vmatprep.subr.mxu0 0.0
        %3175 = vmatpush1.msra.mxu0 0.0
        %3176 = vmatprep.subr.mxu0 0.0
        %3177 = vmatpush1.msra.mxu0 0.0
        %3178 = vmatprep.subr.mxu0 0.0
        %3179 = vmatpush1.msra.mxu0 0.0
        %3180 = vmatprep.subr.mxu0 0.0
        %3181 = vmatpush1.msra.mxu0 0.0
        %3182 = vmatprep.subr.mxu0 0.0
        %3183 = vmatpush1.msra.mxu0 0.0
        %3184 = vmatprep.subr.mxu0 0.0
        %3185 = vmatpush1.msra.mxu0 0.0
        %3186 = vmatprep.subr.mxu0 0.0
        %3187 = vmatpush1.msra.mxu0 0.0
        %3188 = vmatprep.subr.mxu0 0.0
        %3189 = vmatpush1.msra.mxu0 0.0
        %3190 = vmatprep.subr.mxu0 0.0
        %3191 = vmatpush1.msra.mxu0 0.0
        %3192 = vmatprep.subr.mxu0 0.0
        %3193 = vmatpush1.msra.mxu0 0.0
        %3194 = vmatprep.subr.mxu0 0.0
        %3195 = vmatpush1.msra.mxu0 0.0
        %3196 = vmatprep.subr.mxu0 0.0
        %3197 = vmatpush1.msra.mxu0 0.0
        %3198 = vmatprep.subr.mxu0 0.0
        %3199 = vmatpush1.msra.mxu0 0.0
        %3200 = vmatprep.subr.mxu0 0.0
        %3201 = vmatpush1.msra.mxu0 0.0
        %3202 = vmatprep.subr.mxu0 0.0
        %3203 = vmatpush1.msra.mxu0 0.0
        %3204 = vmatprep.subr.mxu0 0.0
        %3205 = vmatpush1.msra.mxu0 0.0
        %3206 = vmatprep.subr.mxu0 0.0
        %3207 = vmatpush1.msra.mxu0 0.0
        %3208 = vmatprep.subr.mxu0 0.0
        %3209 = vmatpush1.msra.mxu0 0.0
        %3210 = vmatprep.subr.mxu0 0.0
        %3211 = vmatpush1.msra.mxu0 0.0
        %3212 = vmatprep.subr.mxu0 0.0
        %3213 = vmatpush1.msra.mxu0 0.0
        %3214 = vmatprep.subr.mxu0 0.0
        %3215 = vmatpush1.msra.mxu0 0.0
        %3216 = vmatprep.subr.mxu0 0.0
        %3217 = vmatpush1.msra.mxu0 0.0
        %3218 = vmatprep.subr.mxu0 0.0
        %3219 = vmatpush1.msra.mxu0 0.0
        %3220 = vmatprep.subr.mxu0 0.0
        %3221 = vmatpush1.msra.mxu0 0.0
        %3222 = vmatprep.subr.mxu0 0.0
        %3223 = vmatpush1.msra.mxu0 0.0
        %3224 = vmatprep.subr.mxu0 0.0
        %3225 = vmatpush1.msra.mxu0 0.0
        %3226 = vmatprep.subr.mxu0 0.0
        %3227 = vmatpush1.msra.mxu0 0.0
        %3228 = vmatprep.mubr.f32.mxu0 0.0
        %3229 = vmatmul.mubr.f32.gmra.mrb[0].mxu0 %v3162
        %v3230 = vpop.f32.mrb[0].mxu0
        %v3231 = vadd.f32 0.0, %v3230
        %v3232 = vpop.f32.mrb[0].mxu0
        %3233 = vdwg.mxu0
        %v3235 = vsel %vm2345, %v2642, 0
        %3237 = vmatprep.subr.mxu0 0.0
        %3238 = vmatpush1.msra.mxu0 %v1056
        %3239 = vmatprep.subr.mxu0 0.0
        %3240 = vmatpush1.msra.mxu0 0.0
        %3241 = vmatprep.subr.mxu0 0.0
        %3242 = vmatpush1.msra.mxu0 0.0
        %3243 = vmatprep.subr.mxu0 0.0
        %3244 = vmatpush1.msra.mxu0 0.0
        %3245 = vmatprep.subr.mxu0 0.0
        %3246 = vmatpush1.msra.mxu0 0.0
        %3247 = vmatprep.subr.mxu0 0.0
        %3248 = vmatpush1.msra.mxu0 0.0
        %3249 = vmatprep.subr.mxu0 0.0
        %3250 = vmatpush1.msra.mxu0 0.0
        %3251 = vmatprep.subr.mxu0 0.0
        %3252 = vmatpush1.msra.mxu0 0.0
        %3253 = vmatprep.subr.mxu0 0.0
        %3254 = vmatpush1.msra.mxu0 0.0
        %3255 = vmatprep.subr.mxu0 0.0
        %3256 = vmatpush1.msra.mxu0 0.0
        %3257 = vmatprep.subr.mxu0 0.0
        %3258 = vmatpush1.msra.mxu0 0.0
        %3259 = vmatprep.subr.mxu0 0.0
        %3260 = vmatpush1.msra.mxu0 0.0
        %3261 = vmatprep.subr.mxu0 0.0
        %3262 = vmatpush1.msra.mxu0 0.0
        %3263 = vmatprep.subr.mxu0 0.0
        %3264 = vmatpush1.msra.mxu0 0.0
        %3265 = vmatprep.subr.mxu0 0.0
        %3266 = vmatpush1.msra.mxu0 0.0
        %3267 = vmatprep.subr.mxu0 0.0
        %3268 = vmatpush1.msra.mxu0 0.0
        %3269 = vmatprep.subr.mxu0 0.0
        %3270 = vmatpush1.msra.mxu0 0.0
        %3271 = vmatprep.subr.mxu0 0.0
        %3272 = vmatpush1.msra.mxu0 0.0
        %3273 = vmatprep.subr.mxu0 0.0
        %3274 = vmatpush1.msra.mxu0 0.0
        %3275 = vmatprep.subr.mxu0 0.0
        %3276 = vmatpush1.msra.mxu0 0.0
        %3277 = vmatprep.subr.mxu0 0.0
        %3278 = vmatpush1.msra.mxu0 0.0
        %3279 = vmatprep.subr.mxu0 0.0
        %3280 = vmatpush1.msra.mxu0 0.0
        %3281 = vmatprep.subr.mxu0 0.0
        %3282 = vmatpush1.msra.mxu0 0.0
        %3283 = vmatprep.subr.mxu0 0.0
        %3284 = vmatpush1.msra.mxu0 0.0
        %3285 = vmatprep.subr.mxu0 0.0
        %3286 = vmatpush1.msra.mxu0 0.0
        %3287 = vmatprep.subr.mxu0 0.0
        %3288 = vmatpush1.msra.mxu0 0.0
        %3289 = vmatprep.subr.mxu0 0.0
        %3290 = vmatpush1.msra.mxu0 0.0
        %3291 = vmatprep.subr.mxu0 0.0
        %3292 = vmatpush1.msra.mxu0 0.0
        %3293 = vmatprep.subr.mxu0 0.0
        %3294 = vmatpush1.msra.mxu0 0.0
        %3295 = vmatprep.subr.mxu0 0.0
        %3296 = vmatpush1.msra.mxu0 0.0
        %3297 = vmatprep.subr.mxu0 0.0
        %3298 = vmatpush1.msra.mxu0 0.0
        %3299 = vmatprep.subr.mxu0 0.0
        %3300 = vmatpush1.msra.mxu0 0.0
        %3301 = vmatprep.mubr.f32.mxu0 0.0
        %3302 = vmatmul.mubr.f32.gmra.mrb[0].mxu0 %v3235
        %v3303 = vpop.f32.mrb[0].mxu0
        %v3304 = vadd.f32 0.0, %v3303
        %v3305 = vpop.f32.mrb[0].mxu0
        %3306 = vdwg.mxu0
        %v3308 = vsel %vm2345, %v2643, 0
        %3310 = vmatprep.subr.mxu0 0.0
        %3311 = vmatpush1.msra.mxu0 %v1061
        %3312 = vmatprep.subr.mxu0 0.0
        %3313 = vmatpush1.msra.mxu0 0.0
        %3314 = vmatprep.subr.mxu0 0.0
        %3315 = vmatpush1.msra.mxu0 0.0
        %3316 = vmatprep.subr.mxu0 0.0
        %3317 = vmatpush1.msra.mxu0 0.0
        %3318 = vmatprep.subr.mxu0 0.0
        %3319 = vmatpush1.msra.mxu0 0.0
        %3320 = vmatprep.subr.mxu0 0.0
        %3321 = vmatpush1.msra.mxu0 0.0
        %3322 = vmatprep.subr.mxu0 0.0
        %3323 = vmatpush1.msra.mxu0 0.0
        %3324 = vmatprep.subr.mxu0 0.0
        %3325 = vmatpush1.msra.mxu0 0.0
        %3326 = vmatprep.subr.mxu0 0.0
        %3327 = vmatpush1.msra.mxu0 0.0
        %3328 = vmatprep.subr.mxu0 0.0
        %3329 = vmatpush1.msra.mxu0 0.0
        %3330 = vmatprep.subr.mxu0 0.0
        %3331 = vmatpush1.msra.mxu0 0.0
        %3332 = vmatprep.subr.mxu0 0.0
        %3333 = vmatpush1.msra.mxu0 0.0
        %3334 = vmatprep.subr.mxu0 0.0
        %3335 = vmatpush1.msra.mxu0 0.0
        %3336 = vmatprep.subr.mxu0 0.0
        %3337 = vmatpush1.msra.mxu0 0.0
        %3338 = vmatprep.subr.mxu0 0.0
        %3339 = vmatpush1.msra.mxu0 0.0
        %3340 = vmatprep.subr.mxu0 0.0
        %3341 = vmatpush1.msra.mxu0 0.0
        %3342 = vmatprep.subr.mxu0 0.0
        %3343 = vmatpush1.msra.mxu0 0.0
        %3344 = vmatprep.subr.mxu0 0.0
        %3345 = vmatpush1.msra.mxu0 0.0
        %3346 = vmatprep.subr.mxu0 0.0
        %3347 = vmatpush1.msra.mxu0 0.0
        %3348 = vmatprep.subr.mxu0 0.0
        %3349 = vmatpush1.msra.mxu0 0.0
        %3350 = vmatprep.subr.mxu0 0.0
        %3351 = vmatpush1.msra.mxu0 0.0
        %3352 = vmatprep.subr.mxu0 0.0
        %3353 = vmatpush1.msra.mxu0 0.0
        %3354 = vmatprep.subr.mxu0 0.0
        %3355 = vmatpush1.msra.mxu0 0.0
        %3356 = vmatprep.subr.mxu0 0.0
        %3357 = vmatpush1.msra.mxu0 0.0
        %3358 = vmatprep.subr.mxu0 0.0
        %3359 = vmatpush1.msra.mxu0 0.0
        %3360 = vmatprep.subr.mxu0 0.0
        %3361 = vmatpush1.msra.mxu0 0.0
        %3362 = vmatprep.subr.mxu0 0.0
        %3363 = vmatpush1.msra.mxu0 0.0
        %3364 = vmatprep.subr.mxu0 0.0
        %3365 = vmatpush1.msra.mxu0 0.0
        %3366 = vmatprep.subr.mxu0 0.0
        %3367 = vmatpush1.msra.mxu0 0.0
        %3368 = vmatprep.subr.mxu0 0.0
        %3369 = vmatpush1.msra.mxu0 0.0
        %3370 = vmatprep.subr.mxu0 0.0
        %3371 = vmatpush1.msra.mxu0 0.0
        %3372 = vmatprep.subr.mxu0 0.0
        %3373 = vmatpush1.msra.mxu0 0.0
        %3374 = vmatprep.mubr.f32.mxu0 0.0
        %3375 = vmatmul.mubr.f32.gmra.mrb[0].mxu0 %v3308
        %v3376 = vpop.f32.mrb[0].mxu0
        %v3377 = vadd.f32 0.0, %v3376
        %v3378 = vpop.f32.mrb[0].mxu0
        %3379 = vdwg.mxu0
        %v3381 = vsel %vm2345, %v2644, 0
        %3383 = vmatprep.subr.mxu0 0.0
        %3384 = vmatpush1.msra.mxu0 %v1066
        %3385 = vmatprep.subr.mxu0 0.0
        %3386 = vmatpush1.msra.mxu0 0.0
        %3387 = vmatprep.subr.mxu0 0.0
        %3388 = vmatpush1.msra.mxu0 0.0
        %3389 = vmatprep.subr.mxu0 0.0
        %3390 = vmatpush1.msra.mxu0 0.0
        %3391 = vmatprep.subr.mxu0 0.0
        %3392 = vmatpush1.msra.mxu0 0.0
        %3393 = vmatprep.subr.mxu0 0.0
        %3394 = vmatpush1.msra.mxu0 0.0
        %3395 = vmatprep.subr.mxu0 0.0
        %3396 = vmatpush1.msra.mxu0 0.0
        %3397 = vmatprep.subr.mxu0 0.0
        %3398 = vmatpush1.msra.mxu0 0.0
        %3399 = vmatprep.subr.mxu0 0.0
        %3400 = vmatpush1.msra.mxu0 0.0
        %3401 = vmatprep.subr.mxu0 0.0
        %3402 = vmatpush1.msra.mxu0 0.0
        %3403 = vmatprep.subr.mxu0 0.0
        %3404 = vmatpush1.msra.mxu0 0.0
        %3405 = vmatprep.subr.mxu0 0.0
        %3406 = vmatpush1.msra.mxu0 0.0
        %3407 = vmatprep.subr.mxu0 0.0
        %3408 = vmatpush1.msra.mxu0 0.0
        %3409 = vmatprep.subr.mxu0 0.0
        %3410 = vmatpush1.msra.mxu0 0.0
        %3411 = vmatprep.subr.mxu0 0.0
        %3412 = vmatpush1.msra.mxu0 0.0
        %3413 = vmatprep.subr.mxu0 0.0
        %3414 = vmatpush1.msra.mxu0 0.0
        %3415 = vmatprep.subr.mxu0 0.0
        %3416 = vmatpush1.msra.mxu0 0.0
        %3417 = vmatprep.subr.mxu0 0.0
        %3418 = vmatpush1.msra.mxu0 0.0
        %3419 = vmatprep.subr.mxu0 0.0
        %3420 = vmatpush1.msra.mxu0 0.0
        %3421 = vmatprep.subr.mxu0 0.0
        %3422 = vmatpush1.msra.mxu0 0.0
        %3423 = vmatprep.subr.mxu0 0.0
        %3424 = vmatpush1.msra.mxu0 0.0
        %3425 = vmatprep.subr.mxu0 0.0
        %3426 = vmatpush1.msra.mxu0 0.0
        %3427 = vmatprep.subr.mxu0 0.0
        %3428 = vmatpush1.msra.mxu0 0.0
        %3429 = vmatprep.subr.mxu0 0.0
        %3430 = vmatpush1.msra.mxu0 0.0
        %3431 = vmatprep.subr.mxu0 0.0
        %3432 = vmatpush1.msra.mxu0 0.0
        %3433 = vmatprep.subr.mxu0 0.0
        %3434 = vmatpush1.msra.mxu0 0.0
        %3435 = vmatprep.subr.mxu0 0.0
        %3436 = vmatpush1.msra.mxu0 0.0
        %3437 = vmatprep.subr.mxu0 0.0
        %3438 = vmatpush1.msra.mxu0 0.0
        %3439 = vmatprep.subr.mxu0 0.0
        %3440 = vmatpush1.msra.mxu0 0.0
        %3441 = vmatprep.subr.mxu0 0.0
        %3442 = vmatpush1.msra.mxu0 0.0
        %3443 = vmatprep.subr.mxu0 0.0
        %3444 = vmatpush1.msra.mxu0 0.0
        %3445 = vmatprep.subr.mxu0 0.0
        %3446 = vmatpush1.msra.mxu0 0.0
        %3447 = vmatprep.mubr.f32.mxu0 0.0
        %3448 = vmatmul.mubr.f32.gmra.mrb[0].mxu0 %v3381
        %v3449 = vpop.f32.mrb[0].mxu0
        %v3450 = vadd.f32 0.0, %v3449
        %v3451 = vpop.f32.mrb[0].mxu0
        %3452 = vdwg.mxu0
        %v3454 = vsel %vm2345, %v2645, 0
        %3456 = vmatprep.subr.mxu0 0.0
        %3457 = vmatpush1.msra.mxu0 %v1071
        %3458 = vmatprep.subr.mxu0 0.0
        %3459 = vmatpush1.msra.mxu0 0.0
        %3460 = vmatprep.subr.mxu0 0.0
        %3461 = vmatpush1.msra.mxu0 0.0
        %3462 = vmatprep.subr.mxu0 0.0
        %3463 = vmatpush1.msra.mxu0 0.0
        %3464 = vmatprep.subr.mxu0 0.0
        %3465 = vmatpush1.msra.mxu0 0.0
        %3466 = vmatprep.subr.mxu0 0.0
        %3467 = vmatpush1.msra.mxu0 0.0
        %3468 = vmatprep.subr.mxu0 0.0
        %3469 = vmatpush1.msra.mxu0 0.0
        %3470 = vmatprep.subr.mxu0 0.0
        %3471 = vmatpush1.msra.mxu0 0.0
        %3472 = vmatprep.subr.mxu0 0.0
        %3473 = vmatpush1.msra.mxu0 0.0
        %3474 = vmatprep.subr.mxu0 0.0
        %3475 = vmatpush1.msra.mxu0 0.0
        %3476 = vmatprep.subr.mxu0 0.0
        %3477 = vmatpush1.msra.mxu0 0.0
        %3478 = vmatprep.subr.mxu0 0.0
        %3479 = vmatpush1.msra.mxu0 0.0
        %3480 = vmatprep.subr.mxu0 0.0
        %3481 = vmatpush1.msra.mxu0 0.0
        %3482 = vmatprep.subr.mxu0 0.0
        %3483 = vmatpush1.msra.mxu0 0.0
        %3484 = vmatprep.subr.mxu0 0.0
        %3485 = vmatpush1.msra.mxu0 0.0
        %3486 = vmatprep.subr.mxu0 0.0
        %3487 = vmatpush1.msra.mxu0 0.0
        %3488 = vmatprep.subr.mxu0 0.0
        %3489 = vmatpush1.msra.mxu0 0.0
        %3490 = vmatprep.subr.mxu0 0.0
        %3491 = vmatpush1.msra.mxu0 0.0
        %3492 = vmatprep.subr.mxu0 0.0
        %3493 = vmatpush1.msra.mxu0 0.0
        %3494 = vmatprep.subr.mxu0 0.0
        %3495 = vmatpush1.msra.mxu0 0.0
        %3496 = vmatprep.subr.mxu0 0.0
        %3497 = vmatpush1.msra.mxu0 0.0
        %3498 = vmatprep.subr.mxu0 0.0
        %3499 = vmatpush1.msra.mxu0 0.0
        %3500 = vmatprep.subr.mxu0 0.0
        %3501 = vmatpush1.msra.mxu0 0.0
        %3502 = vmatprep.subr.mxu0 0.0
        %3503 = vmatpush1.msra.mxu0 0.0
        %3504 = vmatprep.subr.mxu0 0.0
        %3505 = vmatpush1.msra.mxu0 0.0
        %3506 = vmatprep.subr.mxu0 0.0
        %3507 = vmatpush1.msra.mxu0 0.0
        %3508 = vmatprep.subr.mxu0 0.0
        %3509 = vmatpush1.msra.mxu0 0.0
        %3510 = vmatprep.subr.mxu0 0.0
        %3511 = vmatpush1.msra.mxu0 0.0
        %3512 = vmatprep.subr.mxu0 0.0
        %3513 = vmatpush1.msra.mxu0 0.0
        %3514 = vmatprep.subr.mxu0 0.0
        %3515 = vmatpush1.msra.mxu0 0.0
        %3516 = vmatprep.subr.mxu0 0.0
        %3517 = vmatpush1.msra.mxu0 0.0
        %3518 = vmatprep.subr.mxu0 0.0
        %3519 = vmatpush1.msra.mxu0 0.0
        %3520 = vmatprep.mubr.f32.mxu0 0.0
        %3521 = vmatmul.mubr.f32.gmra.mrb[0].mxu0 %v3454
        %v3522 = vpop.f32.mrb[0].mxu0
        %v3523 = vadd.f32 0.0, %v3522
        %v3524 = vpop.f32.mrb[0].mxu0
        %3525 = vdwg.mxu0
        %v3527 = vsel %vm2345, %v2646, 0
        %3529 = vmatprep.subr.mxu0 0.0
        %3530 = vmatpush1.msra.mxu0 %v1076
        %3531 = vmatprep.subr.mxu0 0.0
        %3532 = vmatpush1.msra.mxu0 0.0
        %3533 = vmatprep.subr.mxu0 0.0
        %3534 = vmatpush1.msra.mxu0 0.0
        %3535 = vmatprep.subr.mxu0 0.0
        %3536 = vmatpush1.msra.mxu0 0.0
        %3537 = vmatprep.subr.mxu0 0.0
        %3538 = vmatpush1.msra.mxu0 0.0
        %3539 = vmatprep.subr.mxu0 0.0
        %3540 = vmatpush1.msra.mxu0 0.0
        %3541 = vmatprep.subr.mxu0 0.0
        %3542 = vmatpush1.msra.mxu0 0.0
        %3543 = vmatprep.subr.mxu0 0.0
        %3544 = vmatpush1.msra.mxu0 0.0
        %3545 = vmatprep.subr.mxu0 0.0
        %3546 = vmatpush1.msra.mxu0 0.0
        %3547 = vmatprep.subr.mxu0 0.0
        %3548 = vmatpush1.msra.mxu0 0.0
        %3549 = vmatprep.subr.mxu0 0.0
        %3550 = vmatpush1.msra.mxu0 0.0
        %3551 = vmatprep.subr.mxu0 0.0
        %3552 = vmatpush1.msra.mxu0 0.0
        %3553 = vmatprep.subr.mxu0 0.0
        %3554 = vmatpush1.msra.mxu0 0.0
        %3555 = vmatprep.subr.mxu0 0.0
        %3556 = vmatpush1.msra.mxu0 0.0
        %3557 = vmatprep.subr.mxu0 0.0
        %3558 = vmatpush1.msra.mxu0 0.0
        %3559 = vmatprep.subr.mxu0 0.0
        %3560 = vmatpush1.msra.mxu0 0.0
        %3561 = vmatprep.subr.mxu0 0.0
        %3562 = vmatpush1.msra.mxu0 0.0
        %3563 = vmatprep.subr.mxu0 0.0
        %3564 = vmatpush1.msra.mxu0 0.0
        %3565 = vmatprep.subr.mxu0 0.0
        %3566 = vmatpush1.msra.mxu0 0.0
        %3567 = vmatprep.subr.mxu0 0.0
        %3568 = vmatpush1.msra.mxu0 0.0
        %3569 = vmatprep.subr.mxu0 0.0
        %3570 = vmatpush1.msra.mxu0 0.0
        %3571 = vmatprep.subr.mxu0 0.0
        %3572 = vmatpush1.msra.mxu0 0.0
        %3573 = vmatprep.subr.mxu0 0.0
        %3574 = vmatpush1.msra.mxu0 0.0
        %3575 = vmatprep.subr.mxu0 0.0
        %3576 = vmatpush1.msra.mxu0 0.0
        %3577 = vmatprep.subr.mxu0 0.0
        %3578 = vmatpush1.msra.mxu0 0.0
        %3579 = vmatprep.subr.mxu0 0.0
        %3580 = vmatpush1.msra.mxu0 0.0
        %3581 = vmatprep.subr.mxu0 0.0
        %3582 = vmatpush1.msra.mxu0 0.0
        %3583 = vmatprep.subr.mxu0 0.0
        %3584 = vmatpush1.msra.mxu0 0.0
        %3585 = vmatprep.subr.mxu0 0.0
        %3586 = vmatpush1.msra.mxu0 0.0
        %3587 = vmatprep.subr.mxu0 0.0
        %3588 = vmatpush1.msra.mxu0 0.0
        %3589 = vmatprep.subr.mxu0 0.0
        %3590 = vmatpush1.msra.mxu0 0.0
        %3591 = vmatprep.subr.mxu0 0.0
        %3592 = vmatpush1.msra.mxu0 0.0
        %3593 = vmatprep.mubr.f32.mxu0 0.0
        %3594 = vmatmul.mubr.f32.gmra.mrb[0].mxu0 %v3527
        %v3595 = vpop.f32.mrb[0].mxu0
        %v3596 = vadd.f32 0.0, %v3595
        %v3597 = vpop.f32.mrb[0].mxu0
        %3598 = vdwg.mxu0
        %v3600 = vsel %vm2345, %v2647, 0
        %3602 = vmatprep.subr.mxu0 0.0
        %3603 = vmatpush1.msra.mxu0 %v1081
        %3604 = vmatprep.subr.mxu0 0.0
        %3605 = vmatpush1.msra.mxu0 0.0
        %3606 = vmatprep.subr.mxu0 0.0
        %3607 = vmatpush1.msra.mxu0 0.0
        %3608 = vmatprep.subr.mxu0 0.0
        %3609 = vmatpush1.msra.mxu0 0.0
        %3610 = vmatprep.subr.mxu0 0.0
        %3611 = vmatpush1.msra.mxu0 0.0
        %3612 = vmatprep.subr.mxu0 0.0
        %3613 = vmatpush1.msra.mxu0 0.0
        %3614 = vmatprep.subr.mxu0 0.0
        %3615 = vmatpush1.msra.mxu0 0.0
        %3616 = vmatprep.subr.mxu0 0.0
        %3617 = vmatpush1.msra.mxu0 0.0
        %3618 = vmatprep.subr.mxu0 0.0
        %3619 = vmatpush1.msra.mxu0 0.0
        %3620 = vmatprep.subr.mxu0 0.0
        %3621 = vmatpush1.msra.mxu0 0.0
        %3622 = vmatprep.subr.mxu0 0.0
        %3623 = vmatpush1.msra.mxu0 0.0
        %3624 = vmatprep.subr.mxu0 0.0
        %3625 = vmatpush1.msra.mxu0 0.0
        %3626 = vmatprep.subr.mxu0 0.0
        %3627 = vmatpush1.msra.mxu0 0.0
        %3628 = vmatprep.subr.mxu0 0.0
        %3629 = vmatpush1.msra.mxu0 0.0
        %3630 = vmatprep.subr.mxu0 0.0
        %3631 = vmatpush1.msra.mxu0 0.0
        %3632 = vmatprep.subr.mxu0 0.0
        %3633 = vmatpush1.msra.mxu0 0.0
        %3634 = vmatprep.subr.mxu0 0.0
        %3635 = vmatpush1.msra.mxu0 0.0
        %3636 = vmatprep.subr.mxu0 0.0
        %3637 = vmatpush1.msra.mxu0 0.0
        %3638 = vmatprep.subr.mxu0 0.0
        %3639 = vmatpush1.msra.mxu0 0.0
        %3640 = vmatprep.subr.mxu0 0.0
        %3641 = vmatpush1.msra.mxu0 0.0
        %3642 = vmatprep.subr.mxu0 0.0
        %3643 = vmatpush1.msra.mxu0 0.0
        %3644 = vmatprep.subr.mxu0 0.0
        %3645 = vmatpush1.msra.mxu0 0.0
        %3646 = vmatprep.subr.mxu0 0.0
        %3647 = vmatpush1.msra.mxu0 0.0
        %3648 = vmatprep.subr.mxu0 0.0
        %3649 = vmatpush1.msra.mxu0 0.0
        %3650 = vmatprep.subr.mxu0 0.0
        %3651 = vmatpush1.msra.mxu0 0.0
        %3652 = vmatprep.subr.mxu0 0.0
        %3653 = vmatpush1.msra.mxu0 0.0
        %3654 = vmatprep.subr.mxu0 0.0
        %3655 = vmatpush1.msra.mxu0 0.0
        %3656 = vmatprep.subr.mxu0 0.0
        %3657 = vmatpush1.msra.mxu0 0.0
        %3658 = vmatprep.subr.mxu0 0.0
        %3659 = vmatpush1.msra.mxu0 0.0
        %3660 = vmatprep.subr.mxu0 0.0
        %3661 = vmatpush1.msra.mxu0 0.0
        %3662 = vmatprep.subr.mxu0 0.0
        %3663 = vmatpush1.msra.mxu0 0.0
        %3664 = vmatprep.subr.mxu0 0.0
        %3665 = vmatpush1.msra.mxu0 0.0
        %3666 = vmatprep.mubr.f32.mxu0 0.0
        %3667 = vmatmul.mubr.f32.gmra.mrb[0].mxu0 %v3600
        %v3668 = vpop.f32.mrb[0].mxu0
        %v3669 = vadd.f32 0.0, %v3668
        %v3670 = vpop.f32.mrb[0].mxu0
        %3671 = vdwg.mxu0
        %v3673 = vsel %vm2345, %v2648, 0
        %3675 = vmatprep.subr.mxu0 0.0
        %3676 = vmatpush1.msra.mxu0 %v1086
        %3677 = vmatprep.subr.mxu0 0.0
        %3678 = vmatpush1.msra.mxu0 0.0
        %3679 = vmatprep.subr.mxu0 0.0
        %3680 = vmatpush1.msra.mxu0 0.0
        %3681 = vmatprep.subr.mxu0 0.0
        %3682 = vmatpush1.msra.mxu0 0.0
        %3683 = vmatprep.subr.mxu0 0.0
        %3684 = vmatpush1.msra.mxu0 0.0
        %3685 = vmatprep.subr.mxu0 0.0
        %3686 = vmatpush1.msra.mxu0 0.0
        %3687 = vmatprep.subr.mxu0 0.0
        %3688 = vmatpush1.msra.mxu0 0.0
        %3689 = vmatprep.subr.mxu0 0.0
        %3690 = vmatpush1.msra.mxu0 0.0
        %3691 = vmatprep.subr.mxu0 0.0
        %3692 = vmatpush1.msra.mxu0 0.0
        %3693 = vmatprep.subr.mxu0 0.0
        %3694 = vmatpush1.msra.mxu0 0.0
        %3695 = vmatprep.subr.mxu0 0.0
        %3696 = vmatpush1.msra.mxu0 0.0
        %3697 = vmatprep.subr.mxu0 0.0
        %3698 = vmatpush1.msra.mxu0 0.0
        %3699 = vmatprep.subr.mxu0 0.0
        %3700 = vmatpush1.msra.mxu0 0.0
        %3701 = vmatprep.subr.mxu0 0.0
        %3702 = vmatpush1.msra.mxu0 0.0
        %3703 = vmatprep.subr.mxu0 0.0
        %3704 = vmatpush1.msra.mxu0 0.0
        %3705 = vmatprep.subr.mxu0 0.0
        %3706 = vmatpush1.msra.mxu0 0.0
        %3707 = vmatprep.subr.mxu0 0.0
        %3708 = vmatpush1.msra.mxu0 0.0
        %3709 = vmatprep.subr.mxu0 0.0
        %3710 = vmatpush1.msra.mxu0 0.0
        %3711 = vmatprep.subr.mxu0 0.0
        %3712 = vmatpush1.msra.mxu0 0.0
        %3713 = vmatprep.subr.mxu0 0.0
        %3714 = vmatpush1.msra.mxu0 0.0
        %3715 = vmatprep.subr.mxu0 0.0
        %3716 = vmatpush1.msra.mxu0 0.0
        %3717 = vmatprep.subr.mxu0 0.0
        %3718 = vmatpush1.msra.mxu0 0.0
        %3719 = vmatprep.subr.mxu0 0.0
        %3720 = vmatpush1.msra.mxu0 0.0
        %3721 = vmatprep.subr.mxu0 0.0
        %3722 = vmatpush1.msra.mxu0 0.0
        %3723 = vmatprep.subr.mxu0 0.0
        %3724 = vmatpush1.msra.mxu0 0.0
        %3725 = vmatprep.subr.mxu0 0.0
        %3726 = vmatpush1.msra.mxu0 0.0
        %3727 = vmatprep.subr.mxu0 0.0
        %3728 = vmatpush1.msra.mxu0 0.0
        %3729 = vmatprep.subr.mxu0 0.0
        %3730 = vmatpush1.msra.mxu0 0.0
        %3731 = vmatprep.subr.mxu0 0.0
        %3732 = vmatpush1.msra.mxu0 0.0
        %3733 = vmatprep.subr.mxu0 0.0
        %3734 = vmatpush1.msra.mxu0 0.0
        %3735 = vmatprep.subr.mxu0 0.0
        %3736 = vmatpush1.msra.mxu0 0.0
        %3737 = vmatprep.subr.mxu0 0.0
        %3738 = vmatpush1.msra.mxu0 0.0
        %3739 = vmatprep.mubr.f32.mxu0 0.0
        %3740 = vmatmul.mubr.f32.gmra.mrb[0].mxu0 %v3673
        %v3741 = vpop.f32.mrb[0].mxu0
        %v3742 = vadd.f32 0.0, %v3741
        %v3743 = vpop.f32.mrb[0].mxu0
        %3744 = vdwg.mxu0
        %v3746 = vsel %vm2345, %v2649, 0
        %3748 = vmatprep.subr.mxu0 0.0
        %3749 = vmatpush1.msra.mxu0 %v1091
        %3750 = vmatprep.subr.mxu0 0.0
        %3751 = vmatpush1.msra.mxu0 0.0
        %3752 = vmatprep.subr.mxu0 0.0
        %3753 = vmatpush1.msra.mxu0 0.0
        %3754 = vmatprep.subr.mxu0 0.0
        %3755 = vmatpush1.msra.mxu0 0.0
        %3756 = vmatprep.subr.mxu0 0.0
        %3757 = vmatpush1.msra.mxu0 0.0
        %3758 = vmatprep.subr.mxu0 0.0
        %3759 = vmatpush1.msra.mxu0 0.0
        %3760 = vmatprep.subr.mxu0 0.0
        %3761 = vmatpush1.msra.mxu0 0.0
        %3762 = vmatprep.subr.mxu0 0.0
        %3763 = vmatpush1.msra.mxu0 0.0
        %3764 = vmatprep.subr.mxu0 0.0
        %3765 = vmatpush1.msra.mxu0 0.0
        %3766 = vmatprep.subr.mxu0 0.0
        %3767 = vmatpush1.msra.mxu0 0.0
        %3768 = vmatprep.subr.mxu0 0.0
        %3769 = vmatpush1.msra.mxu0 0.0
        %3770 = vmatprep.subr.mxu0 0.0
        %3771 = vmatpush1.msra.mxu0 0.0
        %3772 = vmatprep.subr.mxu0 0.0
        %3773 = vmatpush1.msra.mxu0 0.0
        %3774 = vmatprep.subr.mxu0 0.0
        %3775 = vmatpush1.msra.mxu0 0.0
        %3776 = vmatprep.subr.mxu0 0.0
        %3777 = vmatpush1.msra.mxu0 0.0
        %3778 = vmatprep.subr.mxu0 0.0
        %3779 = vmatpush1.msra.mxu0 0.0
        %3780 = vmatprep.subr.mxu0 0.0
        %3781 = vmatpush1.msra.mxu0 0.0
        %3782 = vmatprep.subr.mxu0 0.0
        %3783 = vmatpush1.msra.mxu0 0.0
        %3784 = vmatprep.subr.mxu0 0.0
        %3785 = vmatpush1.msra.mxu0 0.0
        %3786 = vmatprep.subr.mxu0 0.0
        %3787 = vmatpush1.msra.mxu0 0.0
        %3788 = vmatprep.subr.mxu0 0.0
        %3789 = vmatpush1.msra.mxu0 0.0
        %3790 = vmatprep.subr.mxu0 0.0
        %3791 = vmatpush1.msra.mxu0 0.0
        %3792 = vmatprep.subr.mxu0 0.0
        %3793 = vmatpush1.msra.mxu0 0.0
        %3794 = vmatprep.subr.mxu0 0.0
        %3795 = vmatpush1.msra.mxu0 0.0
        %3796 = vmatprep.subr.mxu0 0.0
        %3797 = vmatpush1.msra.mxu0 0.0
        %3798 = vmatprep.subr.mxu0 0.0
        %3799 = vmatpush1.msra.mxu0 0.0
        %3800 = vmatprep.subr.mxu0 0.0
        %3801 = vmatpush1.msra.mxu0 0.0
        %3802 = vmatprep.subr.mxu0 0.0
        %3803 = vmatpush1.msra.mxu0 0.0
        %3804 = vmatprep.subr.mxu0 0.0
        %3805 = vmatpush1.msra.mxu0 0.0
        %3806 = vmatprep.subr.mxu0 0.0
        %3807 = vmatpush1.msra.mxu0 0.0
        %3808 = vmatprep.subr.mxu0 0.0
        %3809 = vmatpush1.msra.mxu0 0.0
        %3810 = vmatprep.subr.mxu0 0.0
        %3811 = vmatpush1.msra.mxu0 0.0
        %3812 = vmatprep.mubr.f32.mxu0 0.0
        %3813 = vmatmul.mubr.f32.gmra.mrb[0].mxu0 %v3746
        %v3814 = vpop.f32.mrb[0].mxu0
        %v3815 = vadd.f32 0.0, %v3814
        %v3816 = vpop.f32.mrb[0].mxu0
        %3817 = vdwg.mxu0
        %v3818 = vld [vmem:[%s6] sm:$0xff]
        %v3819 = vld [vmem:[%s6 + $0x8] sm:$0xff]
        %v3820 = vld [vmem:[%s6 + $0x10] sm:$0xff]
        %v3821 = vld [vmem:[%s6 + $0x18] sm:$0xff]
        %v3822 = vld [vmem:[%s7] sm:$0x1]
        %v3824 = vlaneseq
        %v3825 = vshrl.u32 %v3824, 7
        %v3826 = vsub.s32 0, %v3825
        %v3827 = vrot.slane %v3822, %v3826
        %v3830 = vsel %vm602, %v2720, 0
        %v3833 = vsel %vm602, %v2793, 0
        %v3836 = vsel %vm602, %v2866, 0
        %v3839 = vsel %vm602, %v2939, 0
        %v3842 = vsel %vm602, %v3012, 0
        %v3845 = vsel %vm602, %v3085, 0
        %v3848 = vsel %vm602, %v3158, 0
        %v3851 = vsel %vm602, %v3231, 0
        %v3854 = vsel %vm602, %v3304, 0
        %v3857 = vsel %vm602, %v3377, 0
        %v3860 = vsel %vm602, %v3450, 0
        %v3863 = vsel %vm602, %v3523, 0
        %v3866 = vsel %vm602, %v3596, 0
        %v3869 = vsel %vm602, %v3669, 0
        %v3872 = vsel %vm602, %v3742, 0
        %v3875 = vsel %vm602, %v3815, 0
        %3877 = vmatprep.subr.mxu0 0.0
        %3878 = vmatpush1.msra.mxu0 %v3818
        %3879 = vmatprep.subr.mxu0 0.0
        %3880 = vmatpush1.msra.mxu0 %v3819
        %3881 = vmatprep.subr.mxu0 0.0
        %3882 = vmatpush1.msra.mxu0 %v3820
        %3883 = vmatprep.subr.mxu0 0.0
        %3884 = vmatpush1.msra.mxu0 %v3821
        %3885 = vmatprep.subr.mxu0 0.0
        %3886 = vmatpush1.msra.mxu0 0.0
        %3887 = vmatprep.subr.mxu0 0.0
        %3888 = vmatpush1.msra.mxu0 0.0
        %3889 = vmatprep.subr.mxu0 0.0
        %3890 = vmatpush1.msra.mxu0 0.0
        %3891 = vmatprep.subr.mxu0 0.0
        %3892 = vmatpush1.msra.mxu0 0.0
        %3893 = vmatprep.subr.mxu0 0.0
        %3894 = vmatpush1.msra.mxu0 0.0
        %3895 = vmatprep.subr.mxu0 0.0
        %3896 = vmatpush1.msra.mxu0 0.0
        %3897 = vmatprep.subr.mxu0 0.0
        %3898 = vmatpush1.msra.mxu0 0.0
        %3899 = vmatprep.subr.mxu0 0.0
        %3900 = vmatpush1.msra.mxu0 0.0
        %3901 = vmatprep.subr.mxu0 0.0
        %3902 = vmatpush1.msra.mxu0 0.0
        %3903 = vmatprep.subr.mxu0 0.0
        %3904 = vmatpush1.msra.mxu0 0.0
        %3905 = vmatprep.subr.mxu0 0.0
        %3906 = vmatpush1.msra.mxu0 0.0
        %3907 = vmatprep.subr.mxu0 0.0
        %3908 = vmatpush1.msra.mxu0 0.0
        %3909 = vmatprep.subr.mxu0 0.0
        %3910 = vmatpush1.msra.mxu0 0.0
        %3911 = vmatprep.subr.mxu0 0.0
        %3912 = vmatpush1.msra.mxu0 0.0
        %3913 = vmatprep.subr.mxu0 0.0
        %3914 = vmatpush1.msra.mxu0 0.0
        %3915 = vmatprep.subr.mxu0 0.0
        %3916 = vmatpush1.msra.mxu0 0.0
        %3917 = vmatprep.subr.mxu0 0.0
        %3918 = vmatpush1.msra.mxu0 0.0
        %3919 = vmatprep.subr.mxu0 0.0
        %3920 = vmatpush1.msra.mxu0 0.0
        %3921 = vmatprep.subr.mxu0 0.0
        %3922 = vmatpush1.msra.mxu0 0.0
        %3923 = vmatprep.subr.mxu0 0.0
        %3924 = vmatpush1.msra.mxu0 0.0
        %3925 = vmatprep.subr.mxu0 0.0
        %3926 = vmatpush1.msra.mxu0 0.0
        %3927 = vmatprep.subr.mxu0 0.0
        %3928 = vmatpush1.msra.mxu0 0.0
        %3929 = vmatprep.subr.mxu0 0.0
        %3930 = vmatpush1.msra.mxu0 0.0
        %3931 = vmatprep.subr.mxu0 0.0
        %3932 = vmatpush1.msra.mxu0 0.0
        %3933 = vmatprep.subr.mxu0 0.0
        %3934 = vmatpush1.msra.mxu0 0.0
        %3935 = vmatprep.subr.mxu0 0.0
        %3936 = vmatpush1.msra.mxu0 0.0
        %3937 = vmatprep.subr.mxu0 0.0
        %3938 = vmatpush1.msra.mxu0 0.0
        %3939 = vmatprep.subr.mxu0 0.0
        %3940 = vmatpush1.msra.mxu0 0.0
        %3941 = vmatprep.mubr.f32.mxu0 0.0
        %3942 = vmatmul.mubr.f32.gmra.mrb[0].mxu0 %v3830
        %v3943 = vpop.f32.mrb[0].mxu0
        %v3944 = vadd.f32 %v3827, %v3943
        %v3945 = vpop.f32.mrb[0].mxu0
        %3946 = vmatprep.mubr.f32.mxu0 0.0
        %3947 = vmatmul.mubr.f32.gmra.mrb[0].mxu0 %v3833
        %v3948 = vpop.f32.mrb[0].mxu0
        %v3949 = vadd.f32 %v3827, %v3948
        %v3950 = vpop.f32.mrb[0].mxu0
        %3951 = vmatprep.mubr.f32.mxu0 0.0
        %3952 = vmatmul.mubr.f32.gmra.mrb[0].mxu0 %v3836
        %v3953 = vpop.f32.mrb[0].mxu0
        %v3954 = vadd.f32 %v3827, %v3953
        %v3955 = vpop.f32.mrb[0].mxu0
        %3956 = vmatprep.mubr.f32.mxu0 0.0
        %3957 = vmatmul.mubr.f32.gmra.mrb[0].mxu0 %v3839
        %v3958 = vpop.f32.mrb[0].mxu0
        %v3959 = vadd.f32 %v3827, %v3958
        %v3960 = vpop.f32.mrb[0].mxu0
        %3961 = vmatprep.mubr.f32.mxu0 0.0
        %3962 = vmatmul.mubr.f32.gmra.mrb[0].mxu0 %v3842
        %v3963 = vpop.f32.mrb[0].mxu0
        %v3964 = vadd.f32 %v3827, %v3963
        %v3965 = vpop.f32.mrb[0].mxu0
        %3966 = vmatprep.mubr.f32.mxu0 0.0
        %3967 = vmatmul.mubr.f32.gmra.mrb[0].mxu0 %v3845
        %v3968 = vpop.f32.mrb[0].mxu0
        %v3969 = vadd.f32 %v3827, %v3968
        %v3970 = vpop.f32.mrb[0].mxu0
        %3971 = vmatprep.mubr.f32.mxu0 0.0
        %3972 = vmatmul.mubr.f32.gmra.mrb[0].mxu0 %v3848
        %v3973 = vpop.f32.mrb[0].mxu0
        %v3974 = vadd.f32 %v3827, %v3973
        %v3975 = vpop.f32.mrb[0].mxu0
        %3976 = vmatprep.mubr.f32.mxu0 0.0
        %3977 = vmatmul.mubr.f32.gmra.mrb[0].mxu0 %v3851
        %v3978 = vpop.f32.mrb[0].mxu0
        %v3979 = vadd.f32 %v3827, %v3978
        %v3980 = vpop.f32.mrb[0].mxu0
        %3981 = vmatprep.mubr.f32.mxu0 0.0
        %3982 = vmatmul.mubr.f32.gmra.mrb[0].mxu0 %v3854
        %v3983 = vpop.f32.mrb[0].mxu0
        %v3984 = vadd.f32 %v3827, %v3983
        %v3985 = vpop.f32.mrb[0].mxu0
        %3986 = vmatprep.mubr.f32.mxu0 0.0
        %3987 = vmatmul.mubr.f32.gmra.mrb[0].mxu0 %v3857
        %v3988 = vpop.f32.mrb[0].mxu0
        %v3989 = vadd.f32 %v3827, %v3988
        %v3990 = vpop.f32.mrb[0].mxu0
        %3991 = vmatprep.mubr.f32.mxu0 0.0
        %3992 = vmatmul.mubr.f32.gmra.mrb[0].mxu0 %v3860
        %v3993 = vpop.f32.mrb[0].mxu0
        %v3994 = vadd.f32 %v3827, %v3993
        %v3995 = vpop.f32.mrb[0].mxu0
        %3996 = vmatprep.mubr.f32.mxu0 0.0
        %3997 = vmatmul.mubr.f32.gmra.mrb[0].mxu0 %v3863
        %v3998 = vpop.f32.mrb[0].mxu0
        %v3999 = vadd.f32 %v3827, %v3998
        %v4000 = vpop.f32.mrb[0].mxu0
        %4001 = vmatprep.mubr.f32.mxu0 0.0
        %4002 = vmatmul.mubr.f32.gmra.mrb[0].mxu0 %v3866
        %v4003 = vpop.f32.mrb[0].mxu0
        %v4004 = vadd.f32 %v3827, %v4003
        %v4005 = vpop.f32.mrb[0].mxu0
        %4006 = vmatprep.mubr.f32.mxu0 0.0
        %4007 = vmatmul.mubr.f32.gmra.mrb[0].mxu0 %v3869
        %v4008 = vpop.f32.mrb[0].mxu0
        %v4009 = vadd.f32 %v3827, %v4008
        %v4010 = vpop.f32.mrb[0].mxu0
        %4011 = vmatprep.mubr.f32.mxu0 0.0
        %4012 = vmatmul.mubr.f32.gmra.mrb[0].mxu0 %v3872
        %v4013 = vpop.f32.mrb[0].mxu0
        %v4014 = vadd.f32 %v3827, %v4013
        %v4015 = vpop.f32.mrb[0].mxu0
        %4016 = vmatprep.mubr.f32.mxu0 0.0
        %4017 = vmatmul.mubr.f32.gmra.mrb[0].mxu0 %v3875
        %v4018 = vpop.f32.mrb[0].mxu0
        %v4019 = vadd.f32 %v3827, %v4018
        %v4020 = vpop.f32.mrb[0].mxu0
        %4021 = vdwg.mxu0
        %4022 = vst [vmem:[%s299] sm:$0xff] %v3944
        %4023 = vst [vmem:[%s299 + $0x8] sm:$0xff] %v3949
        %4024 = vst [vmem:[%s299 + $0x10] sm:$0xff] %v3954
        %4025 = vst [vmem:[%s299 + $0x18] sm:$0xff] %v3959
        %4026 = vst [vmem:[%s299 + $0x20] sm:$0xff] %v3964
        %4027 = vst [vmem:[%s299 + $0x28] sm:$0xff] %v3969
        %4028 = vst [vmem:[%s299 + $0x30] sm:$0xff] %v3974
        %4029 = vst [vmem:[%s299 + $0x38] sm:$0xff] %v3979
        %4030 = vst [vmem:[%s299 + $0x40] sm:$0xff] %v3984
        %4031 = vst [vmem:[%s299 + $0x48] sm:$0xff] %v3989
        %4032 = vst [vmem:[%s299 + $0x50] sm:$0xff] %v3994
        %4033 = vst [vmem:[%s299 + $0x58] sm:$0xff] %v3999
        %4034 = vst [vmem:[%s299 + $0x60] sm:$0xff] %v4004
        %4035 = vst [vmem:[%s299 + $0x68] sm:$0xff] %v4009
        %4036 = vst [vmem:[%s299 + $0x70] sm:$0xff] %v4014
        %4037 = vst [vmem:[%s299 + $0x78] sm:$0xff] %v4019
        %s4038 = sand.u32 %s203, 1
        %s4039 = scalar_lea.sflag [#allocation3], %s4038
        %s4040 = sand.u32 %s203, 1
        %s4041 = smul.addr %s4040, 128
        %s4042 = scalar_lea.vmem [#allocation2], %s4041
        // Predicated region
        $region53: #{bigram_forward.1} parent=51 // pred_check
          %p4043 = pneg %p213
        $region54: #{bigram_forward.1} parent=51 // pred_check_branch
          %4045 = sbr.rel (%p4043) target = $region56
        $region55: #{bigram_forward.1} parent=51 // pred_region
          %s4046 = smul.u32 16, %s22
          %s4048 = ssub.s32 2048, 2048
          %4049 = vsyncadd %s4039, %s4048
          %s4050 = smul.addr %s4046, 128
          %s4051 = scalar_lea.hbm %s8, %s4050
          %s4052 = sshll.u32 %s4042, 4
          %s4053 = int_to_ptr.vmem [resolvable:$true] %s4052
          %4058 = dma.vmem_to_hbm [thread:$0]  %s4053, 2048, %s4051, %s4039, 128, 128, 8
        $region56: #{bigram_forward.1} parent=51 // pred_fallthru
          _
      $region52: #{bigram_forward.1} parent=5 // pred_fallthru
        _
      %p4059 = scmp.le.s32.totalorder 2, %s17
      // Predicated region
      $region57: #{bigram_forward.1} parent=5 // pred_check
        %p4060 = pneg %p4059
      $region58: #{bigram_forward.1} parent=5 // pred_check_branch
        %4062 = sbr.rel (%p4060) target = $region60
      $region59: #{bigram_forward.1} parent=5 // pred_region
        %s4063 = ssub.s32 %s17, 2
        // Predicated region
        $region61: #{bigram_forward.1} parent=59 // pred_check
          %p4064 = pneg %p219
        $region62: #{bigram_forward.1} parent=59 // pred_check_branch
          %4066 = sbr.rel (%p4064) target = $region64
        $region63: #{bigram_forward.1} parent=59 // pred_region
          %s4067 = sand.u32 %s204, 1
          %s4068 = scalar_lea.sflag [#allocation3], %s4067
          %s4069 = sand.u32 %s204, 1
          %s4070 = smul.addr %s4069, 128
          %s4071 = scalar_lea.vmem [#allocation2], %s4070
          %4072 = dma.done %s4068, 2048
        $region64: #{bigram_forward.1} parent=59 // pred_fallthru
          _
      $region60: #{bigram_forward.1} parent=5 // pred_fallthru
        _
    $region6: #{bigram_forward.1} parent=1 // loop_footer
      %s21 = sadd.s32 1, %s17
    $region7: #{bigram_forward.1} parent=1 // loop_footer_branch
      %16 = sbr.rel target = $region3
    $region8: #{bigram_forward.1} parent=1 // loop_exit
      _
    %4073 = vsyncpa [#allocation3], 1
    %s4074 = scalar_lea.sflag [#allocation3], 1
    %4075 = vsyncpa %s4074, 1

</llo_original>
